<compile_context>
chip_gen: v5e
topology: v5e:2x2
jax: 0.10.0
libtpu: 0.0.40
codegen_flags: <defaults>
</compile_context>

<pallas_src>
import math

import numpy as np

import jax
import jax.numpy as jnp
from jax.experimental import pallas as pl
from jax.experimental.pallas import tpu as pltpu


def _bilinear_matrix(n_in: int, n_out: int) -> np.ndarray:
    """Dense (n_out, n_in) interpolation matrix (bilinear, align_corners=True)."""
    A = np.zeros((n_out, n_in), dtype=np.float32)
    if n_out == 1 or n_in == 1:
        A[:, 0] = 1.0
        return A
    for p in range(n_out):
        src = p * (n_in - 1) / (n_out - 1)
        i0 = min(int(math.floor(src)), n_in - 1)
        i1 = min(i0 + 1, n_in - 1)
        t = src - i0
        A[p, i0] += 1.0 - t
        A[p, i1] += t
    return A


def _make_kernel(Nb, Cin, Cout, H, W, H2, W2, Vp, eps, compute_dtype):
    B = Nb * Cin              # (image, channel) maps handled per grid step
    Hp = H2 + 3               # top pad + H2 rows + bottom pad + guard row
    L = H2 * Vp               # conv-output columns per image (row pitch Vp)
    size = Hp * Vp            # flattened padded-map length per (image, channel)
    inv_cnt = 1.0 / float(H2 * W2)
    pow2 = (Vp & (Vp - 1)) == 0

    def kernel(x_ref, awtp_ref, ahp_ref, wmat_ref, o_ref):
        # x_ref:    (Nb, Cin*H, W)      images, channels folded into rows
        # awtp_ref: (W, Vp)             width interp (transposed) + conv pad cols,
        #                               lane-padded to a multiple of 128
        # ahp_ref:  (Hp, H)             height interp + conv pad rows + guard row
        # wmat_ref: (Cout, 9*Cin)       conv taps, row index = (ky*3+kx)*Cin + c
        # o_ref:    (Nb, Cout, H2*Vp)   lane-dense output slab

        # ---- 1) width interpolation: ONE MXU matmul, all images/channels in M
        x2 = x_ref[...].reshape(B * H, W)                     # free leading-dim merge
        xw = jnp.dot(x2, awtp_ref[...],
                     preferred_element_type=jnp.float32)      # (B*H, Vp) f32

        # ---- 2) height interpolation per (image, channel) map, written straight
        #         into the flattened (row pitch Vp) padded representation.
        ahp = ahp_ref[...]                                    # (Hp, H)
        rows = []
        for b in range(B):                                    # small static loop
            xw_b = xw[b * H:(b + 1) * H, :].astype(compute_dtype)          # (H, Vp)
            u_b = jnp.dot(ahp, xw_b, preferred_element_type=jnp.float32)   # (Hp, Vp)
            rows.append(u_b.reshape(1, size))                 # flatten once per map
        base = jnp.concatenate(rows, axis=0).astype(compute_dtype)   # (B, Hp*Vp)

        # valid (non-gap) lane mask for the InstanceNorm statistics
        col = jax.lax.broadcasted_iota(jnp.int32, (1, L), 1)
        lane = (col & (Vp - 1)) if pow2 else (col % Vp)
        valid = lane < W2                                     # (1, L)

        wmat = wmat_ref[...]                                  # (Cout, 9*Cin)

        # ---- 3) per image: ONE fused im2col conv matmul + InstanceNorm + ReLU
        for n in range(Nb):
            r0 = n * Cin
            pieces = []
            for ky in range(3):
                for kx in range(3):                           # tap t = ky*3 + kx
                    off = ky * Vp + kx                        # flat tap offset
                    pieces.append(base[r0:r0 + Cin, off:off + L])   # (Cin, L)
            p_n = jnp.concatenate(pieces, axis=0)             # (9*Cin, L) im2col slab
            acc = jnp.dot(wmat, p_n,
                          preferred_element_type=jnp.float32)  # (Cout, L) f32

            # InstanceNorm2d(affine=False), biased variance, gap lanes masked;
            # conv bias omitted (cancelled exactly by the mean subtraction).
            acc_v = jnp.where(valid, acc, 0.0)
            mean = jnp.sum(acc_v, axis=1, keepdims=True) * inv_cnt
            diff = jnp.where(valid, acc - mean, 0.0)
            var = jnp.sum(diff * diff, axis=1, keepdims=True) * inv_cnt
            y = (acc - mean) * jax.lax.rsqrt(var + eps)
            o_ref[n] = jnp.maximum(y, 0.0).astype(o_ref.dtype)

    return kernel


def upsampling_block_forward(x, weight, bias=None, *, scale_factor=2.0,
                             eps=1e-5, compute_dtype=jnp.float32,
                             images_per_step=None):
    """Forward pass of the default UpsamplingBlock branch.

    x: (N, Cin, H, W) f32, weight: (Cout, Cin, 3, 3), bias: (Cout,) (unused:
    a per-channel constant is cancelled exactly by affine=False InstanceNorm).
    compute_dtype=jnp.bfloat16 speeds up the MXU on v6e/v7x (f32 accumulation
    kept) but may exceed a 1e-3 tolerance; default stays f32.
    """
    del bias  # algebraically cancelled by the instance norm
    N, Cin, H, W = x.shape
    Cout = weight.shape[0]
    H2 = int(math.floor(H * scale_factor))
    W2 = int(math.floor(W * scale_factor))
    Vp = pl.cdiv(W2 + 2, 128) * 128      # lane-dense row pitch
    L = H2 * Vp

    # Images per grid step: whole (small) batch by default.
    Nb = images_per_step or min(N, 8)
    while N % Nb:
        Nb -= 1

    # Height interp matrix with conv zero-pad rows (+1 guard row so every flat
    # im2col window stays in range).
    A_h = _bilinear_matrix(H, H2)                        # (H2, H)
    ahp = np.zeros((H2 + 3, H), dtype=np.float32)
    ahp[1:H2 + 1] = A_h
    # Width interp matrix (transposed) with conv zero-pad cols, lane-padded.
    A_w = _bilinear_matrix(W, W2)                        # (W2, W)
    awtp = np.zeros((W, Vp), dtype=np.float32)
    awtp[:, 1:W2 + 1] = A_w.T
    # Conv taps as a single (Cout, 9*Cin) matrix, row index (ky*3+kx)*Cin + c.
    wmat = np.transpose(np.asarray(weight, np.float32),
                        (0, 2, 3, 1)).reshape(Cout, 9 * Cin)

    x_r = jnp.asarray(x).reshape(N, Cin * H, W).astype(compute_dtype)
    awtp_j = jnp.asarray(awtp, compute_dtype)
    ahp_j = jnp.asarray(ahp, compute_dtype)
    wmat_j = jnp.asarray(wmat, compute_dtype)

    kernel = _make_kernel(Nb, Cin, Cout, H, W, H2, W2, Vp, eps, compute_dtype)

    out_flat = pl.pallas_call(
        kernel,
        out_shape=jax.ShapeDtypeStruct((N, Cout, L), jnp.float32),
        grid=(N // Nb,),
        in_specs=[
            pl.BlockSpec((Nb, Cin * H, W), lambda g: (g, 0, 0)),
            pl.BlockSpec((W, Vp), lambda g: (0, 0)),
            pl.BlockSpec((H2 + 3, H), lambda g: (0, 0)),
            pl.BlockSpec((Cout, 9 * Cin), lambda g: (0, 0)),
        ],
        out_specs=pl.BlockSpec((Nb, Cout, L), lambda g: (g, 0, 0)),
        compiler_params=pltpu.CompilerParams(
            dimension_semantics=("parallel",)),
    )(x_r, awtp_j, ahp_j, wmat_j)

    # Drop the Vp - W2 gap lanes (wrapper-side layout plumbing only).
    return out_flat.reshape(N, Cout, H2, Vp)[..., :W2]


def reference_forward(x, weight, bias, *, scale_factor=2.0, eps=1e-5):
    """Pure-JAX reference with identical semantics (for validation)."""
    N, Cin, H, W = x.shape
    H2 = int(math.floor(H * scale_factor))
    W2 = int(math.floor(W * scale_factor))
    A_h = jnp.asarray(_bilinear_matrix(H, H2))
    A_w = jnp.asarray(_bilinear_matrix(W, W2))
    up = jnp.einsum('pi,ncij,qj->ncpq', A_h, x, A_w)
    out = jax.lax.conv_general_dilated(
        up, weight, window_strides=(1, 1), padding=((1, 1), (1, 1)),
        dimension_numbers=('NCHW', 'OIHW', 'NCHW'))
    out = out + bias[None, :, None, None]
    mean = out.mean(axis=(2, 3), keepdims=True)
    var = ((out - mean) ** 2).mean(axis=(2, 3), keepdims=True)
    out = (out - mean) * jax.lax.rsqrt(var + eps)
    return jnp.maximum(out, 0.0)


if __name__ == "__main__":
    key = jax.random.PRNGKey(0)
    kx, kw, kb = jax.random.split(key, 3)

    N, Cin, H, W = 2, 4, 16, 16
    Cout = Cin  # out_channels defaults to in_channels

    x = jax.random.normal(kx, (N, Cin, H, W), dtype=jnp.float32)
    # Deterministic conv params (PyTorch-style uniform fan-in init).
    fan_in = Cin * 3 * 3
    bound = 1.0 / math.sqrt(fan_in)
    weight = jax.random.uniform(kw, (Cout, Cin, 3, 3), jnp.float32, -bound, bound)
    bias = jax.random.uniform(kb, (Cout,), jnp.float32, -bound, bound)

    out = upsampling_block_forward(x, weight, bias)
    out = jax.block_until_ready(out)

    assert out.shape == (N, Cout, 2 * H, 2 * W), out.shape
    ref = jax.block_until_ready(reference_forward(x, weight, bias))
    np.testing.assert_allclose(np.asarray(out), np.asarray(ref),
                               atol=1e-3, rtol=1e-3)

    print("KERNEL_OK")
</pallas_src>

<mosaic_0001>
module attributes {stable_mosaic.version = 11 : i64} {
  func.func @kernel(%arg0: i32, %arg1: memref<2x64x16xf32, #tpu.memory_space<vmem>>, %arg2: memref<16x128xf32, #tpu.memory_space<vmem>>, %arg3: memref<35x16xf32, #tpu.memory_space<vmem>>, %arg4: memref<4x36xf32, #tpu.memory_space<vmem>>, %arg5: memref<2x4x4096xf32, #tpu.memory_space<vmem>>) attributes {dimension_semantics = [#tpu.dimension_semantics<parallel>], iteration_bounds = array<i64: 1>, scalar_prefetch = 0 : i64, scratch_operands = 0 : i64, tpu.core_type = #tpu.core_type<tc>, window_params = [{transform_indices = @transform_0, window_bounds = array<i64: 2, 64, 16>}, {pipeline_mode = #tpu.pipeline_mode<synchronous>, transform_indices = @transform_1, window_bounds = array<i64: 16, 128>}, {pipeline_mode = #tpu.pipeline_mode<synchronous>, transform_indices = @transform_2, window_bounds = array<i64: 35, 16>}, {pipeline_mode = #tpu.pipeline_mode<synchronous>, transform_indices = @transform_3, window_bounds = array<i64: 4, 36>}, {transform_indices = @transform_4, window_bounds = array<i64: 2, 4, 4096>}]} {
    %c0 = arith.constant 0 : index
    %c0_0 = arith.constant 0 : index
    %c0_1 = arith.constant 0 : index
    %0 = vector.load %arg1[%c0, %c0_0, %c0_1] : memref<2x64x16xf32, #tpu.memory_space<vmem>>, vector<2x64x16xf32>
    %1 = vector.shape_cast %0 : vector<2x64x16xf32> to vector<128x16xf32>
    %c0_2 = arith.constant 0 : index
    %c0_3 = arith.constant 0 : index
    %2 = vector.load %arg2[%c0_2, %c0_3] : memref<16x128xf32, #tpu.memory_space<vmem>>, vector<16x128xf32>
    %cst = arith.constant dense<0.000000e+00> : vector<128x128xf32>
    %3 = tpu.matmul %1, %2, %cst {dimension_numbers = #tpu.dot_dimension_numbers<[1], [0], [0], [1], [0, 0, 1, 1], [], []>} : vector<128x16xf32>, vector<16x128xf32>, vector<128x128xf32> -> vector<128x128xf32>
    %c0_4 = arith.constant 0 : index
    %c0_5 = arith.constant 0 : index
    %4 = vector.load %arg3[%c0_4, %c0_5] : memref<35x16xf32, #tpu.memory_space<vmem>>, vector<35x16xf32>
    %5 = vector.extract_strided_slice %3 {offsets = [0, 0], sizes = [16, 128], strides = [1, 1]} : vector<128x128xf32> to vector<16x128xf32>
    %cst_6 = arith.constant dense<0.000000e+00> : vector<35x128xf32>
    %6 = tpu.matmul %4, %5, %cst_6 {dimension_numbers = #tpu.dot_dimension_numbers<[1], [0], [0], [1], [0, 0, 1, 1], [], []>} : vector<35x16xf32>, vector<16x128xf32>, vector<35x128xf32> -> vector<35x128xf32>
    %7 = vector.shape_cast %6 : vector<35x128xf32> to vector<1x4480xf32>
    %8 = vector.extract_strided_slice %3 {offsets = [16, 0], sizes = [16, 128], strides = [1, 1]} : vector<128x128xf32> to vector<16x128xf32>
    %cst_7 = arith.constant dense<0.000000e+00> : vector<35x128xf32>
    %9 = tpu.matmul %4, %8, %cst_7 {dimension_numbers = #tpu.dot_dimension_numbers<[1], [0], [0], [1], [0, 0, 1, 1], [], []>} : vector<35x16xf32>, vector<16x128xf32>, vector<35x128xf32> -> vector<35x128xf32>
    %10 = vector.shape_cast %9 : vector<35x128xf32> to vector<1x4480xf32>
    %11 = vector.extract_strided_slice %3 {offsets = [32, 0], sizes = [16, 128], strides = [1, 1]} : vector<128x128xf32> to vector<16x128xf32>
    %cst_8 = arith.constant dense<0.000000e+00> : vector<35x128xf32>
    %12 = tpu.matmul %4, %11, %cst_8 {dimension_numbers = #tpu.dot_dimension_numbers<[1], [0], [0], [1], [0, 0, 1, 1], [], []>} : vector<35x16xf32>, vector<16x128xf32>, vector<35x128xf32> -> vector<35x128xf32>
    %13 = vector.shape_cast %12 : vector<35x128xf32> to vector<1x4480xf32>
    %14 = vector.extract_strided_slice %3 {offsets = [48, 0], sizes = [16, 128], strides = [1, 1]} : vector<128x128xf32> to vector<16x128xf32>
    %cst_9 = arith.constant dense<0.000000e+00> : vector<35x128xf32>
    %15 = tpu.matmul %4, %14, %cst_9 {dimension_numbers = #tpu.dot_dimension_numbers<[1], [0], [0], [1], [0, 0, 1, 1], [], []>} : vector<35x16xf32>, vector<16x128xf32>, vector<35x128xf32> -> vector<35x128xf32>
    %16 = vector.shape_cast %15 : vector<35x128xf32> to vector<1x4480xf32>
    %17 = vector.extract_strided_slice %3 {offsets = [64, 0], sizes = [16, 128], strides = [1, 1]} : vector<128x128xf32> to vector<16x128xf32>
    %cst_10 = arith.constant dense<0.000000e+00> : vector<35x128xf32>
    %18 = tpu.matmul %4, %17, %cst_10 {dimension_numbers = #tpu.dot_dimension_numbers<[1], [0], [0], [1], [0, 0, 1, 1], [], []>} : vector<35x16xf32>, vector<16x128xf32>, vector<35x128xf32> -> vector<35x128xf32>
    %19 = vector.shape_cast %18 : vector<35x128xf32> to vector<1x4480xf32>
    %20 = vector.extract_strided_slice %3 {offsets = [80, 0], sizes = [16, 128], strides = [1, 1]} : vector<128x128xf32> to vector<16x128xf32>
    %cst_11 = arith.constant dense<0.000000e+00> : vector<35x128xf32>
    %21 = tpu.matmul %4, %20, %cst_11 {dimension_numbers = #tpu.dot_dimension_numbers<[1], [0], [0], [1], [0, 0, 1, 1], [], []>} : vector<35x16xf32>, vector<16x128xf32>, vector<35x128xf32> -> vector<35x128xf32>
    %22 = vector.shape_cast %21 : vector<35x128xf32> to vector<1x4480xf32>
    %23 = vector.extract_strided_slice %3 {offsets = [96, 0], sizes = [16, 128], strides = [1, 1]} : vector<128x128xf32> to vector<16x128xf32>
    %cst_12 = arith.constant dense<0.000000e+00> : vector<35x128xf32>
    %24 = tpu.matmul %4, %23, %cst_12 {dimension_numbers = #tpu.dot_dimension_numbers<[1], [0], [0], [1], [0, 0, 1, 1], [], []>} : vector<35x16xf32>, vector<16x128xf32>, vector<35x128xf32> -> vector<35x128xf32>
    %25 = vector.shape_cast %24 : vector<35x128xf32> to vector<1x4480xf32>
    %26 = vector.extract_strided_slice %3 {offsets = [112, 0], sizes = [16, 128], strides = [1, 1]} : vector<128x128xf32> to vector<16x128xf32>
    %cst_13 = arith.constant dense<0.000000e+00> : vector<35x128xf32>
    %27 = tpu.matmul %4, %26, %cst_13 {dimension_numbers = #tpu.dot_dimension_numbers<[1], [0], [0], [1], [0, 0, 1, 1], [], []>} : vector<35x16xf32>, vector<16x128xf32>, vector<35x128xf32> -> vector<35x128xf32>
    %28 = vector.shape_cast %27 : vector<35x128xf32> to vector<1x4480xf32>
    %29 = tpu.concatenate %7, %10, %13, %16, %19, %22, %25, %28 in 0 : vector<1x4480xf32>, vector<1x4480xf32>, vector<1x4480xf32>, vector<1x4480xf32>, vector<1x4480xf32>, vector<1x4480xf32>, vector<1x4480xf32>, vector<1x4480xf32> -> vector<8x4480xf32>
    %30 = tpu.iota {dimensions = array<i32: 1>} : vector<1x4096xi32>
    %c127_i32 = arith.constant 127 : i32
    %31 = vector.broadcast %c127_i32 : i32 to vector<1x4096xi32>
    %32 = arith.andi %30, %31 : vector<1x4096xi32>
    %c32_i32 = arith.constant 32 : i32
    %33 = vector.broadcast %c32_i32 : i32 to vector<1x4096xi32>
    %34 = arith.cmpi slt, %32, %33 : vector<1x4096xi32>
    %c0_14 = arith.constant 0 : index
    %c0_15 = arith.constant 0 : index
    %35 = vector.load %arg4[%c0_14, %c0_15] : memref<4x36xf32, #tpu.memory_space<vmem>>, vector<4x36xf32>
    %36 = vector.extract_strided_slice %29 {offsets = [0, 0], sizes = [4, 4096], strides = [1, 1]} : vector<8x4480xf32> to vector<4x4096xf32>
    %37 = vector.extract_strided_slice %29 {offsets = [0, 1], sizes = [4, 4096], strides = [1, 1]} : vector<8x4480xf32> to vector<4x4096xf32>
    %38 = vector.extract_strided_slice %29 {offsets = [0, 2], sizes = [4, 4096], strides = [1, 1]} : vector<8x4480xf32> to vector<4x4096xf32>
    %39 = vector.extract_strided_slice %29 {offsets = [0, 128], sizes = [4, 4096], strides = [1, 1]} : vector<8x4480xf32> to vector<4x4096xf32>
    %40 = vector.extract_strided_slice %29 {offsets = [0, 129], sizes = [4, 4096], strides = [1, 1]} : vector<8x4480xf32> to vector<4x4096xf32>
    %41 = vector.extract_strided_slice %29 {offsets = [0, 130], sizes = [4, 4096], strides = [1, 1]} : vector<8x4480xf32> to vector<4x4096xf32>
    %42 = vector.extract_strided_slice %29 {offsets = [0, 256], sizes = [4, 4096], strides = [1, 1]} : vector<8x4480xf32> to vector<4x4096xf32>
    %43 = vector.extract_strided_slice %29 {offsets = [0, 257], sizes = [4, 4096], strides = [1, 1]} : vector<8x4480xf32> to vector<4x4096xf32>
    %44 = vector.extract_strided_slice %29 {offsets = [0, 258], sizes = [4, 4096], strides = [1, 1]} : vector<8x4480xf32> to vector<4x4096xf32>
    %45 = tpu.concatenate %36, %37, %38, %39, %40, %41, %42, %43, %44 in 0 : vector<4x4096xf32>, vector<4x4096xf32>, vector<4x4096xf32>, vector<4x4096xf32>, vector<4x4096xf32>, vector<4x4096xf32>, vector<4x4096xf32>, vector<4x4096xf32>, vector<4x4096xf32> -> vector<36x4096xf32>
    %cst_16 = arith.constant dense<0.000000e+00> : vector<4x4096xf32>
    %46 = tpu.matmul %35, %45, %cst_16 {dimension_numbers = #tpu.dot_dimension_numbers<[1], [0], [0], [1], [0, 0, 1, 1], [], []>} : vector<4x36xf32>, vector<36x4096xf32>, vector<4x4096xf32> -> vector<4x4096xf32>
    %cst_17 = arith.constant 0.000000e+00 : f32
    %47 = vector.shape_cast %34 : vector<1x4096xi1> to vector<1x4096xi1>
    %48 = vector.broadcast %47 : vector<1x4096xi1> to vector<4x4096xi1>
    %49 = vector.broadcast %cst_17 : f32 to vector<4x4096xf32>
    %50 = arith.select %48, %46, %49 : vector<4x4096xi1>, vector<4x4096xf32>
    %cst_18 = arith.constant dense<0.000000e+00> : vector<4xf32>
    %51 = vector.multi_reduction <add>, %50, %cst_18 [1] : vector<4x4096xf32> to vector<4xf32>
    %52 = vector.shape_cast %51 : vector<4xf32> to vector<4x1xf32>
    %cst_19 = arith.constant 9.765625E-4 : f32
    %53 = vector.broadcast %cst_19 : f32 to vector<4x1xf32>
    %54 = arith.mulf %52, %53 : vector<4x1xf32>
    %55 = vector.broadcast %54 : vector<4x1xf32> to vector<4x4096xf32>
    %56 = arith.subf %46, %55 : vector<4x4096xf32>
    %cst_20 = arith.constant 0.000000e+00 : f32
    %57 = vector.shape_cast %34 : vector<1x4096xi1> to vector<1x4096xi1>
    %58 = vector.broadcast %57 : vector<1x4096xi1> to vector<4x4096xi1>
    %59 = vector.broadcast %cst_20 : f32 to vector<4x4096xf32>
    %60 = arith.select %58, %56, %59 : vector<4x4096xi1>, vector<4x4096xf32>
    %61 = arith.mulf %60, %60 : vector<4x4096xf32>
    %cst_21 = arith.constant dense<0.000000e+00> : vector<4xf32>
    %62 = vector.multi_reduction <add>, %61, %cst_21 [1] : vector<4x4096xf32> to vector<4xf32>
    %63 = vector.shape_cast %62 : vector<4xf32> to vector<4x1xf32>
    %cst_22 = arith.constant 9.765625E-4 : f32
    %64 = vector.broadcast %cst_22 : f32 to vector<4x1xf32>
    %65 = arith.mulf %63, %64 : vector<4x1xf32>
    %66 = vector.broadcast %54 : vector<4x1xf32> to vector<4x4096xf32>
    %67 = arith.subf %46, %66 : vector<4x4096xf32>
    %cst_23 = arith.constant 9.99999974E-6 : f32
    %68 = vector.broadcast %cst_23 : f32 to vector<4x1xf32>
    %69 = arith.addf %65, %68 : vector<4x1xf32>
    %70 = math.rsqrt %69 : vector<4x1xf32>
    %71 = vector.broadcast %70 : vector<4x1xf32> to vector<4x4096xf32>
    %72 = arith.mulf %67, %71 : vector<4x4096xf32>
    %cst_24 = arith.constant 0.000000e+00 : f32
    %73 = vector.broadcast %cst_24 : f32 to vector<4x4096xf32>
    %74 = arith.maximumf %72, %73 : vector<4x4096xf32>
    %c0_25 = arith.constant 0 : index
    %c0_26 = arith.constant 0 : index
    %c0_27 = arith.constant 0 : index
    %75 = vector.load %arg5[%c0_25, %c0_26, %c0_27] : memref<2x4x4096xf32, #tpu.memory_space<vmem>>, vector<1x4x4096xf32>
    %76 = vector.shape_cast %75 : vector<1x4x4096xf32> to vector<4x4096xf32>
    %77 = vector.shape_cast %74 : vector<4x4096xf32> to vector<1x4x4096xf32>
    tpu.vector_store %arg5[%c0_25, %c0_26, %c0_27], %77 {strides = array<i32>} : memref<2x4x4096xf32, #tpu.memory_space<vmem>>, vector<1x4x4096xf32>,
    %78 = vector.extract_strided_slice %29 {offsets = [4, 0], sizes = [4, 4096], strides = [1, 1]} : vector<8x4480xf32> to vector<4x4096xf32>
    %79 = vector.extract_strided_slice %29 {offsets = [4, 1], sizes = [4, 4096], strides = [1, 1]} : vector<8x4480xf32> to vector<4x4096xf32>
    %80 = vector.extract_strided_slice %29 {offsets = [4, 2], sizes = [4, 4096], strides = [1, 1]} : vector<8x4480xf32> to vector<4x4096xf32>
    %81 = vector.extract_strided_slice %29 {offsets = [4, 128], sizes = [4, 4096], strides = [1, 1]} : vector<8x4480xf32> to vector<4x4096xf32>
    %82 = vector.extract_strided_slice %29 {offsets = [4, 129], sizes = [4, 4096], strides = [1, 1]} : vector<8x4480xf32> to vector<4x4096xf32>
    %83 = vector.extract_strided_slice %29 {offsets = [4, 130], sizes = [4, 4096], strides = [1, 1]} : vector<8x4480xf32> to vector<4x4096xf32>
    %84 = vector.extract_strided_slice %29 {offsets = [4, 256], sizes = [4, 4096], strides = [1, 1]} : vector<8x4480xf32> to vector<4x4096xf32>
    %85 = vector.extract_strided_slice %29 {offsets = [4, 257], sizes = [4, 4096], strides = [1, 1]} : vector<8x4480xf32> to vector<4x4096xf32>
    %86 = vector.extract_strided_slice %29 {offsets = [4, 258], sizes = [4, 4096], strides = [1, 1]} : vector<8x4480xf32> to vector<4x4096xf32>
    %87 = tpu.concatenate %78, %79, %80, %81, %82, %83, %84, %85, %86 in 0 : vector<4x4096xf32>, vector<4x4096xf32>, vector<4x4096xf32>, vector<4x4096xf32>, vector<4x4096xf32>, vector<4x4096xf32>, vector<4x4096xf32>, vector<4x4096xf32>, vector<4x4096xf32> -> vector<36x4096xf32>
    %cst_28 = arith.constant dense<0.000000e+00> : vector<4x4096xf32>
    %88 = tpu.matmul %35, %87, %cst_28 {dimension_numbers = #tpu.dot_dimension_numbers<[1], [0], [0], [1], [0, 0, 1, 1], [], []>} : vector<4x36xf32>, vector<36x4096xf32>, vector<4x4096xf32> -> vector<4x4096xf32>
    %cst_29 = arith.constant 0.000000e+00 : f32
    %89 = vector.shape_cast %34 : vector<1x4096xi1> to vector<1x4096xi1>
    %90 = vector.broadcast %89 : vector<1x4096xi1> to vector<4x4096xi1>
    %91 = vector.broadcast %cst_29 : f32 to vector<4x4096xf32>
    %92 = arith.select %90, %88, %91 : vector<4x4096xi1>, vector<4x4096xf32>
    %cst_30 = arith.constant dense<0.000000e+00> : vector<4xf32>
    %93 = vector.multi_reduction <add>, %92, %cst_30 [1] : vector<4x4096xf32> to vector<4xf32>
    %94 = vector.shape_cast %93 : vector<4xf32> to vector<4x1xf32>
    %cst_31 = arith.constant 9.765625E-4 : f32
    %95 = vector.broadcast %cst_31 : f32 to vector<4x1xf32>
    %96 = arith.mulf %94, %95 : vector<4x1xf32>
    %97 = vector.broadcast %96 : vector<4x1xf32> to vector<4x4096xf32>
    %98 = arith.subf %88, %97 : vector<4x4096xf32>
    %cst_32 = arith.constant 0.000000e+00 : f32
    %99 = vector.shape_cast %34 : vector<1x4096xi1> to vector<1x4096xi1>
    %100 = vector.broadcast %99 : vector<1x4096xi1> to vector<4x4096xi1>
    %101 = vector.broadcast %cst_32 : f32 to vector<4x4096xf32>
    %102 = arith.select %100, %98, %101 : vector<4x4096xi1>, vector<4x4096xf32>
    %103 = arith.mulf %102, %102 : vector<4x4096xf32>
    %cst_33 = arith.constant dense<0.000000e+00> : vector<4xf32>
    %104 = vector.multi_reduction <add>, %103, %cst_33 [1] : vector<4x4096xf32> to vector<4xf32>
    %105 = vector.shape_cast %104 : vector<4xf32> to vector<4x1xf32>
    %cst_34 = arith.constant 9.765625E-4 : f32
    %106 = vector.broadcast %cst_34 : f32 to vector<4x1xf32>
    %107 = arith.mulf %105, %106 : vector<4x1xf32>
    %108 = vector.broadcast %96 : vector<4x1xf32> to vector<4x4096xf32>
    %109 = arith.subf %88, %108 : vector<4x4096xf32>
    %cst_35 = arith.constant 9.99999974E-6 : f32
    %110 = vector.broadcast %cst_35 : f32 to vector<4x1xf32>
    %111 = arith.addf %107, %110 : vector<4x1xf32>
    %112 = math.rsqrt %111 : vector<4x1xf32>
    %113 = vector.broadcast %112 : vector<4x1xf32> to vector<4x4096xf32>
    %114 = arith.mulf %109, %113 : vector<4x4096xf32>
    %cst_36 = arith.constant 0.000000e+00 : f32
    %115 = vector.broadcast %cst_36 : f32 to vector<4x4096xf32>
    %116 = arith.maximumf %114, %115 : vector<4x4096xf32>
    %c1 = arith.constant 1 : index
    %c0_37 = arith.constant 0 : index
    %c0_38 = arith.constant 0 : index
    %117 = vector.load %arg5[%c1, %c0_37, %c0_38] : memref<2x4x4096xf32, #tpu.memory_space<vmem>>, vector<1x4x4096xf32>
    %118 = vector.shape_cast %117 : vector<1x4x4096xf32> to vector<4x4096xf32>
    %119 = vector.shape_cast %116 : vector<4x4096xf32> to vector<1x4x4096xf32>
    tpu.vector_store %arg5[%c1, %c0_37, %c0_38], %119 {strides = array<i32>} : memref<2x4x4096xf32, #tpu.memory_space<vmem>>, vector<1x4x4096xf32>,
    return
  }
  func.func @transform_0(%arg0: i32) -> (i32, i32, i32) {
    %c0_i32 = arith.constant 0 : i32
    %c0_i32_0 = arith.constant 0 : i32
    %c0_i32_1 = arith.constant 0 : i32
    return %arg0, %c0_i32, %c0_i32_0 : i32, i32, i32
  }
  func.func @transform_1(%arg0: i32) -> (i32, i32) {
    %c0_i32 = arith.constant 0 : i32
    %c0_i32_0 = arith.constant 0 : i32
    %c0_i32_1 = arith.constant 0 : i32
    return %c0_i32, %c0_i32_0 : i32, i32
  }
  func.func @transform_2(%arg0: i32) -> (i32, i32) {
    %c0_i32 = arith.constant 0 : i32
    %c0_i32_0 = arith.constant 0 : i32
    %c0_i32_1 = arith.constant 0 : i32
    return %c0_i32, %c0_i32_0 : i32, i32
  }
  func.func @transform_3(%arg0: i32) -> (i32, i32) {
    %c0_i32 = arith.constant 0 : i32
    %c0_i32_0 = arith.constant 0 : i32
    %c0_i32_1 = arith.constant 0 : i32
    return %c0_i32, %c0_i32_0 : i32, i32
  }
  func.func @transform_4(%arg0: i32) -> (i32, i32, i32) {
    %c0_i32 = arith.constant 0 : i32
    %c0_i32_0 = arith.constant 0 : i32
    %c0_i32_1 = arith.constant 0 : i32
    return %arg0, %c0_i32, %c0_i32_0 : i32, i32, i32
  }
}

</mosaic_0001>

<llo_original>
// kernel: tpu_custom_call.1
$region0: #{tpu_custom_call.1}
  #allocation0 [shape = 'u32[]', space=smem, size = 0x4, offset = 0x4, fixed_abs, tag = 'smem constant byte address 0x4 - core index']
  #allocation1 [shape = 'u32[72,128]{1,0:T(1,128)}', space=vmem, size = 0x9000, scoped, tag = 'internal scratch']
  %s0 = inlined_call_operand.vmem [shape: f32[2,64,16], index: 0, kind: input, shape index: {}]
  %s1 = inlined_call_operand.vmem [shape: f32[16,128], index: 1, kind: input, shape index: {}]
  %s2 = inlined_call_operand.vmem [shape: f32[35,16], index: 2, kind: input, shape index: {}]
  %s3 = inlined_call_operand.vmem [shape: f32[4,36], index: 3, kind: input, shape index: {}]
  %s4 = inlined_call_operand.hbm [shape: f32[2,4,4096], index: 4, kind: output, shape index: {}]
  %s5 = sld [smem:[#allocation0]]
  $region26: #{tpu_custom_call.1} parent=0
    _
  %s7 = ssub.s32 1, %s5
  %s8 = scalar_select 0, %s7, %s5
  $region1: #{tpu_custom_call.1} parent=0
    #allocation2 [shape = 'u8[131072]{0}', space=vmem, size = 0x20000, scoped, tag = 'output window, operand 0, single buffered']
    #allocation3 [shape = 's32[1]{0}', space=sflag, size = 0x4, scoped, tag = 'scoped memory for tpu_custom_call.1']
    %9 = vsyncpa [#allocation3], 0
    // Predicated region
    $region2: #{tpu_custom_call.1} parent=1 // pred_check
      _
    $region3: #{tpu_custom_call.1} parent=1 // pred_check_branch
      %11 = sbr.rel (0) target = $region5
    $region4: #{tpu_custom_call.1} parent=1 // pred_region
      _
    $region5: #{tpu_custom_call.1} parent=1 // pred_fallthru
      _
    // Predicated region
    $region6: #{tpu_custom_call.1} parent=1 // pred_check
      _
    $region7: #{tpu_custom_call.1} parent=1 // pred_check_branch
      %13 = sbr.rel (0) target = $region9
    $region8: #{tpu_custom_call.1} parent=1 // pred_region
      _
    $region9: #{tpu_custom_call.1} parent=1 // pred_fallthru
      _
    // Predicated region
    $region10: #{tpu_custom_call.1} parent=1 // pred_check
      _
    $region11: #{tpu_custom_call.1} parent=1 // pred_check_branch
      %15 = sbr.rel (0) target = $region13
    $region12: #{tpu_custom_call.1} parent=1 // pred_region
      _
    $region13: #{tpu_custom_call.1} parent=1 // pred_fallthru
      _
    // Predicated region
    $region14: #{tpu_custom_call.1} parent=1 // pred_check
      _
    $region15: #{tpu_custom_call.1} parent=1 // pred_check_branch
      %17 = sbr.rel (0) target = $region17
    $region16: #{tpu_custom_call.1} parent=1 // pred_region
      _
    $region17: #{tpu_custom_call.1} parent=1 // pred_fallthru
      _
    %v18 = vld [vmem:[%s0] sm:$0xff]
    %v19 = vld [vmem:[%s0 + $0x8] sm:$0xff]
    %v20 = vld [vmem:[%s0 + $0x10] sm:$0xff]
    %v21 = vld [vmem:[%s0 + $0x18] sm:$0xff]
    %v22 = vld [vmem:[%s0 + $0x20] sm:$0xff]
    %v23 = vld [vmem:[%s0 + $0x28] sm:$0xff]
    %v24 = vld [vmem:[%s0 + $0x30] sm:$0xff]
    %v25 = vld [vmem:[%s0 + $0x38] sm:$0xff]
    %v26 = vld [vmem:[%s0 + $0x40] sm:$0xff]
    %v27 = vld [vmem:[%s0 + $0x48] sm:$0xff]
    %v28 = vld [vmem:[%s0 + $0x50] sm:$0xff]
    %v29 = vld [vmem:[%s0 + $0x58] sm:$0xff]
    %v30 = vld [vmem:[%s0 + $0x60] sm:$0xff]
    %v31 = vld [vmem:[%s0 + $0x68] sm:$0xff]
    %v32 = vld [vmem:[%s0 + $0x70] sm:$0xff]
    %v33 = vld [vmem:[%s0 + $0x78] sm:$0xff]
    %v34 = vld [vmem:[%s1] sm:$0xff]
    %v35 = vld [vmem:[%s1 + $0x8] sm:$0xff]
    %vm36 = vcmask 130048
    %v38 = vsel %vm36, %v18, 0
    %v41 = vsel %vm36, %v19, 0
    %v44 = vsel %vm36, %v20, 0
    %v47 = vsel %vm36, %v21, 0
    %v50 = vsel %vm36, %v22, 0
    %v53 = vsel %vm36, %v23, 0
    %v56 = vsel %vm36, %v24, 0
    %v59 = vsel %vm36, %v25, 0
    %v62 = vsel %vm36, %v26, 0
    %v65 = vsel %vm36, %v27, 0
    %v68 = vsel %vm36, %v28, 0
    %v71 = vsel %vm36, %v29, 0
    %v74 = vsel %vm36, %v30, 0
    %v77 = vsel %vm36, %v31, 0
    %v80 = vsel %vm36, %v32, 0
    %v83 = vsel %vm36, %v33, 0
    %85 = vmatpush.msra.mxu0 0.0
    %86 = vmatpush.msra.mxu0 0.0
    %87 = vmatpush.msra.mxu0 0.0
    %88 = vmatpush.msra.mxu0 0.0
    %89 = vmatpush.msra.mxu0 0.0
    %90 = vmatpush.msra.mxu0 0.0
    %91 = vmatpush.msra.mxu0 0.0
    %92 = vmatpush.msra.mxu0 0.0
    %93 = vmatpush.msra.mxu0 0.0
    %94 = vmatpush.msra.mxu0 0.0
    %95 = vmatpush.msra.mxu0 0.0
    %96 = vmatpush.msra.mxu0 0.0
    %97 = vmatpush.msra.mxu0 0.0
    %98 = vmatpush.msra.mxu0 0.0
    %99 = vmatpush.msra.mxu0 %v35
    %100 = vmatpush.msra.mxu0 %v34
    %101 = vmatmul.f32.gmra.mxu0 %v38
    %v102 = vpop.f32.mrf.mxu0
    %v103 = vadd.f32 0.0, %v102
    %104 = vmatmul.f32.gmra.mxu0 %v41
    %v105 = vpop.f32.mrf.mxu0
    %v106 = vadd.f32 0.0, %v105
    %107 = vmatmul.f32.gmra.mxu0 %v44
    %v108 = vpop.f32.mrf.mxu0
    %v109 = vadd.f32 0.0, %v108
    %110 = vmatmul.f32.gmra.mxu0 %v47
    %v111 = vpop.f32.mrf.mxu0
    %v112 = vadd.f32 0.0, %v111
    %113 = vmatmul.f32.gmra.mxu0 %v50
    %v114 = vpop.f32.mrf.mxu0
    %v115 = vadd.f32 0.0, %v114
    %116 = vmatmul.f32.gmra.mxu0 %v53
    %v117 = vpop.f32.mrf.mxu0
    %v118 = vadd.f32 0.0, %v117
    %119 = vmatmul.f32.gmra.mxu0 %v56
    %v120 = vpop.f32.mrf.mxu0
    %v121 = vadd.f32 0.0, %v120
    %122 = vmatmul.f32.gmra.mxu0 %v59
    %v123 = vpop.f32.mrf.mxu0
    %v124 = vadd.f32 0.0, %v123
    %125 = vmatmul.f32.gmra.mxu0 %v62
    %v126 = vpop.f32.mrf.mxu0
    %v127 = vadd.f32 0.0, %v126
    %128 = vmatmul.f32.gmra.mxu0 %v65
    %v129 = vpop.f32.mrf.mxu0
    %v130 = vadd.f32 0.0, %v129
    %131 = vmatmul.f32.gmra.mxu0 %v68
    %v132 = vpop.f32.mrf.mxu0
    %v133 = vadd.f32 0.0, %v132
    %134 = vmatmul.f32.gmra.mxu0 %v71
    %v135 = vpop.f32.mrf.mxu0
    %v136 = vadd.f32 0.0, %v135
    %137 = vmatmul.f32.gmra.mxu0 %v74
    %v138 = vpop.f32.mrf.mxu0
    %v139 = vadd.f32 0.0, %v138
    %140 = vmatmul.f32.gmra.mxu0 %v77
    %v141 = vpop.f32.mrf.mxu0
    %v142 = vadd.f32 0.0, %v141
    %143 = vmatmul.f32.gmra.mxu0 %v80
    %v144 = vpop.f32.mrf.mxu0
    %v145 = vadd.f32 0.0, %v144
    %146 = vmatmul.f32.gmra.mxu0 %v83
    %v147 = vpop.f32.mrf.mxu0
    %v148 = vadd.f32 0.0, %v147
    %149 = vdwg.mxu0
    %v150 = vld [vmem:[%s2] sm:$0xff]
    %v151 = vld [vmem:[%s2 + $0x8] sm:$0xff]
    %v152 = vld [vmem:[%s2 + $0x10] sm:$0xff]
    %v153 = vld [vmem:[%s2 + $0x18] sm:$0xff]
    %v154 = vld [vmem:[%s2 + $0x20] sm:$0x7]
    %v156 = vsel %vm36, %v150, 0
    %v159 = vsel %vm36, %v151, 0
    %v162 = vsel %vm36, %v152, 0
    %v165 = vsel %vm36, %v153, 0
    %v168 = vsel %vm36, %v154, 0
    %170 = vmatpush.msra.mxu0 0.0
    %171 = vmatpush.msra.mxu0 0.0
    %172 = vmatpush.msra.mxu0 0.0
    %173 = vmatpush.msra.mxu0 0.0
    %174 = vmatpush.msra.mxu0 0.0
    %175 = vmatpush.msra.mxu0 0.0
    %176 = vmatpush.msra.mxu0 0.0
    %177 = vmatpush.msra.mxu0 0.0
    %178 = vmatpush.msra.mxu0 0.0
    %179 = vmatpush.msra.mxu0 0.0
    %180 = vmatpush.msra.mxu0 0.0
    %181 = vmatpush.msra.mxu0 0.0
    %182 = vmatpush.msra.mxu0 0.0
    %183 = vmatpush.msra.mxu0 0.0
    %184 = vmatpush.msra.mxu0 %v106
    %185 = vmatpush.msra.mxu0 %v103
    %186 = vmatmul.f32.gmra.mxu0 %v156
    %v187 = vpop.f32.mrf.mxu0
    %v188 = vadd.f32 0.0, %v187
    %189 = vmatmul.f32.gmra.mxu0 %v159
    %v190 = vpop.f32.mrf.mxu0
    %v191 = vadd.f32 0.0, %v190
    %192 = vmatmul.f32.gmra.mxu0 %v162
    %v193 = vpop.f32.mrf.mxu0
    %v194 = vadd.f32 0.0, %v193
    %195 = vmatmul.f32.gmra.mxu0 %v165
    %v196 = vpop.f32.mrf.mxu0
    %v197 = vadd.f32 0.0, %v196
    %198 = vmatmul.f32.gmra.mxu0 %v168
    %v199 = vpop.f32.mrf.mxu0
    %v200 = vadd.f32 0.0, %v199
    %201 = vdwg.mxu0
    %202 = vmatpush.msra.mxu0 0.0
    %203 = vmatpush.msra.mxu0 0.0
    %204 = vmatpush.msra.mxu0 0.0
    %205 = vmatpush.msra.mxu0 0.0
    %206 = vmatpush.msra.mxu0 0.0
    %207 = vmatpush.msra.mxu0 0.0
    %208 = vmatpush.msra.mxu0 0.0
    %209 = vmatpush.msra.mxu0 0.0
    %210 = vmatpush.msra.mxu0 0.0
    %211 = vmatpush.msra.mxu0 0.0
    %212 = vmatpush.msra.mxu0 0.0
    %213 = vmatpush.msra.mxu0 0.0
    %214 = vmatpush.msra.mxu0 0.0
    %215 = vmatpush.msra.mxu0 0.0
    %216 = vmatpush.msra.mxu0 %v112
    %217 = vmatpush.msra.mxu0 %v109
    %218 = vmatmul.f32.gmra.mxu0 %v156
    %v219 = vpop.f32.mrf.mxu0
    %v220 = vadd.f32 0.0, %v219
    %221 = vmatmul.f32.gmra.mxu0 %v159
    %v222 = vpop.f32.mrf.mxu0
    %v223 = vadd.f32 0.0, %v222
    %224 = vmatmul.f32.gmra.mxu0 %v162
    %v225 = vpop.f32.mrf.mxu0
    %v226 = vadd.f32 0.0, %v225
    %227 = vmatmul.f32.gmra.mxu0 %v165
    %v228 = vpop.f32.mrf.mxu0
    %v229 = vadd.f32 0.0, %v228
    %230 = vmatmul.f32.gmra.mxu0 %v168
    %v231 = vpop.f32.mrf.mxu0
    %v232 = vadd.f32 0.0, %v231
    %233 = vdwg.mxu0
    %234 = vmatpush.msra.mxu0 0.0
    %235 = vmatpush.msra.mxu0 0.0
    %236 = vmatpush.msra.mxu0 0.0
    %237 = vmatpush.msra.mxu0 0.0
    %238 = vmatpush.msra.mxu0 0.0
    %239 = vmatpush.msra.mxu0 0.0
    %240 = vmatpush.msra.mxu0 0.0
    %241 = vmatpush.msra.mxu0 0.0
    %242 = vmatpush.msra.mxu0 0.0
    %243 = vmatpush.msra.mxu0 0.0
    %244 = vmatpush.msra.mxu0 0.0
    %245 = vmatpush.msra.mxu0 0.0
    %246 = vmatpush.msra.mxu0 0.0
    %247 = vmatpush.msra.mxu0 0.0
    %248 = vmatpush.msra.mxu0 %v118
    %249 = vmatpush.msra.mxu0 %v115
    %250 = vmatmul.f32.gmra.mxu0 %v156
    %v251 = vpop.f32.mrf.mxu0
    %v252 = vadd.f32 0.0, %v251
    %253 = vmatmul.f32.gmra.mxu0 %v159
    %v254 = vpop.f32.mrf.mxu0
    %v255 = vadd.f32 0.0, %v254
    %256 = vmatmul.f32.gmra.mxu0 %v162
    %v257 = vpop.f32.mrf.mxu0
    %v258 = vadd.f32 0.0, %v257
    %259 = vmatmul.f32.gmra.mxu0 %v165
    %v260 = vpop.f32.mrf.mxu0
    %v261 = vadd.f32 0.0, %v260
    %262 = vmatmul.f32.gmra.mxu0 %v168
    %v263 = vpop.f32.mrf.mxu0
    %v264 = vadd.f32 0.0, %v263
    %265 = vdwg.mxu0
    %266 = vmatpush.msra.mxu0 0.0
    %267 = vmatpush.msra.mxu0 0.0
    %268 = vmatpush.msra.mxu0 0.0
    %269 = vmatpush.msra.mxu0 0.0
    %270 = vmatpush.msra.mxu0 0.0
    %271 = vmatpush.msra.mxu0 0.0
    %272 = vmatpush.msra.mxu0 0.0
    %273 = vmatpush.msra.mxu0 0.0
    %274 = vmatpush.msra.mxu0 0.0
    %275 = vmatpush.msra.mxu0 0.0
    %276 = vmatpush.msra.mxu0 0.0
    %277 = vmatpush.msra.mxu0 0.0
    %278 = vmatpush.msra.mxu0 0.0
    %279 = vmatpush.msra.mxu0 0.0
    %280 = vmatpush.msra.mxu0 %v124
    %281 = vmatpush.msra.mxu0 %v121
    %282 = vmatmul.f32.gmra.mxu0 %v156
    %v283 = vpop.f32.mrf.mxu0
    %v284 = vadd.f32 0.0, %v283
    %285 = vmatmul.f32.gmra.mxu0 %v159
    %v286 = vpop.f32.mrf.mxu0
    %v287 = vadd.f32 0.0, %v286
    %288 = vmatmul.f32.gmra.mxu0 %v162
    %v289 = vpop.f32.mrf.mxu0
    %v290 = vadd.f32 0.0, %v289
    %291 = vmatmul.f32.gmra.mxu0 %v165
    %v292 = vpop.f32.mrf.mxu0
    %v293 = vadd.f32 0.0, %v292
    %294 = vmatmul.f32.gmra.mxu0 %v168
    %v295 = vpop.f32.mrf.mxu0
    %v296 = vadd.f32 0.0, %v295
    %297 = vdwg.mxu0
    %298 = vmatpush.msra.mxu0 0.0
    %299 = vmatpush.msra.mxu0 0.0
    %300 = vmatpush.msra.mxu0 0.0
    %301 = vmatpush.msra.mxu0 0.0
    %302 = vmatpush.msra.mxu0 0.0
    %303 = vmatpush.msra.mxu0 0.0
    %304 = vmatpush.msra.mxu0 0.0
    %305 = vmatpush.msra.mxu0 0.0
    %306 = vmatpush.msra.mxu0 0.0
    %307 = vmatpush.msra.mxu0 0.0
    %308 = vmatpush.msra.mxu0 0.0
    %309 = vmatpush.msra.mxu0 0.0
    %310 = vmatpush.msra.mxu0 0.0
    %311 = vmatpush.msra.mxu0 0.0
    %312 = vmatpush.msra.mxu0 %v130
    %313 = vmatpush.msra.mxu0 %v127
    %314 = vmatmul.f32.gmra.mxu0 %v156
    %v315 = vpop.f32.mrf.mxu0
    %v316 = vadd.f32 0.0, %v315
    %317 = vmatmul.f32.gmra.mxu0 %v159
    %v318 = vpop.f32.mrf.mxu0
    %v319 = vadd.f32 0.0, %v318
    %320 = vmatmul.f32.gmra.mxu0 %v162
    %v321 = vpop.f32.mrf.mxu0
    %v322 = vadd.f32 0.0, %v321
    %323 = vmatmul.f32.gmra.mxu0 %v165
    %v324 = vpop.f32.mrf.mxu0
    %v325 = vadd.f32 0.0, %v324
    %326 = vmatmul.f32.gmra.mxu0 %v168
    %v327 = vpop.f32.mrf.mxu0
    %v328 = vadd.f32 0.0, %v327
    %329 = vdwg.mxu0
    %330 = vmatpush.msra.mxu0 0.0
    %331 = vmatpush.msra.mxu0 0.0
    %332 = vmatpush.msra.mxu0 0.0
    %333 = vmatpush.msra.mxu0 0.0
    %334 = vmatpush.msra.mxu0 0.0
    %335 = vmatpush.msra.mxu0 0.0
    %336 = vmatpush.msra.mxu0 0.0
    %337 = vmatpush.msra.mxu0 0.0
    %338 = vmatpush.msra.mxu0 0.0
    %339 = vmatpush.msra.mxu0 0.0
    %340 = vmatpush.msra.mxu0 0.0
    %341 = vmatpush.msra.mxu0 0.0
    %342 = vmatpush.msra.mxu0 0.0
    %343 = vmatpush.msra.mxu0 0.0
    %344 = vmatpush.msra.mxu0 %v136
    %345 = vmatpush.msra.mxu0 %v133
    %346 = vmatmul.f32.gmra.mxu0 %v156
    %v347 = vpop.f32.mrf.mxu0
    %v348 = vadd.f32 0.0, %v347
    %349 = vmatmul.f32.gmra.mxu0 %v159
    %v350 = vpop.f32.mrf.mxu0
    %v351 = vadd.f32 0.0, %v350
    %352 = vmatmul.f32.gmra.mxu0 %v162
    %v353 = vpop.f32.mrf.mxu0
    %v354 = vadd.f32 0.0, %v353
    %355 = vmatmul.f32.gmra.mxu0 %v165
    %v356 = vpop.f32.mrf.mxu0
    %v357 = vadd.f32 0.0, %v356
    %358 = vmatmul.f32.gmra.mxu0 %v168
    %v359 = vpop.f32.mrf.mxu0
    %v360 = vadd.f32 0.0, %v359
    %361 = vdwg.mxu0
    %362 = vmatpush.msra.mxu0 0.0
    %363 = vmatpush.msra.mxu0 0.0
    %364 = vmatpush.msra.mxu0 0.0
    %365 = vmatpush.msra.mxu0 0.0
    %366 = vmatpush.msra.mxu0 0.0
    %367 = vmatpush.msra.mxu0 0.0
    %368 = vmatpush.msra.mxu0 0.0
    %369 = vmatpush.msra.mxu0 0.0
    %370 = vmatpush.msra.mxu0 0.0
    %371 = vmatpush.msra.mxu0 0.0
    %372 = vmatpush.msra.mxu0 0.0
    %373 = vmatpush.msra.mxu0 0.0
    %374 = vmatpush.msra.mxu0 0.0
    %375 = vmatpush.msra.mxu0 0.0
    %376 = vmatpush.msra.mxu0 %v142
    %377 = vmatpush.msra.mxu0 %v139
    %378 = vmatmul.f32.gmra.mxu0 %v156
    %v379 = vpop.f32.mrf.mxu0
    %v380 = vadd.f32 0.0, %v379
    %381 = vmatmul.f32.gmra.mxu0 %v159
    %v382 = vpop.f32.mrf.mxu0
    %v383 = vadd.f32 0.0, %v382
    %384 = vmatmul.f32.gmra.mxu0 %v162
    %v385 = vpop.f32.mrf.mxu0
    %v386 = vadd.f32 0.0, %v385
    %387 = vmatmul.f32.gmra.mxu0 %v165
    %v388 = vpop.f32.mrf.mxu0
    %v389 = vadd.f32 0.0, %v388
    %390 = vmatmul.f32.gmra.mxu0 %v168
    %v391 = vpop.f32.mrf.mxu0
    %v392 = vadd.f32 0.0, %v391
    %393 = vdwg.mxu0
    %394 = vmatpush.msra.mxu0 0.0
    %395 = vmatpush.msra.mxu0 0.0
    %396 = vmatpush.msra.mxu0 0.0
    %397 = vmatpush.msra.mxu0 0.0
    %398 = vmatpush.msra.mxu0 0.0
    %399 = vmatpush.msra.mxu0 0.0
    %400 = vmatpush.msra.mxu0 0.0
    %401 = vmatpush.msra.mxu0 0.0
    %402 = vmatpush.msra.mxu0 0.0
    %403 = vmatpush.msra.mxu0 0.0
    %404 = vmatpush.msra.mxu0 0.0
    %405 = vmatpush.msra.mxu0 0.0
    %406 = vmatpush.msra.mxu0 0.0
    %407 = vmatpush.msra.mxu0 0.0
    %408 = vmatpush.msra.mxu0 %v148
    %409 = vmatpush.msra.mxu0 %v145
    %410 = vmatmul.f32.gmra.mxu0 %v156
    %v411 = vpop.f32.mrf.mxu0
    %v412 = vadd.f32 0.0, %v411
    %413 = vmatmul.f32.gmra.mxu0 %v159
    %v414 = vpop.f32.mrf.mxu0
    %v415 = vadd.f32 0.0, %v414
    %416 = vmatmul.f32.gmra.mxu0 %v162
    %v417 = vpop.f32.mrf.mxu0
    %v418 = vadd.f32 0.0, %v417
    %419 = vmatmul.f32.gmra.mxu0 %v165
    %v420 = vpop.f32.mrf.mxu0
    %v421 = vadd.f32 0.0, %v420
    %422 = vmatmul.f32.gmra.mxu0 %v168
    %v423 = vpop.f32.mrf.mxu0
    %v424 = vadd.f32 0.0, %v423
    %425 = vdwg.mxu0
    %v431 = vperm.slane %v188, 0
    %v432 = vperm.slane %v188, 1
    %v433 = vperm.slane %v188, 2
    %v434 = vperm.slane %v188, 3
    %v435 = vperm.slane %v188, 4
    %v436 = vperm.slane %v188, 5
    %v437 = vperm.slane %v188, 6
    %v438 = vperm.slane %v188, 7
    %v439 = vperm.slane %v191, 0
    %v440 = vperm.slane %v191, 1
    %v441 = vperm.slane %v191, 2
    %v442 = vperm.slane %v191, 3
    %v443 = vperm.slane %v191, 4
    %v444 = vperm.slane %v191, 5
    %v445 = vperm.slane %v191, 6
    %v446 = vperm.slane %v191, 7
    %v447 = vperm.slane %v194, 0
    %v448 = vperm.slane %v194, 1
    %v449 = vperm.slane %v194, 2
    %v450 = vperm.slane %v194, 3
    %v451 = vperm.slane %v194, 4
    %v452 = vperm.slane %v194, 5
    %v453 = vperm.slane %v194, 6
    %v454 = vperm.slane %v194, 7
    %v455 = vperm.slane %v197, 0
    %v456 = vperm.slane %v197, 1
    %v457 = vperm.slane %v197, 2
    %v458 = vperm.slane %v197, 3
    %v459 = vperm.slane %v197, 4
    %v460 = vperm.slane %v197, 5
    %v461 = vperm.slane %v197, 6
    %v462 = vperm.slane %v197, 7
    %v463 = vperm.slane %v200, 0
    %v464 = vperm.slane %v200, 1
    %v465 = vperm.slane %v200, 2
    %v506 = vperm.slane %v220, 0
    %v507 = vperm.slane %v220, 1
    %v508 = vperm.slane %v220, 2
    %v509 = vperm.slane %v220, 3
    %v510 = vperm.slane %v220, 4
    %v511 = vperm.slane %v220, 5
    %v512 = vperm.slane %v220, 6
    %v513 = vperm.slane %v220, 7
    %v514 = vperm.slane %v223, 0
    %v515 = vperm.slane %v223, 1
    %v516 = vperm.slane %v223, 2
    %v517 = vperm.slane %v223, 3
    %v518 = vperm.slane %v223, 4
    %v519 = vperm.slane %v223, 5
    %v520 = vperm.slane %v223, 6
    %v521 = vperm.slane %v223, 7
    %v522 = vperm.slane %v226, 0
    %v523 = vperm.slane %v226, 1
    %v524 = vperm.slane %v226, 2
    %v525 = vperm.slane %v226, 3
    %v526 = vperm.slane %v226, 4
    %v527 = vperm.slane %v226, 5
    %v528 = vperm.slane %v226, 6
    %v529 = vperm.slane %v226, 7
    %v530 = vperm.slane %v229, 0
    %v531 = vperm.slane %v229, 1
    %v532 = vperm.slane %v229, 2
    %v533 = vperm.slane %v229, 3
    %v534 = vperm.slane %v229, 4
    %v535 = vperm.slane %v229, 5
    %v536 = vperm.slane %v229, 6
    %v537 = vperm.slane %v229, 7
    %v538 = vperm.slane %v232, 0
    %v539 = vperm.slane %v232, 1
    %v540 = vperm.slane %v232, 2
    %v581 = vperm.slane %v252, 0
    %v582 = vperm.slane %v252, 1
    %v583 = vperm.slane %v252, 2
    %v584 = vperm.slane %v252, 3
    %v585 = vperm.slane %v252, 4
    %v586 = vperm.slane %v252, 5
    %v587 = vperm.slane %v252, 6
    %v588 = vperm.slane %v252, 7
    %v589 = vperm.slane %v255, 0
    %v590 = vperm.slane %v255, 1
    %v591 = vperm.slane %v255, 2
    %v592 = vperm.slane %v255, 3
    %v593 = vperm.slane %v255, 4
    %v594 = vperm.slane %v255, 5
    %v595 = vperm.slane %v255, 6
    %v596 = vperm.slane %v255, 7
    %v597 = vperm.slane %v258, 0
    %v598 = vperm.slane %v258, 1
    %v599 = vperm.slane %v258, 2
    %v600 = vperm.slane %v258, 3
    %v601 = vperm.slane %v258, 4
    %v602 = vperm.slane %v258, 5
    %v603 = vperm.slane %v258, 6
    %v604 = vperm.slane %v258, 7
    %v605 = vperm.slane %v261, 0
    %v606 = vperm.slane %v261, 1
    %v607 = vperm.slane %v261, 2
    %v608 = vperm.slane %v261, 3
    %v609 = vperm.slane %v261, 4
    %v610 = vperm.slane %v261, 5
    %v611 = vperm.slane %v261, 6
    %v612 = vperm.slane %v261, 7
    %v613 = vperm.slane %v264, 0
    %v614 = vperm.slane %v264, 1
    %v615 = vperm.slane %v264, 2
    %v656 = vperm.slane %v284, 0
    %v657 = vperm.slane %v284, 1
    %v658 = vperm.slane %v284, 2
    %v659 = vperm.slane %v284, 3
    %v660 = vperm.slane %v284, 4
    %v661 = vperm.slane %v284, 5
    %v662 = vperm.slane %v284, 6
    %v663 = vperm.slane %v284, 7
    %v664 = vperm.slane %v287, 0
    %v665 = vperm.slane %v287, 1
    %v666 = vperm.slane %v287, 2
    %v667 = vperm.slane %v287, 3
    %v668 = vperm.slane %v287, 4
    %v669 = vperm.slane %v287, 5
    %v670 = vperm.slane %v287, 6
    %v671 = vperm.slane %v287, 7
    %v672 = vperm.slane %v290, 0
    %v673 = vperm.slane %v290, 1
    %v674 = vperm.slane %v290, 2
    %v675 = vperm.slane %v290, 3
    %v676 = vperm.slane %v290, 4
    %v677 = vperm.slane %v290, 5
    %v678 = vperm.slane %v290, 6
    %v679 = vperm.slane %v290, 7
    %v680 = vperm.slane %v293, 0
    %v681 = vperm.slane %v293, 1
    %v682 = vperm.slane %v293, 2
    %v683 = vperm.slane %v293, 3
    %v684 = vperm.slane %v293, 4
    %v685 = vperm.slane %v293, 5
    %v686 = vperm.slane %v293, 6
    %v687 = vperm.slane %v293, 7
    %v688 = vperm.slane %v296, 0
    %v689 = vperm.slane %v296, 1
    %v690 = vperm.slane %v296, 2
    %v731 = vperm.slane %v316, 0
    %v732 = vperm.slane %v316, 1
    %v733 = vperm.slane %v316, 2
    %v734 = vperm.slane %v316, 3
    %v735 = vperm.slane %v316, 4
    %v736 = vperm.slane %v316, 5
    %v737 = vperm.slane %v316, 6
    %v738 = vperm.slane %v316, 7
    %v739 = vperm.slane %v319, 0
    %v740 = vperm.slane %v319, 1
    %v741 = vperm.slane %v319, 2
    %v742 = vperm.slane %v319, 3
    %v743 = vperm.slane %v319, 4
    %v744 = vperm.slane %v319, 5
    %v745 = vperm.slane %v319, 6
    %v746 = vperm.slane %v319, 7
    %v747 = vperm.slane %v322, 0
    %v748 = vperm.slane %v322, 1
    %v749 = vperm.slane %v322, 2
    %v750 = vperm.slane %v322, 3
    %v751 = vperm.slane %v322, 4
    %v752 = vperm.slane %v322, 5
    %v753 = vperm.slane %v322, 6
    %v754 = vperm.slane %v322, 7
    %v755 = vperm.slane %v325, 0
    %v756 = vperm.slane %v325, 1
    %v757 = vperm.slane %v325, 2
    %v758 = vperm.slane %v325, 3
    %v759 = vperm.slane %v325, 4
    %v760 = vperm.slane %v325, 5
    %v761 = vperm.slane %v325, 6
    %v762 = vperm.slane %v325, 7
    %v763 = vperm.slane %v328, 0
    %v764 = vperm.slane %v328, 1
    %v765 = vperm.slane %v328, 2
    %v806 = vperm.slane %v348, 0
    %v807 = vperm.slane %v348, 1
    %v808 = vperm.slane %v348, 2
    %v809 = vperm.slane %v348, 3
    %v810 = vperm.slane %v348, 4
    %v811 = vperm.slane %v348, 5
    %v812 = vperm.slane %v348, 6
    %v813 = vperm.slane %v348, 7
    %v814 = vperm.slane %v351, 0
    %v815 = vperm.slane %v351, 1
    %v816 = vperm.slane %v351, 2
    %v817 = vperm.slane %v351, 3
    %v818 = vperm.slane %v351, 4
    %v819 = vperm.slane %v351, 5
    %v820 = vperm.slane %v351, 6
    %v821 = vperm.slane %v351, 7
    %v822 = vperm.slane %v354, 0
    %v823 = vperm.slane %v354, 1
    %v824 = vperm.slane %v354, 2
    %v825 = vperm.slane %v354, 3
    %v826 = vperm.slane %v354, 4
    %v827 = vperm.slane %v354, 5
    %v828 = vperm.slane %v354, 6
    %v829 = vperm.slane %v354, 7
    %v830 = vperm.slane %v357, 0
    %v831 = vperm.slane %v357, 1
    %v832 = vperm.slane %v357, 2
    %v833 = vperm.slane %v357, 3
    %v834 = vperm.slane %v357, 4
    %v835 = vperm.slane %v357, 5
    %v836 = vperm.slane %v357, 6
    %v837 = vperm.slane %v357, 7
    %v838 = vperm.slane %v360, 0
    %v839 = vperm.slane %v360, 1
    %v840 = vperm.slane %v360, 2
    %v881 = vperm.slane %v380, 0
    %v882 = vperm.slane %v380, 1
    %v883 = vperm.slane %v380, 2
    %v884 = vperm.slane %v380, 3
    %v885 = vperm.slane %v380, 4
    %v886 = vperm.slane %v380, 5
    %v887 = vperm.slane %v380, 6
    %v888 = vperm.slane %v380, 7
    %v889 = vperm.slane %v383, 0
    %v890 = vperm.slane %v383, 1
    %v891 = vperm.slane %v383, 2
    %v892 = vperm.slane %v383, 3
    %v893 = vperm.slane %v383, 4
    %v894 = vperm.slane %v383, 5
    %v895 = vperm.slane %v383, 6
    %v896 = vperm.slane %v383, 7
    %v897 = vperm.slane %v386, 0
    %v898 = vperm.slane %v386, 1
    %v899 = vperm.slane %v386, 2
    %v900 = vperm.slane %v386, 3
    %v901 = vperm.slane %v386, 4
    %v902 = vperm.slane %v386, 5
    %v903 = vperm.slane %v386, 6
    %v904 = vperm.slane %v386, 7
    %v905 = vperm.slane %v389, 0
    %v906 = vperm.slane %v389, 1
    %v907 = vperm.slane %v389, 2
    %v908 = vperm.slane %v389, 3
    %v909 = vperm.slane %v389, 4
    %v910 = vperm.slane %v389, 5
    %v911 = vperm.slane %v389, 6
    %v912 = vperm.slane %v389, 7
    %v913 = vperm.slane %v392, 0
    %v914 = vperm.slane %v392, 1
    %v915 = vperm.slane %v392, 2
    %v956 = vperm.slane %v412, 0
    %v957 = vperm.slane %v412, 1
    %v958 = vperm.slane %v412, 2
    %v959 = vperm.slane %v412, 3
    %v960 = vperm.slane %v412, 4
    %v961 = vperm.slane %v412, 5
    %v962 = vperm.slane %v412, 6
    %v963 = vperm.slane %v412, 7
    %v964 = vperm.slane %v415, 0
    %v965 = vperm.slane %v415, 1
    %v966 = vperm.slane %v415, 2
    %v967 = vperm.slane %v415, 3
    %v968 = vperm.slane %v415, 4
    %v969 = vperm.slane %v415, 5
    %v970 = vperm.slane %v415, 6
    %v971 = vperm.slane %v415, 7
    %v972 = vperm.slane %v418, 0
    %v973 = vperm.slane %v418, 1
    %v974 = vperm.slane %v418, 2
    %v975 = vperm.slane %v418, 3
    %v976 = vperm.slane %v418, 4
    %v977 = vperm.slane %v418, 5
    %v978 = vperm.slane %v418, 6
    %v979 = vperm.slane %v418, 7
    %v980 = vperm.slane %v421, 0
    %v981 = vperm.slane %v421, 1
    %v982 = vperm.slane %v421, 2
    %v983 = vperm.slane %v421, 3
    %v984 = vperm.slane %v421, 4
    %v985 = vperm.slane %v421, 5
    %v986 = vperm.slane %v421, 6
    %v987 = vperm.slane %v421, 7
    %v988 = vperm.slane %v424, 0
    %v989 = vperm.slane %v424, 1
    %v990 = vperm.slane %v424, 2
    %vm1026 = vcmask 1040384
    %v1027 = vsel %vm1026, %v431, %v506
    %v1028 = vsel %vm1026, %v432, %v507
    %v1029 = vsel %vm1026, %v433, %v508
    %v1030 = vsel %vm1026, %v434, %v509
    %v1031 = vsel %vm1026, %v435, %v510
    %v1032 = vsel %vm1026, %v436, %v511
    %v1033 = vsel %vm1026, %v437, %v512
    %v1034 = vsel %vm1026, %v438, %v513
    %v1035 = vsel %vm1026, %v439, %v514
    %v1036 = vsel %vm1026, %v440, %v515
    %v1037 = vsel %vm1026, %v441, %v516
    %v1038 = vsel %vm1026, %v442, %v517
    %v1039 = vsel %vm1026, %v443, %v518
    %v1040 = vsel %vm1026, %v444, %v519
    %v1041 = vsel %vm1026, %v445, %v520
    %v1042 = vsel %vm1026, %v446, %v521
    %v1043 = vsel %vm1026, %v447, %v522
    %v1044 = vsel %vm1026, %v448, %v523
    %v1045 = vsel %vm1026, %v449, %v524
    %v1046 = vsel %vm1026, %v450, %v525
    %v1047 = vsel %vm1026, %v451, %v526
    %v1048 = vsel %vm1026, %v452, %v527
    %v1049 = vsel %vm1026, %v453, %v528
    %v1050 = vsel %vm1026, %v454, %v529
    %v1051 = vsel %vm1026, %v455, %v530
    %v1052 = vsel %vm1026, %v456, %v531
    %v1053 = vsel %vm1026, %v457, %v532
    %v1054 = vsel %vm1026, %v458, %v533
    %v1055 = vsel %vm1026, %v459, %v534
    %v1056 = vsel %vm1026, %v460, %v535
    %v1057 = vsel %vm1026, %v461, %v536
    %v1058 = vsel %vm1026, %v462, %v537
    %v1059 = vsel %vm1026, %v463, %v538
    %v1060 = vsel %vm1026, %v464, %v539
    %v1061 = vsel %vm1026, %v465, %v540
    %vm1062 = vcmask 1041408
    %v1063 = vsel %vm1062, %v1027, %v581
    %v1064 = vsel %vm1062, %v1028, %v582
    %v1065 = vsel %vm1062, %v1029, %v583
    %v1066 = vsel %vm1062, %v1030, %v584
    %v1067 = vsel %vm1062, %v1031, %v585
    %v1068 = vsel %vm1062, %v1032, %v586
    %v1069 = vsel %vm1062, %v1033, %v587
    %v1070 = vsel %vm1062, %v1034, %v588
    %v1071 = vsel %vm1062, %v1035, %v589
    %v1072 = vsel %vm1062, %v1036, %v590
    %v1073 = vsel %vm1062, %v1037, %v591
    %v1074 = vsel %vm1062, %v1038, %v592
    %v1075 = vsel %vm1062, %v1039, %v593
    %v1076 = vsel %vm1062, %v1040, %v594
    %v1077 = vsel %vm1062, %v1041, %v595
    %v1078 = vsel %vm1062, %v1042, %v596
    %v1079 = vsel %vm1062, %v1043, %v597
    %v1080 = vsel %vm1062, %v1044, %v598
    %v1081 = vsel %vm1062, %v1045, %v599
    %v1082 = vsel %vm1062, %v1046, %v600
    %v1083 = vsel %vm1062, %v1047, %v601
    %v1084 = vsel %vm1062, %v1048, %v602
    %v1085 = vsel %vm1062, %v1049, %v603
    %v1086 = vsel %vm1062, %v1050, %v604
    %v1087 = vsel %vm1062, %v1051, %v605
    %v1088 = vsel %vm1062, %v1052, %v606
    %v1089 = vsel %vm1062, %v1053, %v607
    %v1090 = vsel %vm1062, %v1054, %v608
    %v1091 = vsel %vm1062, %v1055, %v609
    %v1092 = vsel %vm1062, %v1056, %v610
    %v1093 = vsel %vm1062, %v1057, %v611
    %v1094 = vsel %vm1062, %v1058, %v612
    %v1095 = vsel %vm1062, %v1059, %v613
    %v1096 = vsel %vm1062, %v1060, %v614
    %v1097 = vsel %vm1062, %v1061, %v615
    %vm1098 = vcmask 1042432
    %v1099 = vsel %vm1098, %v1063, %v656
    %v1100 = vsel %vm1098, %v1064, %v657
    %v1101 = vsel %vm1098, %v1065, %v658
    %v1102 = vsel %vm1098, %v1066, %v659
    %v1103 = vsel %vm1098, %v1067, %v660
    %v1104 = vsel %vm1098, %v1068, %v661
    %v1105 = vsel %vm1098, %v1069, %v662
    %v1106 = vsel %vm1098, %v1070, %v663
    %v1107 = vsel %vm1098, %v1071, %v664
    %v1108 = vsel %vm1098, %v1072, %v665
    %v1109 = vsel %vm1098, %v1073, %v666
    %v1110 = vsel %vm1098, %v1074, %v667
    %v1111 = vsel %vm1098, %v1075, %v668
    %v1112 = vsel %vm1098, %v1076, %v669
    %v1113 = vsel %vm1098, %v1077, %v670
    %v1114 = vsel %vm1098, %v1078, %v671
    %v1115 = vsel %vm1098, %v1079, %v672
    %v1116 = vsel %vm1098, %v1080, %v673
    %v1117 = vsel %vm1098, %v1081, %v674
    %v1118 = vsel %vm1098, %v1082, %v675
    %v1119 = vsel %vm1098, %v1083, %v676
    %v1120 = vsel %vm1098, %v1084, %v677
    %v1121 = vsel %vm1098, %v1085, %v678
    %v1122 = vsel %vm1098, %v1086, %v679
    %v1123 = vsel %vm1098, %v1087, %v680
    %v1124 = vsel %vm1098, %v1088, %v681
    %v1125 = vsel %vm1098, %v1089, %v682
    %v1126 = vsel %vm1098, %v1090, %v683
    %v1127 = vsel %vm1098, %v1091, %v684
    %v1128 = vsel %vm1098, %v1092, %v685
    %v1129 = vsel %vm1098, %v1093, %v686
    %v1130 = vsel %vm1098, %v1094, %v687
    %v1131 = vsel %vm1098, %v1095, %v688
    %v1132 = vsel %vm1098, %v1096, %v689
    %v1133 = vsel %vm1098, %v1097, %v690
    %vm1134 = vcmask 1043456
    %v1135 = vsel %vm1134, %v1099, %v731
    %v1136 = vsel %vm1134, %v1100, %v732
    %v1137 = vsel %vm1134, %v1101, %v733
    %v1138 = vsel %vm1134, %v1102, %v734
    %v1139 = vsel %vm1134, %v1103, %v735
    %v1140 = vsel %vm1134, %v1104, %v736
    %v1141 = vsel %vm1134, %v1105, %v737
    %v1142 = vsel %vm1134, %v1106, %v738
    %v1143 = vsel %vm1134, %v1107, %v739
    %v1144 = vsel %vm1134, %v1108, %v740
    %v1145 = vsel %vm1134, %v1109, %v741
    %v1146 = vsel %vm1134, %v1110, %v742
    %v1147 = vsel %vm1134, %v1111, %v743
    %v1148 = vsel %vm1134, %v1112, %v744
    %v1149 = vsel %vm1134, %v1113, %v745
    %v1150 = vsel %vm1134, %v1114, %v746
    %v1151 = vsel %vm1134, %v1115, %v747
    %v1152 = vsel %vm1134, %v1116, %v748
    %v1153 = vsel %vm1134, %v1117, %v749
    %v1154 = vsel %vm1134, %v1118, %v750
    %v1155 = vsel %vm1134, %v1119, %v751
    %v1156 = vsel %vm1134, %v1120, %v752
    %v1157 = vsel %vm1134, %v1121, %v753
    %v1158 = vsel %vm1134, %v1122, %v754
    %v1159 = vsel %vm1134, %v1123, %v755
    %v1160 = vsel %vm1134, %v1124, %v756
    %v1161 = vsel %vm1134, %v1125, %v757
    %v1162 = vsel %vm1134, %v1126, %v758
    %v1163 = vsel %vm1134, %v1127, %v759
    %v1164 = vsel %vm1134, %v1128, %v760
    %v1165 = vsel %vm1134, %v1129, %v761
    %v1166 = vsel %vm1134, %v1130, %v762
    %v1167 = vsel %vm1134, %v1131, %v763
    %v1168 = vsel %vm1134, %v1132, %v764
    %v1169 = vsel %vm1134, %v1133, %v765
    %vm1170 = vcmask 1044480
    %v1171 = vsel %vm1170, %v1135, %v806
    %v1172 = vsel %vm1170, %v1136, %v807
    %v1173 = vsel %vm1170, %v1137, %v808
    %v1174 = vsel %vm1170, %v1138, %v809
    %v1175 = vsel %vm1170, %v1139, %v810
    %v1176 = vsel %vm1170, %v1140, %v811
    %v1177 = vsel %vm1170, %v1141, %v812
    %v1178 = vsel %vm1170, %v1142, %v813
    %v1179 = vsel %vm1170, %v1143, %v814
    %v1180 = vsel %vm1170, %v1144, %v815
    %v1181 = vsel %vm1170, %v1145, %v816
    %v1182 = vsel %vm1170, %v1146, %v817
    %v1183 = vsel %vm1170, %v1147, %v818
    %v1184 = vsel %vm1170, %v1148, %v819
    %v1185 = vsel %vm1170, %v1149, %v820
    %v1186 = vsel %vm1170, %v1150, %v821
    %v1187 = vsel %vm1170, %v1151, %v822
    %v1188 = vsel %vm1170, %v1152, %v823
    %v1189 = vsel %vm1170, %v1153, %v824
    %v1190 = vsel %vm1170, %v1154, %v825
    %v1191 = vsel %vm1170, %v1155, %v826
    %v1192 = vsel %vm1170, %v1156, %v827
    %v1193 = vsel %vm1170, %v1157, %v828
    %v1194 = vsel %vm1170, %v1158, %v829
    %v1195 = vsel %vm1170, %v1159, %v830
    %v1196 = vsel %vm1170, %v1160, %v831
    %v1197 = vsel %vm1170, %v1161, %v832
    %v1198 = vsel %vm1170, %v1162, %v833
    %v1199 = vsel %vm1170, %v1163, %v834
    %v1200 = vsel %vm1170, %v1164, %v835
    %v1201 = vsel %vm1170, %v1165, %v836
    %v1202 = vsel %vm1170, %v1166, %v837
    %v1203 = vsel %vm1170, %v1167, %v838
    %v1204 = vsel %vm1170, %v1168, %v839
    %v1205 = vsel %vm1170, %v1169, %v840
    %vm1206 = vcmask 1045504
    %v1207 = vsel %vm1206, %v1171, %v881
    %v1208 = vsel %vm1206, %v1172, %v882
    %v1209 = vsel %vm1206, %v1173, %v883
    %v1210 = vsel %vm1206, %v1174, %v884
    %v1211 = vsel %vm1206, %v1175, %v885
    %v1212 = vsel %vm1206, %v1176, %v886
    %v1213 = vsel %vm1206, %v1177, %v887
    %v1214 = vsel %vm1206, %v1178, %v888
    %v1215 = vsel %vm1206, %v1179, %v889
    %v1216 = vsel %vm1206, %v1180, %v890
    %v1217 = vsel %vm1206, %v1181, %v891
    %v1218 = vsel %vm1206, %v1182, %v892
    %v1219 = vsel %vm1206, %v1183, %v893
    %v1220 = vsel %vm1206, %v1184, %v894
    %v1221 = vsel %vm1206, %v1185, %v895
    %v1222 = vsel %vm1206, %v1186, %v896
    %v1223 = vsel %vm1206, %v1187, %v897
    %v1224 = vsel %vm1206, %v1188, %v898
    %v1225 = vsel %vm1206, %v1189, %v899
    %v1226 = vsel %vm1206, %v1190, %v900
    %v1227 = vsel %vm1206, %v1191, %v901
    %v1228 = vsel %vm1206, %v1192, %v902
    %v1229 = vsel %vm1206, %v1193, %v903
    %v1230 = vsel %vm1206, %v1194, %v904
    %v1231 = vsel %vm1206, %v1195, %v905
    %v1232 = vsel %vm1206, %v1196, %v906
    %v1233 = vsel %vm1206, %v1197, %v907
    %v1234 = vsel %vm1206, %v1198, %v908
    %v1235 = vsel %vm1206, %v1199, %v909
    %v1236 = vsel %vm1206, %v1200, %v910
    %v1237 = vsel %vm1206, %v1201, %v911
    %v1238 = vsel %vm1206, %v1202, %v912
    %v1239 = vsel %vm1206, %v1203, %v913
    %v1240 = vsel %vm1206, %v1204, %v914
    %v1241 = vsel %vm1206, %v1205, %v915
    %vm1242 = vcmask 1046528
    %v1243 = vsel %vm1242, %v1207, %v956
    %v1244 = vsel %vm1242, %v1208, %v957
    %v1245 = vsel %vm1242, %v1209, %v958
    %v1246 = vsel %vm1242, %v1210, %v959
    %v1247 = vsel %vm1242, %v1211, %v960
    %v1248 = vsel %vm1242, %v1212, %v961
    %v1249 = vsel %vm1242, %v1213, %v962
    %v1250 = vsel %vm1242, %v1214, %v963
    %v1251 = vsel %vm1242, %v1215, %v964
    %v1252 = vsel %vm1242, %v1216, %v965
    %v1253 = vsel %vm1242, %v1217, %v966
    %v1254 = vsel %vm1242, %v1218, %v967
    %v1255 = vsel %vm1242, %v1219, %v968
    %v1256 = vsel %vm1242, %v1220, %v969
    %v1257 = vsel %vm1242, %v1221, %v970
    %v1258 = vsel %vm1242, %v1222, %v971
    %v1259 = vsel %vm1242, %v1223, %v972
    %v1260 = vsel %vm1242, %v1224, %v973
    %v1261 = vsel %vm1242, %v1225, %v974
    %v1262 = vsel %vm1242, %v1226, %v975
    %v1263 = vsel %vm1242, %v1227, %v976
    %v1264 = vsel %vm1242, %v1228, %v977
    %v1265 = vsel %vm1242, %v1229, %v978
    %v1266 = vsel %vm1242, %v1230, %v979
    %v1267 = vsel %vm1242, %v1231, %v980
    %v1268 = vsel %vm1242, %v1232, %v981
    %v1269 = vsel %vm1242, %v1233, %v982
    %v1270 = vsel %vm1242, %v1234, %v983
    %v1271 = vsel %vm1242, %v1235, %v984
    %v1272 = vsel %vm1242, %v1236, %v985
    %v1273 = vsel %vm1242, %v1237, %v986
    %v1274 = vsel %vm1242, %v1238, %v987
    %v1275 = vsel %vm1242, %v1239, %v988
    %v1276 = vsel %vm1242, %v1240, %v989
    %v1277 = vsel %vm1242, %v1241, %v990
    %v1278 = vlaneseq
    %v1279 = vand.u32 %v1278, 127
    %v1280 = vadd.s32 %v1279, 128
    %v1281 = vadd.s32 %v1279, 256
    %v1282 = vadd.s32 %v1279, 384
    %v1283 = vadd.s32 %v1279, 512
    %v1284 = vadd.s32 %v1279, 640
    %v1285 = vadd.s32 %v1279, 768
    %v1286 = vadd.s32 %v1279, 896
    %v1287 = vadd.s32 %v1279, 1024
    %v1288 = vadd.s32 %v1279, 1152
    %v1289 = vadd.s32 %v1279, 1280
    %v1290 = vadd.s32 %v1279, 1408
    %v1291 = vadd.s32 %v1279, 1536
    %v1292 = vadd.s32 %v1279, 1664
    %v1293 = vadd.s32 %v1279, 1792
    %v1294 = vadd.s32 %v1279, 1920
    %v1295 = vadd.s32 %v1279, 2048
    %v1296 = vadd.s32 %v1279, 2176
    %v1297 = vadd.s32 %v1279, 2304
    %v1298 = vadd.s32 %v1279, 2432
    %v1299 = vadd.s32 %v1279, 2560
    %v1300 = vadd.s32 %v1279, 2688
    %v1301 = vadd.s32 %v1279, 2816
    %v1302 = vadd.s32 %v1279, 2944
    %v1303 = vadd.s32 %v1279, 3072
    %v1304 = vadd.s32 %v1279, 3200
    %v1305 = vadd.s32 %v1279, 3328
    %v1306 = vadd.s32 %v1279, 3456
    %v1307 = vadd.s32 %v1279, 3584
    %v1308 = vadd.s32 %v1279, 3712
    %v1309 = vadd.s32 %v1279, 3840
    %v1310 = vadd.s32 %v1279, 3968
    %v1311 = vand.u32 %v1279, 127
    %v1312 = vand.u32 %v1280, 127
    %v1313 = vand.u32 %v1281, 127
    %v1314 = vand.u32 %v1282, 127
    %v1315 = vand.u32 %v1283, 127
    %v1316 = vand.u32 %v1284, 127
    %v1317 = vand.u32 %v1285, 127
    %v1318 = vand.u32 %v1286, 127
    %v1319 = vand.u32 %v1287, 127
    %v1320 = vand.u32 %v1288, 127
    %v1321 = vand.u32 %v1289, 127
    %v1322 = vand.u32 %v1290, 127
    %v1323 = vand.u32 %v1291, 127
    %v1324 = vand.u32 %v1292, 127
    %v1325 = vand.u32 %v1293, 127
    %v1326 = vand.u32 %v1294, 127
    %v1327 = vand.u32 %v1295, 127
    %v1328 = vand.u32 %v1296, 127
    %v1329 = vand.u32 %v1297, 127
    %v1330 = vand.u32 %v1298, 127
    %v1331 = vand.u32 %v1299, 127
    %v1332 = vand.u32 %v1300, 127
    %v1333 = vand.u32 %v1301, 127
    %v1334 = vand.u32 %v1302, 127
    %v1335 = vand.u32 %v1303, 127
    %v1336 = vand.u32 %v1304, 127
    %v1337 = vand.u32 %v1305, 127
    %v1338 = vand.u32 %v1306, 127
    %v1339 = vand.u32 %v1307, 127
    %v1340 = vand.u32 %v1308, 127
    %v1341 = vand.u32 %v1309, 127
    %v1342 = vand.u32 %v1310, 127
    %vm1343 = vcmp.lt.s32.totalorder %v1311, 32
    %vm1344 = vcmp.lt.s32.totalorder %v1312, 32
    %vm1345 = vcmp.lt.s32.totalorder %v1313, 32
    %vm1346 = vcmp.lt.s32.totalorder %v1314, 32
    %vm1347 = vcmp.lt.s32.totalorder %v1315, 32
    %vm1348 = vcmp.lt.s32.totalorder %v1316, 32
    %vm1349 = vcmp.lt.s32.totalorder %v1317, 32
    %vm1350 = vcmp.lt.s32.totalorder %v1318, 32
    %vm1351 = vcmp.lt.s32.totalorder %v1319, 32
    %vm1352 = vcmp.lt.s32.totalorder %v1320, 32
    %vm1353 = vcmp.lt.s32.totalorder %v1321, 32
    %vm1354 = vcmp.lt.s32.totalorder %v1322, 32
    %vm1355 = vcmp.lt.s32.totalorder %v1323, 32
    %vm1356 = vcmp.lt.s32.totalorder %v1324, 32
    %vm1357 = vcmp.lt.s32.totalorder %v1325, 32
    %vm1358 = vcmp.lt.s32.totalorder %v1326, 32
    %vm1359 = vcmp.lt.s32.totalorder %v1327, 32
    %vm1360 = vcmp.lt.s32.totalorder %v1328, 32
    %vm1361 = vcmp.lt.s32.totalorder %v1329, 32
    %vm1362 = vcmp.lt.s32.totalorder %v1330, 32
    %vm1363 = vcmp.lt.s32.totalorder %v1331, 32
    %vm1364 = vcmp.lt.s32.totalorder %v1332, 32
    %vm1365 = vcmp.lt.s32.totalorder %v1333, 32
    %vm1366 = vcmp.lt.s32.totalorder %v1334, 32
    %vm1367 = vcmp.lt.s32.totalorder %v1335, 32
    %vm1368 = vcmp.lt.s32.totalorder %v1336, 32
    %vm1369 = vcmp.lt.s32.totalorder %v1337, 32
    %vm1370 = vcmp.lt.s32.totalorder %v1338, 32
    %vm1371 = vcmp.lt.s32.totalorder %v1339, 32
    %vm1372 = vcmp.lt.s32.totalorder %v1340, 32
    %vm1373 = vcmp.lt.s32.totalorder %v1341, 32
    %vm1374 = vcmp.lt.s32.totalorder %v1342, 32
    %v1375 = vld [vmem:[%s3] sm:$0xf]
    %v1409 = vrot.slane %v1243, 4
    %v1410 = vrot.slane %v1244, 4
    %v1411 = vrot.slane %v1245, 4
    %v1412 = vrot.slane %v1246, 4
    %v1413 = vrot.slane %v1247, 4
    %v1414 = vrot.slane %v1248, 4
    %v1415 = vrot.slane %v1249, 4
    %v1416 = vrot.slane %v1250, 4
    %v1417 = vrot.slane %v1251, 4
    %v1418 = vrot.slane %v1252, 4
    %v1419 = vrot.slane %v1253, 4
    %v1420 = vrot.slane %v1254, 4
    %v1421 = vrot.slane %v1255, 4
    %v1422 = vrot.slane %v1256, 4
    %v1423 = vrot.slane %v1257, 4
    %v1424 = vrot.slane %v1258, 4
    %v1425 = vrot.slane %v1259, 4
    %v1426 = vrot.slane %v1260, 4
    %v1427 = vrot.slane %v1261, 4
    %v1428 = vrot.slane %v1262, 4
    %v1429 = vrot.slane %v1263, 4
    %v1430 = vrot.slane %v1264, 4
    %v1431 = vrot.slane %v1265, 4
    %v1432 = vrot.slane %v1266, 4
    %v1433 = vrot.slane %v1267, 4
    %v1434 = vrot.slane %v1268, 4
    %v1435 = vrot.slane %v1269, 4
    %v1436 = vrot.slane %v1270, 4
    %v1437 = vrot.slane %v1271, 4
    %v1438 = vrot.slane %v1272, 4
    %v1439 = vrot.slane %v1273, 4
    %v1440 = vrot.slane %v1274, 4
    %v1441 = vrot.slane %v1275, 4
    %1442 = vrot.lane.b32.xlu0 %v1409, 127
    %v1443 = vpop.permute.xlu0 %1442
    %1444 = vrot.lane.b32.xlu0 %v1410, 127
    %v1445 = vpop.permute.xlu0 %1444
    %1446 = vrot.lane.b32.xlu0 %v1411, 127
    %v1447 = vpop.permute.xlu0 %1446
    %1448 = vrot.lane.b32.xlu0 %v1412, 127
    %v1449 = vpop.permute.xlu0 %1448
    %1450 = vrot.lane.b32.xlu0 %v1413, 127
    %v1451 = vpop.permute.xlu0 %1450
    %1452 = vrot.lane.b32.xlu0 %v1414, 127
    %v1453 = vpop.permute.xlu0 %1452
    %1454 = vrot.lane.b32.xlu0 %v1415, 127
    %v1455 = vpop.permute.xlu0 %1454
    %1456 = vrot.lane.b32.xlu0 %v1416, 127
    %v1457 = vpop.permute.xlu0 %1456
    %1458 = vrot.lane.b32.xlu0 %v1417, 127
    %v1459 = vpop.permute.xlu0 %1458
    %1460 = vrot.lane.b32.xlu0 %v1418, 127
    %v1461 = vpop.permute.xlu0 %1460
    %1462 = vrot.lane.b32.xlu0 %v1419, 127
    %v1463 = vpop.permute.xlu0 %1462
    %1464 = vrot.lane.b32.xlu0 %v1420, 127
    %v1465 = vpop.permute.xlu0 %1464
    %1466 = vrot.lane.b32.xlu0 %v1421, 127
    %v1467 = vpop.permute.xlu0 %1466
    %1468 = vrot.lane.b32.xlu0 %v1422, 127
    %v1469 = vpop.permute.xlu0 %1468
    %1470 = vrot.lane.b32.xlu0 %v1423, 127
    %v1471 = vpop.permute.xlu0 %1470
    %1472 = vrot.lane.b32.xlu0 %v1424, 127
    %v1473 = vpop.permute.xlu0 %1472
    %1474 = vrot.lane.b32.xlu0 %v1425, 127
    %v1475 = vpop.permute.xlu0 %1474
    %1476 = vrot.lane.b32.xlu0 %v1426, 127
    %v1477 = vpop.permute.xlu0 %1476
    %1478 = vrot.lane.b32.xlu0 %v1427, 127
    %v1479 = vpop.permute.xlu0 %1478
    %1480 = vrot.lane.b32.xlu0 %v1428, 127
    %v1481 = vpop.permute.xlu0 %1480
    %1482 = vrot.lane.b32.xlu0 %v1429, 127
    %v1483 = vpop.permute.xlu0 %1482
    %1484 = vrot.lane.b32.xlu0 %v1430, 127
    %v1485 = vpop.permute.xlu0 %1484
    %1486 = vrot.lane.b32.xlu0 %v1431, 127
    %v1487 = vpop.permute.xlu0 %1486
    %1488 = vrot.lane.b32.xlu0 %v1432, 127
    %v1489 = vpop.permute.xlu0 %1488
    %1490 = vrot.lane.b32.xlu0 %v1433, 127
    %v1491 = vpop.permute.xlu0 %1490
    %1492 = vrot.lane.b32.xlu0 %v1434, 127
    %v1493 = vpop.permute.xlu0 %1492
    %1494 = vrot.lane.b32.xlu0 %v1435, 127
    %v1495 = vpop.permute.xlu0 %1494
    %1496 = vrot.lane.b32.xlu0 %v1436, 127
    %v1497 = vpop.permute.xlu0 %1496
    %1498 = vrot.lane.b32.xlu0 %v1437, 127
    %v1499 = vpop.permute.xlu0 %1498
    %1500 = vrot.lane.b32.xlu0 %v1438, 127
    %v1501 = vpop.permute.xlu0 %1500
    %1502 = vrot.lane.b32.xlu0 %v1439, 127
    %v1503 = vpop.permute.xlu0 %1502
    %1504 = vrot.lane.b32.xlu0 %v1440, 127
    %v1505 = vpop.permute.xlu0 %1504
    %1506 = vrot.lane.b32.xlu0 %v1441, 127
    %v1507 = vpop.permute.xlu0 %1506
    %vm1508 = vcmask 1039360
    %v1509 = vsel %vm1508, %v1443, %v1445
    %v1510 = vsel %vm1508, %v1445, %v1447
    %v1511 = vsel %vm1508, %v1447, %v1449
    %v1512 = vsel %vm1508, %v1449, %v1451
    %v1513 = vsel %vm1508, %v1451, %v1453
    %v1514 = vsel %vm1508, %v1453, %v1455
    %v1515 = vsel %vm1508, %v1455, %v1457
    %v1516 = vsel %vm1508, %v1457, %v1459
    %v1517 = vsel %vm1508, %v1459, %v1461
    %v1518 = vsel %vm1508, %v1461, %v1463
    %v1519 = vsel %vm1508, %v1463, %v1465
    %v1520 = vsel %vm1508, %v1465, %v1467
    %v1521 = vsel %vm1508, %v1467, %v1469
    %v1522 = vsel %vm1508, %v1469, %v1471
    %v1523 = vsel %vm1508, %v1471, %v1473
    %v1524 = vsel %vm1508, %v1473, %v1475
    %v1525 = vsel %vm1508, %v1475, %v1477
    %v1526 = vsel %vm1508, %v1477, %v1479
    %v1527 = vsel %vm1508, %v1479, %v1481
    %v1528 = vsel %vm1508, %v1481, %v1483
    %v1529 = vsel %vm1508, %v1483, %v1485
    %v1530 = vsel %vm1508, %v1485, %v1487
    %v1531 = vsel %vm1508, %v1487, %v1489
    %v1532 = vsel %vm1508, %v1489, %v1491
    %v1533 = vsel %vm1508, %v1491, %v1493
    %v1534 = vsel %vm1508, %v1493, %v1495
    %v1535 = vsel %vm1508, %v1495, %v1497
    %v1536 = vsel %vm1508, %v1497, %v1499
    %v1537 = vsel %vm1508, %v1499, %v1501
    %v1538 = vsel %vm1508, %v1501, %v1503
    %v1539 = vsel %vm1508, %v1503, %v1505
    %v1540 = vsel %vm1508, %v1505, %v1507
    %1573 = vrot.lane.b32.xlu0 %v1243, 126
    %v1574 = vpop.permute.xlu0 %1573
    %1575 = vrot.lane.b32.xlu0 %v1244, 126
    %v1576 = vpop.permute.xlu0 %1575
    %1577 = vrot.lane.b32.xlu0 %v1245, 126
    %v1578 = vpop.permute.xlu0 %1577
    %1579 = vrot.lane.b32.xlu0 %v1246, 126
    %v1580 = vpop.permute.xlu0 %1579
    %1581 = vrot.lane.b32.xlu0 %v1247, 126
    %v1582 = vpop.permute.xlu0 %1581
    %1583 = vrot.lane.b32.xlu0 %v1248, 126
    %v1584 = vpop.permute.xlu0 %1583
    %1585 = vrot.lane.b32.xlu0 %v1249, 126
    %v1586 = vpop.permute.xlu0 %1585
    %1587 = vrot.lane.b32.xlu0 %v1250, 126
    %v1588 = vpop.permute.xlu0 %1587
    %1589 = vrot.lane.b32.xlu0 %v1251, 126
    %v1590 = vpop.permute.xlu0 %1589
    %1591 = vrot.lane.b32.xlu0 %v1252, 126
    %v1592 = vpop.permute.xlu0 %1591
    %1593 = vrot.lane.b32.xlu0 %v1253, 126
    %v1594 = vpop.permute.xlu0 %1593
    %1595 = vrot.lane.b32.xlu0 %v1254, 126
    %v1596 = vpop.permute.xlu0 %1595
    %1597 = vrot.lane.b32.xlu0 %v1255, 126
    %v1598 = vpop.permute.xlu0 %1597
    %1599 = vrot.lane.b32.xlu0 %v1256, 126
    %v1600 = vpop.permute.xlu0 %1599
    %1601 = vrot.lane.b32.xlu0 %v1257, 126
    %v1602 = vpop.permute.xlu0 %1601
    %1603 = vrot.lane.b32.xlu0 %v1258, 126
    %v1604 = vpop.permute.xlu0 %1603
    %1605 = vrot.lane.b32.xlu0 %v1259, 126
    %v1606 = vpop.permute.xlu0 %1605
    %1607 = vrot.lane.b32.xlu0 %v1260, 126
    %v1608 = vpop.permute.xlu0 %1607
    %1609 = vrot.lane.b32.xlu0 %v1261, 126
    %v1610 = vpop.permute.xlu0 %1609
    %1611 = vrot.lane.b32.xlu0 %v1262, 126
    %v1612 = vpop.permute.xlu0 %1611
    %1613 = vrot.lane.b32.xlu0 %v1263, 126
    %v1614 = vpop.permute.xlu0 %1613
    %1615 = vrot.lane.b32.xlu0 %v1264, 126
    %v1616 = vpop.permute.xlu0 %1615
    %1617 = vrot.lane.b32.xlu0 %v1265, 126
    %v1618 = vpop.permute.xlu0 %1617
    %1619 = vrot.lane.b32.xlu0 %v1266, 126
    %v1620 = vpop.permute.xlu0 %1619
    %1621 = vrot.lane.b32.xlu0 %v1267, 126
    %v1622 = vpop.permute.xlu0 %1621
    %1623 = vrot.lane.b32.xlu0 %v1268, 126
    %v1624 = vpop.permute.xlu0 %1623
    %1625 = vrot.lane.b32.xlu0 %v1269, 126
    %v1626 = vpop.permute.xlu0 %1625
    %1627 = vrot.lane.b32.xlu0 %v1270, 126
    %v1628 = vpop.permute.xlu0 %1627
    %1629 = vrot.lane.b32.xlu0 %v1271, 126
    %v1630 = vpop.permute.xlu0 %1629
    %1631 = vrot.lane.b32.xlu0 %v1272, 126
    %v1632 = vpop.permute.xlu0 %1631
    %1633 = vrot.lane.b32.xlu0 %v1273, 126
    %v1634 = vpop.permute.xlu0 %1633
    %1635 = vrot.lane.b32.xlu0 %v1274, 126
    %v1636 = vpop.permute.xlu0 %1635
    %1637 = vrot.lane.b32.xlu0 %v1275, 126
    %v1638 = vpop.permute.xlu0 %1637
    %vm1639 = vcmask 1031168
    %v1640 = vsel %vm1639, %v1574, %v1576
    %v1641 = vsel %vm1639, %v1576, %v1578
    %v1642 = vsel %vm1639, %v1578, %v1580
    %v1643 = vsel %vm1639, %v1580, %v1582
    %v1644 = vsel %vm1639, %v1582, %v1584
    %v1645 = vsel %vm1639, %v1584, %v1586
    %v1646 = vsel %vm1639, %v1586, %v1588
    %v1647 = vsel %vm1639, %v1588, %v1590
    %v1648 = vsel %vm1639, %v1590, %v1592
    %v1649 = vsel %vm1639, %v1592, %v1594
    %v1650 = vsel %vm1639, %v1594, %v1596
    %v1651 = vsel %vm1639, %v1596, %v1598
    %v1652 = vsel %vm1639, %v1598, %v1600
    %v1653 = vsel %vm1639, %v1600, %v1602
    %v1654 = vsel %vm1639, %v1602, %v1604
    %v1655 = vsel %vm1639, %v1604, %v1606
    %v1656 = vsel %vm1639, %v1606, %v1608
    %v1657 = vsel %vm1639, %v1608, %v1610
    %v1658 = vsel %vm1639, %v1610, %v1612
    %v1659 = vsel %vm1639, %v1612, %v1614
    %v1660 = vsel %vm1639, %v1614, %v1616
    %v1661 = vsel %vm1639, %v1616, %v1618
    %v1662 = vsel %vm1639, %v1618, %v1620
    %v1663 = vsel %vm1639, %v1620, %v1622
    %v1664 = vsel %vm1639, %v1622, %v1624
    %v1665 = vsel %vm1639, %v1624, %v1626
    %v1666 = vsel %vm1639, %v1626, %v1628
    %v1667 = vsel %vm1639, %v1628, %v1630
    %v1668 = vsel %vm1639, %v1630, %v1632
    %v1669 = vsel %vm1639, %v1632, %v1634
    %v1670 = vsel %vm1639, %v1634, %v1636
    %v1671 = vsel %vm1639, %v1636, %v1638
    %1737 = vrot.lane.b32.xlu0 %v1244, 127
    %v1738 = vpop.permute.xlu0 %1737
    %1739 = vrot.lane.b32.xlu0 %v1245, 127
    %v1740 = vpop.permute.xlu0 %1739
    %1741 = vrot.lane.b32.xlu0 %v1246, 127
    %v1742 = vpop.permute.xlu0 %1741
    %1743 = vrot.lane.b32.xlu0 %v1247, 127
    %v1744 = vpop.permute.xlu0 %1743
    %1745 = vrot.lane.b32.xlu0 %v1248, 127
    %v1746 = vpop.permute.xlu0 %1745
    %1747 = vrot.lane.b32.xlu0 %v1249, 127
    %v1748 = vpop.permute.xlu0 %1747
    %1749 = vrot.lane.b32.xlu0 %v1250, 127
    %v1750 = vpop.permute.xlu0 %1749
    %1751 = vrot.lane.b32.xlu0 %v1251, 127
    %v1752 = vpop.permute.xlu0 %1751
    %1753 = vrot.lane.b32.xlu0 %v1252, 127
    %v1754 = vpop.permute.xlu0 %1753
    %1755 = vrot.lane.b32.xlu0 %v1253, 127
    %v1756 = vpop.permute.xlu0 %1755
    %1757 = vrot.lane.b32.xlu0 %v1254, 127
    %v1758 = vpop.permute.xlu0 %1757
    %1759 = vrot.lane.b32.xlu0 %v1255, 127
    %v1760 = vpop.permute.xlu0 %1759
    %1761 = vrot.lane.b32.xlu0 %v1256, 127
    %v1762 = vpop.permute.xlu0 %1761
    %1763 = vrot.lane.b32.xlu0 %v1257, 127
    %v1764 = vpop.permute.xlu0 %1763
    %1765 = vrot.lane.b32.xlu0 %v1258, 127
    %v1766 = vpop.permute.xlu0 %1765
    %1767 = vrot.lane.b32.xlu0 %v1259, 127
    %v1768 = vpop.permute.xlu0 %1767
    %1769 = vrot.lane.b32.xlu0 %v1260, 127
    %v1770 = vpop.permute.xlu0 %1769
    %1771 = vrot.lane.b32.xlu0 %v1261, 127
    %v1772 = vpop.permute.xlu0 %1771
    %1773 = vrot.lane.b32.xlu0 %v1262, 127
    %v1774 = vpop.permute.xlu0 %1773
    %1775 = vrot.lane.b32.xlu0 %v1263, 127
    %v1776 = vpop.permute.xlu0 %1775
    %1777 = vrot.lane.b32.xlu0 %v1264, 127
    %v1778 = vpop.permute.xlu0 %1777
    %1779 = vrot.lane.b32.xlu0 %v1265, 127
    %v1780 = vpop.permute.xlu0 %1779
    %1781 = vrot.lane.b32.xlu0 %v1266, 127
    %v1782 = vpop.permute.xlu0 %1781
    %1783 = vrot.lane.b32.xlu0 %v1267, 127
    %v1784 = vpop.permute.xlu0 %1783
    %1785 = vrot.lane.b32.xlu0 %v1268, 127
    %v1786 = vpop.permute.xlu0 %1785
    %1787 = vrot.lane.b32.xlu0 %v1269, 127
    %v1788 = vpop.permute.xlu0 %1787
    %1789 = vrot.lane.b32.xlu0 %v1270, 127
    %v1790 = vpop.permute.xlu0 %1789
    %1791 = vrot.lane.b32.xlu0 %v1271, 127
    %v1792 = vpop.permute.xlu0 %1791
    %1793 = vrot.lane.b32.xlu0 %v1272, 127
    %v1794 = vpop.permute.xlu0 %1793
    %1795 = vrot.lane.b32.xlu0 %v1273, 127
    %v1796 = vpop.permute.xlu0 %1795
    %1797 = vrot.lane.b32.xlu0 %v1274, 127
    %v1798 = vpop.permute.xlu0 %1797
    %1799 = vrot.lane.b32.xlu0 %v1275, 127
    %v1800 = vpop.permute.xlu0 %1799
    %1801 = vrot.lane.b32.xlu0 %v1276, 127
    %v1802 = vpop.permute.xlu0 %1801
    %v1803 = vsel %vm1508, %v1738, %v1740
    %v1804 = vsel %vm1508, %v1740, %v1742
    %v1805 = vsel %vm1508, %v1742, %v1744
    %v1806 = vsel %vm1508, %v1744, %v1746
    %v1807 = vsel %vm1508, %v1746, %v1748
    %v1808 = vsel %vm1508, %v1748, %v1750
    %v1809 = vsel %vm1508, %v1750, %v1752
    %v1810 = vsel %vm1508, %v1752, %v1754
    %v1811 = vsel %vm1508, %v1754, %v1756
    %v1812 = vsel %vm1508, %v1756, %v1758
    %v1813 = vsel %vm1508, %v1758, %v1760
    %v1814 = vsel %vm1508, %v1760, %v1762
    %v1815 = vsel %vm1508, %v1762, %v1764
    %v1816 = vsel %vm1508, %v1764, %v1766
    %v1817 = vsel %vm1508, %v1766, %v1768
    %v1818 = vsel %vm1508, %v1768, %v1770
    %v1819 = vsel %vm1508, %v1770, %v1772
    %v1820 = vsel %vm1508, %v1772, %v1774
    %v1821 = vsel %vm1508, %v1774, %v1776
    %v1822 = vsel %vm1508, %v1776, %v1778
    %v1823 = vsel %vm1508, %v1778, %v1780
    %v1824 = vsel %vm1508, %v1780, %v1782
    %v1825 = vsel %vm1508, %v1782, %v1784
    %v1826 = vsel %vm1508, %v1784, %v1786
    %v1827 = vsel %vm1508, %v1786, %v1788
    %v1828 = vsel %vm1508, %v1788, %v1790
    %v1829 = vsel %vm1508, %v1790, %v1792
    %v1830 = vsel %vm1508, %v1792, %v1794
    %v1831 = vsel %vm1508, %v1794, %v1796
    %v1832 = vsel %vm1508, %v1796, %v1798
    %v1833 = vsel %vm1508, %v1798, %v1800
    %v1834 = vsel %vm1508, %v1800, %v1802
    %v1867 = vrot.slane %v1276, 4
    %1868 = vrot.lane.b32.xlu0 %v1410, 126
    %v1869 = vpop.permute.xlu0 %1868
    %1870 = vrot.lane.b32.xlu0 %v1411, 126
    %v1871 = vpop.permute.xlu0 %1870
    %1872 = vrot.lane.b32.xlu0 %v1412, 126
    %v1873 = vpop.permute.xlu0 %1872
    %1874 = vrot.lane.b32.xlu0 %v1413, 126
    %v1875 = vpop.permute.xlu0 %1874
    %1876 = vrot.lane.b32.xlu0 %v1414, 126
    %v1877 = vpop.permute.xlu0 %1876
    %1878 = vrot.lane.b32.xlu0 %v1415, 126
    %v1879 = vpop.permute.xlu0 %1878
    %1880 = vrot.lane.b32.xlu0 %v1416, 126
    %v1881 = vpop.permute.xlu0 %1880
    %1882 = vrot.lane.b32.xlu0 %v1417, 126
    %v1883 = vpop.permute.xlu0 %1882
    %1884 = vrot.lane.b32.xlu0 %v1418, 126
    %v1885 = vpop.permute.xlu0 %1884
    %1886 = vrot.lane.b32.xlu0 %v1419, 126
    %v1887 = vpop.permute.xlu0 %1886
    %1888 = vrot.lane.b32.xlu0 %v1420, 126
    %v1889 = vpop.permute.xlu0 %1888
    %1890 = vrot.lane.b32.xlu0 %v1421, 126
    %v1891 = vpop.permute.xlu0 %1890
    %1892 = vrot.lane.b32.xlu0 %v1422, 126
    %v1893 = vpop.permute.xlu0 %1892
    %1894 = vrot.lane.b32.xlu0 %v1423, 126
    %v1895 = vpop.permute.xlu0 %1894
    %1896 = vrot.lane.b32.xlu0 %v1424, 126
    %v1897 = vpop.permute.xlu0 %1896
    %1898 = vrot.lane.b32.xlu0 %v1425, 126
    %v1899 = vpop.permute.xlu0 %1898
    %1900 = vrot.lane.b32.xlu0 %v1426, 126
    %v1901 = vpop.permute.xlu0 %1900
    %1902 = vrot.lane.b32.xlu0 %v1427, 126
    %v1903 = vpop.permute.xlu0 %1902
    %1904 = vrot.lane.b32.xlu0 %v1428, 126
    %v1905 = vpop.permute.xlu0 %1904
    %1906 = vrot.lane.b32.xlu0 %v1429, 126
    %v1907 = vpop.permute.xlu0 %1906
    %1908 = vrot.lane.b32.xlu0 %v1430, 126
    %v1909 = vpop.permute.xlu0 %1908
    %1910 = vrot.lane.b32.xlu0 %v1431, 126
    %v1911 = vpop.permute.xlu0 %1910
    %1912 = vrot.lane.b32.xlu0 %v1432, 126
    %v1913 = vpop.permute.xlu0 %1912
    %1914 = vrot.lane.b32.xlu0 %v1433, 126
    %v1915 = vpop.permute.xlu0 %1914
    %1916 = vrot.lane.b32.xlu0 %v1434, 126
    %v1917 = vpop.permute.xlu0 %1916
    %1918 = vrot.lane.b32.xlu0 %v1435, 126
    %v1919 = vpop.permute.xlu0 %1918
    %1920 = vrot.lane.b32.xlu0 %v1436, 126
    %v1921 = vpop.permute.xlu0 %1920
    %1922 = vrot.lane.b32.xlu0 %v1437, 126
    %v1923 = vpop.permute.xlu0 %1922
    %1924 = vrot.lane.b32.xlu0 %v1438, 126
    %v1925 = vpop.permute.xlu0 %1924
    %1926 = vrot.lane.b32.xlu0 %v1439, 126
    %v1927 = vpop.permute.xlu0 %1926
    %1928 = vrot.lane.b32.xlu0 %v1440, 126
    %v1929 = vpop.permute.xlu0 %1928
    %1930 = vrot.lane.b32.xlu0 %v1441, 126
    %v1931 = vpop.permute.xlu0 %1930
    %1932 = vrot.lane.b32.xlu0 %v1867, 126
    %v1933 = vpop.permute.xlu0 %1932
    %v1934 = vsel %vm1639, %v1869, %v1871
    %v1935 = vsel %vm1639, %v1871, %v1873
    %v1936 = vsel %vm1639, %v1873, %v1875
    %v1937 = vsel %vm1639, %v1875, %v1877
    %v1938 = vsel %vm1639, %v1877, %v1879
    %v1939 = vsel %vm1639, %v1879, %v1881
    %v1940 = vsel %vm1639, %v1881, %v1883
    %v1941 = vsel %vm1639, %v1883, %v1885
    %v1942 = vsel %vm1639, %v1885, %v1887
    %v1943 = vsel %vm1639, %v1887, %v1889
    %v1944 = vsel %vm1639, %v1889, %v1891
    %v1945 = vsel %vm1639, %v1891, %v1893
    %v1946 = vsel %vm1639, %v1893, %v1895
    %v1947 = vsel %vm1639, %v1895, %v1897
    %v1948 = vsel %vm1639, %v1897, %v1899
    %v1949 = vsel %vm1639, %v1899, %v1901
    %v1950 = vsel %vm1639, %v1901, %v1903
    %v1951 = vsel %vm1639, %v1903, %v1905
    %v1952 = vsel %vm1639, %v1905, %v1907
    %v1953 = vsel %vm1639, %v1907, %v1909
    %v1954 = vsel %vm1639, %v1909, %v1911
    %v1955 = vsel %vm1639, %v1911, %v1913
    %v1956 = vsel %vm1639, %v1913, %v1915
    %v1957 = vsel %vm1639, %v1915, %v1917
    %v1958 = vsel %vm1639, %v1917, %v1919
    %v1959 = vsel %vm1639, %v1919, %v1921
    %v1960 = vsel %vm1639, %v1921, %v1923
    %v1961 = vsel %vm1639, %v1923, %v1925
    %v1962 = vsel %vm1639, %v1925, %v1927
    %v1963 = vsel %vm1639, %v1927, %v1929
    %v1964 = vsel %vm1639, %v1929, %v1931
    %v1965 = vsel %vm1639, %v1931, %v1933
    %v1999 = vrot.slane %v1277, 4
    %2000 = vrot.lane.b32.xlu0 %v1867, 127
    %v2001 = vpop.permute.xlu0 %2000
    %2002 = vrot.lane.b32.xlu0 %v1999, 127
    %v2003 = vpop.permute.xlu0 %2002
    %v2004 = vsel %vm1508, %v1507, %v2001
    %v2005 = vsel %vm1508, %v2001, %v2003
    %2008 = vrot.lane.b32.xlu0 %v1276, 126
    %v2009 = vpop.permute.xlu0 %2008
    %2010 = vrot.lane.b32.xlu0 %v1277, 126
    %v2011 = vpop.permute.xlu0 %2010
    %v2012 = vsel %vm1639, %v1638, %v2009
    %v2013 = vsel %vm1639, %v2009, %v2011
    %v2014 = vsel %vm1134, %v1243, %v1509
    %v2015 = vsel %vm1134, %v1244, %v1510
    %v2016 = vsel %vm1134, %v1245, %v1511
    %v2017 = vsel %vm1134, %v1246, %v1512
    %v2018 = vsel %vm1134, %v1247, %v1513
    %v2019 = vsel %vm1134, %v1248, %v1514
    %v2020 = vsel %vm1134, %v1249, %v1515
    %v2021 = vsel %vm1134, %v1250, %v1516
    %v2022 = vsel %vm1134, %v1251, %v1517
    %v2023 = vsel %vm1134, %v1252, %v1518
    %v2024 = vsel %vm1134, %v1253, %v1519
    %v2025 = vsel %vm1134, %v1254, %v1520
    %v2026 = vsel %vm1134, %v1255, %v1521
    %v2027 = vsel %vm1134, %v1256, %v1522
    %v2028 = vsel %vm1134, %v1257, %v1523
    %v2029 = vsel %vm1134, %v1258, %v1524
    %v2030 = vsel %vm1134, %v1259, %v1525
    %v2031 = vsel %vm1134, %v1260, %v1526
    %v2032 = vsel %vm1134, %v1261, %v1527
    %v2033 = vsel %vm1134, %v1262, %v1528
    %v2034 = vsel %vm1134, %v1263, %v1529
    %v2035 = vsel %vm1134, %v1264, %v1530
    %v2036 = vsel %vm1134, %v1265, %v1531
    %v2037 = vsel %vm1134, %v1266, %v1532
    %v2038 = vsel %vm1134, %v1267, %v1533
    %v2039 = vsel %vm1134, %v1268, %v1534
    %v2040 = vsel %vm1134, %v1269, %v1535
    %v2041 = vsel %vm1134, %v1270, %v1536
    %v2042 = vsel %vm1134, %v1271, %v1537
    %v2043 = vsel %vm1134, %v1272, %v1538
    %v2044 = vsel %vm1134, %v1273, %v1539
    %v2045 = vsel %vm1134, %v1274, %v1540
    %v2046 = vsel %vm1134, %v1640, %v1410
    %v2047 = vsel %vm1134, %v1641, %v1411
    %v2048 = vsel %vm1134, %v1642, %v1412
    %v2049 = vsel %vm1134, %v1643, %v1413
    %v2050 = vsel %vm1134, %v1644, %v1414
    %v2051 = vsel %vm1134, %v1645, %v1415
    %v2052 = vsel %vm1134, %v1646, %v1416
    %v2053 = vsel %vm1134, %v1647, %v1417
    %v2054 = vsel %vm1134, %v1648, %v1418
    %v2055 = vsel %vm1134, %v1649, %v1419
    %v2056 = vsel %vm1134, %v1650, %v1420
    %v2057 = vsel %vm1134, %v1651, %v1421
    %v2058 = vsel %vm1134, %v1652, %v1422
    %v2059 = vsel %vm1134, %v1653, %v1423
    %v2060 = vsel %vm1134, %v1654, %v1424
    %v2061 = vsel %vm1134, %v1655, %v1425
    %v2062 = vsel %vm1134, %v1656, %v1426
    %v2063 = vsel %vm1134, %v1657, %v1427
    %v2064 = vsel %vm1134, %v1658, %v1428
    %v2065 = vsel %vm1134, %v1659, %v1429
    %v2066 = vsel %vm1134, %v1660, %v1430
    %v2067 = vsel %vm1134, %v1661, %v1431
    %v2068 = vsel %vm1134, %v1662, %v1432
    %v2069 = vsel %vm1134, %v1663, %v1433
    %v2070 = vsel %vm1134, %v1664, %v1434
    %v2071 = vsel %vm1134, %v1665, %v1435
    %v2072 = vsel %vm1134, %v1666, %v1436
    %v2073 = vsel %vm1134, %v1667, %v1437
    %v2074 = vsel %vm1134, %v1668, %v1438
    %v2075 = vsel %vm1134, %v1669, %v1439
    %v2076 = vsel %vm1134, %v1670, %v1440
    %v2077 = vsel %vm1134, %v1671, %v1441
    %v2078 = vsel %vm1134, %v1803, %v1934
    %v2079 = vsel %vm1134, %v1804, %v1935
    %v2080 = vsel %vm1134, %v1805, %v1936
    %v2081 = vsel %vm1134, %v1806, %v1937
    %v2082 = vsel %vm1134, %v1807, %v1938
    %v2083 = vsel %vm1134, %v1808, %v1939
    %v2084 = vsel %vm1134, %v1809, %v1940
    %v2085 = vsel %vm1134, %v1810, %v1941
    %v2086 = vsel %vm1134, %v1811, %v1942
    %v2087 = vsel %vm1134, %v1812, %v1943
    %v2088 = vsel %vm1134, %v1813, %v1944
    %v2089 = vsel %vm1134, %v1814, %v1945
    %v2090 = vsel %vm1134, %v1815, %v1946
    %v2091 = vsel %vm1134, %v1816, %v1947
    %v2092 = vsel %vm1134, %v1817, %v1948
    %v2093 = vsel %vm1134, %v1818, %v1949
    %v2094 = vsel %vm1134, %v1819, %v1950
    %v2095 = vsel %vm1134, %v1820, %v1951
    %v2096 = vsel %vm1134, %v1821, %v1952
    %v2097 = vsel %vm1134, %v1822, %v1953
    %v2098 = vsel %vm1134, %v1823, %v1954
    %v2099 = vsel %vm1134, %v1824, %v1955
    %v2100 = vsel %vm1134, %v1825, %v1956
    %v2101 = vsel %vm1134, %v1826, %v1957
    %v2102 = vsel %vm1134, %v1827, %v1958
    %v2103 = vsel %vm1134, %v1828, %v1959
    %v2104 = vsel %vm1134, %v1829, %v1960
    %v2105 = vsel %vm1134, %v1830, %v1961
    %v2106 = vsel %vm1134, %v1831, %v1962
    %v2107 = vsel %vm1134, %v1832, %v1963
    %v2108 = vsel %vm1134, %v1833, %v1964
    %v2109 = vsel %vm1134, %v1834, %v1965
    %v2110 = vsel %vm1134, %v1275, %v2004
    %v2111 = vsel %vm1134, %v1276, %v2005
    %vm2112 = vcmask 293888
    %v2114 = vsel %vm2112, %v1375, 0
    %v2116 = vsel %vm1134, %v1642, 0
    %v2118 = vsel %vm1134, %v1643, 0
    %v2120 = vsel %vm1134, %v1644, 0
    %v2122 = vsel %vm1134, %v1645, 0
    %v2124 = vsel %vm1134, %v1646, 0
    %v2126 = vsel %vm1134, %v1647, 0
    %v2128 = vsel %vm1134, %v1648, 0
    %v2130 = vsel %vm1134, %v1649, 0
    %v2132 = vsel %vm1134, %v1650, 0
    %v2134 = vsel %vm1134, %v1651, 0
    %v2136 = vsel %vm1134, %v1652, 0
    %v2138 = vsel %vm1134, %v1653, 0
    %v2140 = vsel %vm1134, %v1654, 0
    %v2142 = vsel %vm1134, %v1655, 0
    %v2144 = vsel %vm1134, %v1656, 0
    %v2146 = vsel %vm1134, %v1657, 0
    %v2148 = vsel %vm1134, %v1658, 0
    %v2150 = vsel %vm1134, %v1659, 0
    %v2152 = vsel %vm1134, %v1660, 0
    %v2154 = vsel %vm1134, %v1661, 0
    %v2156 = vsel %vm1134, %v1662, 0
    %v2158 = vsel %vm1134, %v1663, 0
    %v2160 = vsel %vm1134, %v1664, 0
    %v2162 = vsel %vm1134, %v1665, 0
    %v2164 = vsel %vm1134, %v1666, 0
    %v2166 = vsel %vm1134, %v1667, 0
    %v2168 = vsel %vm1134, %v1668, 0
    %v2170 = vsel %vm1134, %v1669, 0
    %v2172 = vsel %vm1134, %v1670, 0
    %v2174 = vsel %vm1134, %v1671, 0
    %v2176 = vsel %vm1134, %v2012, 0
    %v2178 = vsel %vm1134, %v2013, 0
    %2180 = vmatpush.msra.mxu0 0.0
    %2181 = vmatpush.msra.mxu0 0.0
    %2182 = vmatpush.msra.mxu0 0.0
    %2183 = vmatpush.msra.mxu0 0.0
    %2184 = vmatpush.msra.mxu0 0.0
    %2185 = vmatpush.msra.mxu0 0.0
    %2186 = vmatpush.msra.mxu0 0.0
    %2187 = vmatpush.msra.mxu0 0.0
    %2188 = vmatpush.msra.mxu0 0.0
    %2189 = vmatpush.msra.mxu0 0.0
    %2190 = vmatpush.msra.mxu0 0.0
    %2191 = vmatpush.msra.mxu0 %v2116
    %2192 = vmatpush.msra.mxu0 %v2016
    %2193 = vmatpush.msra.mxu0 %v2078
    %2194 = vmatpush.msra.mxu0 %v2046
    %2195 = vmatpush.msra.mxu0 %v2014
    %2196 = vmatmul.f32.gmra.mxu0 %v2114
    %v2197 = vpop.f32.mrf.mxu0
    %v2198 = vadd.f32 0.0, %v2197
    %2199 = vdwg.mxu0
    %2200 = vmatpush.msra.mxu0 0.0
    %2201 = vmatpush.msra.mxu0 0.0
    %2202 = vmatpush.msra.mxu0 0.0
    %2203 = vmatpush.msra.mxu0 0.0
    %2204 = vmatpush.msra.mxu0 0.0
    %2205 = vmatpush.msra.mxu0 0.0
    %2206 = vmatpush.msra.mxu0 0.0
    %2207 = vmatpush.msra.mxu0 0.0
    %2208 = vmatpush.msra.mxu0 0.0
    %2209 = vmatpush.msra.mxu0 0.0
    %2210 = vmatpush.msra.mxu0 0.0
    %2211 = vmatpush.msra.mxu0 %v2118
    %2212 = vmatpush.msra.mxu0 %v2017
    %2213 = vmatpush.msra.mxu0 %v2079
    %2214 = vmatpush.msra.mxu0 %v2047
    %2215 = vmatpush.msra.mxu0 %v2015
    %2216 = vmatmul.f32.gmra.mxu0 %v2114
    %v2217 = vpop.f32.mrf.mxu0
    %v2218 = vadd.f32 0.0, %v2217
    %2219 = vdwg.mxu0
    %2220 = vmatpush.msra.mxu0 0.0
    %2221 = vmatpush.msra.mxu0 0.0
    %2222 = vmatpush.msra.mxu0 0.0
    %2223 = vmatpush.msra.mxu0 0.0
    %2224 = vmatpush.msra.mxu0 0.0
    %2225 = vmatpush.msra.mxu0 0.0
    %2226 = vmatpush.msra.mxu0 0.0
    %2227 = vmatpush.msra.mxu0 0.0
    %2228 = vmatpush.msra.mxu0 0.0
    %2229 = vmatpush.msra.mxu0 0.0
    %2230 = vmatpush.msra.mxu0 0.0
    %2231 = vmatpush.msra.mxu0 %v2120
    %2232 = vmatpush.msra.mxu0 %v2018
    %2233 = vmatpush.msra.mxu0 %v2080
    %2234 = vmatpush.msra.mxu0 %v2048
    %2235 = vmatpush.msra.mxu0 %v2016
    %2236 = vmatmul.f32.gmra.mxu0 %v2114
    %v2237 = vpop.f32.mrf.mxu0
    %v2238 = vadd.f32 0.0, %v2237
    %2239 = vdwg.mxu0
    %2240 = vmatpush.msra.mxu0 0.0
    %2241 = vmatpush.msra.mxu0 0.0
    %2242 = vmatpush.msra.mxu0 0.0
    %2243 = vmatpush.msra.mxu0 0.0
    %2244 = vmatpush.msra.mxu0 0.0
    %2245 = vmatpush.msra.mxu0 0.0
    %2246 = vmatpush.msra.mxu0 0.0
    %2247 = vmatpush.msra.mxu0 0.0
    %2248 = vmatpush.msra.mxu0 0.0
    %2249 = vmatpush.msra.mxu0 0.0
    %2250 = vmatpush.msra.mxu0 0.0
    %2251 = vmatpush.msra.mxu0 %v2122
    %2252 = vmatpush.msra.mxu0 %v2019
    %2253 = vmatpush.msra.mxu0 %v2081
    %2254 = vmatpush.msra.mxu0 %v2049
    %2255 = vmatpush.msra.mxu0 %v2017
    %2256 = vmatmul.f32.gmra.mxu0 %v2114
    %v2257 = vpop.f32.mrf.mxu0
    %v2258 = vadd.f32 0.0, %v2257
    %2259 = vdwg.mxu0
    %2260 = vmatpush.msra.mxu0 0.0
    %2261 = vmatpush.msra.mxu0 0.0
    %2262 = vmatpush.msra.mxu0 0.0
    %2263 = vmatpush.msra.mxu0 0.0
    %2264 = vmatpush.msra.mxu0 0.0
    %2265 = vmatpush.msra.mxu0 0.0
    %2266 = vmatpush.msra.mxu0 0.0
    %2267 = vmatpush.msra.mxu0 0.0
    %2268 = vmatpush.msra.mxu0 0.0
    %2269 = vmatpush.msra.mxu0 0.0
    %2270 = vmatpush.msra.mxu0 0.0
    %2271 = vmatpush.msra.mxu0 %v2124
    %2272 = vmatpush.msra.mxu0 %v2020
    %2273 = vmatpush.msra.mxu0 %v2082
    %2274 = vmatpush.msra.mxu0 %v2050
    %2275 = vmatpush.msra.mxu0 %v2018
    %2276 = vmatmul.f32.gmra.mxu0 %v2114
    %v2277 = vpop.f32.mrf.mxu0
    %v2278 = vadd.f32 0.0, %v2277
    %2279 = vdwg.mxu0
    %2280 = vmatpush.msra.mxu0 0.0
    %2281 = vmatpush.msra.mxu0 0.0
    %2282 = vmatpush.msra.mxu0 0.0
    %2283 = vmatpush.msra.mxu0 0.0
    %2284 = vmatpush.msra.mxu0 0.0
    %2285 = vmatpush.msra.mxu0 0.0
    %2286 = vmatpush.msra.mxu0 0.0
    %2287 = vmatpush.msra.mxu0 0.0
    %2288 = vmatpush.msra.mxu0 0.0
    %2289 = vmatpush.msra.mxu0 0.0
    %2290 = vmatpush.msra.mxu0 0.0
    %2291 = vmatpush.msra.mxu0 %v2126
    %2292 = vmatpush.msra.mxu0 %v2021
    %2293 = vmatpush.msra.mxu0 %v2083
    %2294 = vmatpush.msra.mxu0 %v2051
    %2295 = vmatpush.msra.mxu0 %v2019
    %2296 = vmatmul.f32.gmra.mxu0 %v2114
    %v2297 = vpop.f32.mrf.mxu0
    %v2298 = vadd.f32 0.0, %v2297
    %2299 = vdwg.mxu0
    %2300 = vmatpush.msra.mxu0 0.0
    %2301 = vmatpush.msra.mxu0 0.0
    %2302 = vmatpush.msra.mxu0 0.0
    %2303 = vmatpush.msra.mxu0 0.0
    %2304 = vmatpush.msra.mxu0 0.0
    %2305 = vmatpush.msra.mxu0 0.0
    %2306 = vmatpush.msra.mxu0 0.0
    %2307 = vmatpush.msra.mxu0 0.0
    %2308 = vmatpush.msra.mxu0 0.0
    %2309 = vmatpush.msra.mxu0 0.0
    %2310 = vmatpush.msra.mxu0 0.0
    %2311 = vmatpush.msra.mxu0 %v2128
    %2312 = vmatpush.msra.mxu0 %v2022
    %2313 = vmatpush.msra.mxu0 %v2084
    %2314 = vmatpush.msra.mxu0 %v2052
    %2315 = vmatpush.msra.mxu0 %v2020
    %2316 = vmatmul.f32.gmra.mxu0 %v2114
    %v2317 = vpop.f32.mrf.mxu0
    %v2318 = vadd.f32 0.0, %v2317
    %2319 = vdwg.mxu0
    %2320 = vmatpush.msra.mxu0 0.0
    %2321 = vmatpush.msra.mxu0 0.0
    %2322 = vmatpush.msra.mxu0 0.0
    %2323 = vmatpush.msra.mxu0 0.0
    %2324 = vmatpush.msra.mxu0 0.0
    %2325 = vmatpush.msra.mxu0 0.0
    %2326 = vmatpush.msra.mxu0 0.0
    %2327 = vmatpush.msra.mxu0 0.0
    %2328 = vmatpush.msra.mxu0 0.0
    %2329 = vmatpush.msra.mxu0 0.0
    %2330 = vmatpush.msra.mxu0 0.0
    %2331 = vmatpush.msra.mxu0 %v2130
    %2332 = vmatpush.msra.mxu0 %v2023
    %2333 = vmatpush.msra.mxu0 %v2085
    %2334 = vmatpush.msra.mxu0 %v2053
    %2335 = vmatpush.msra.mxu0 %v2021
    %2336 = vmatmul.f32.gmra.mxu0 %v2114
    %v2337 = vpop.f32.mrf.mxu0
    %v2338 = vadd.f32 0.0, %v2337
    %2339 = vdwg.mxu0
    %2340 = vmatpush.msra.mxu0 0.0
    %2341 = vmatpush.msra.mxu0 0.0
    %2342 = vmatpush.msra.mxu0 0.0
    %2343 = vmatpush.msra.mxu0 0.0
    %2344 = vmatpush.msra.mxu0 0.0
    %2345 = vmatpush.msra.mxu0 0.0
    %2346 = vmatpush.msra.mxu0 0.0
    %2347 = vmatpush.msra.mxu0 0.0
    %2348 = vmatpush.msra.mxu0 0.0
    %2349 = vmatpush.msra.mxu0 0.0
    %2350 = vmatpush.msra.mxu0 0.0
    %2351 = vmatpush.msra.mxu0 %v2132
    %2352 = vmatpush.msra.mxu0 %v2024
    %2353 = vmatpush.msra.mxu0 %v2086
    %2354 = vmatpush.msra.mxu0 %v2054
    %2355 = vmatpush.msra.mxu0 %v2022
    %2356 = vmatmul.f32.gmra.mxu0 %v2114
    %v2357 = vpop.f32.mrf.mxu0
    %v2358 = vadd.f32 0.0, %v2357
    %2359 = vdwg.mxu0
    %2360 = vmatpush.msra.mxu0 0.0
    %2361 = vmatpush.msra.mxu0 0.0
    %2362 = vmatpush.msra.mxu0 0.0
    %2363 = vmatpush.msra.mxu0 0.0
    %2364 = vmatpush.msra.mxu0 0.0
    %2365 = vmatpush.msra.mxu0 0.0
    %2366 = vmatpush.msra.mxu0 0.0
    %2367 = vmatpush.msra.mxu0 0.0
    %2368 = vmatpush.msra.mxu0 0.0
    %2369 = vmatpush.msra.mxu0 0.0
    %2370 = vmatpush.msra.mxu0 0.0
    %2371 = vmatpush.msra.mxu0 %v2134
    %2372 = vmatpush.msra.mxu0 %v2025
    %2373 = vmatpush.msra.mxu0 %v2087
    %2374 = vmatpush.msra.mxu0 %v2055
    %2375 = vmatpush.msra.mxu0 %v2023
    %2376 = vmatmul.f32.gmra.mxu0 %v2114
    %v2377 = vpop.f32.mrf.mxu0
    %v2378 = vadd.f32 0.0, %v2377
    %2379 = vdwg.mxu0
    %2380 = vmatpush.msra.mxu0 0.0
    %2381 = vmatpush.msra.mxu0 0.0
    %2382 = vmatpush.msra.mxu0 0.0
    %2383 = vmatpush.msra.mxu0 0.0
    %2384 = vmatpush.msra.mxu0 0.0
    %2385 = vmatpush.msra.mxu0 0.0
    %2386 = vmatpush.msra.mxu0 0.0
    %2387 = vmatpush.msra.mxu0 0.0
    %2388 = vmatpush.msra.mxu0 0.0
    %2389 = vmatpush.msra.mxu0 0.0
    %2390 = vmatpush.msra.mxu0 0.0
    %2391 = vmatpush.msra.mxu0 %v2136
    %2392 = vmatpush.msra.mxu0 %v2026
    %2393 = vmatpush.msra.mxu0 %v2088
    %2394 = vmatpush.msra.mxu0 %v2056
    %2395 = vmatpush.msra.mxu0 %v2024
    %2396 = vmatmul.f32.gmra.mxu0 %v2114
    %v2397 = vpop.f32.mrf.mxu0
    %v2398 = vadd.f32 0.0, %v2397
    %2399 = vdwg.mxu0
    %2400 = vmatpush.msra.mxu0 0.0
    %2401 = vmatpush.msra.mxu0 0.0
    %2402 = vmatpush.msra.mxu0 0.0
    %2403 = vmatpush.msra.mxu0 0.0
    %2404 = vmatpush.msra.mxu0 0.0
    %2405 = vmatpush.msra.mxu0 0.0
    %2406 = vmatpush.msra.mxu0 0.0
    %2407 = vmatpush.msra.mxu0 0.0
    %2408 = vmatpush.msra.mxu0 0.0
    %2409 = vmatpush.msra.mxu0 0.0
    %2410 = vmatpush.msra.mxu0 0.0
    %2411 = vmatpush.msra.mxu0 %v2138
    %2412 = vmatpush.msra.mxu0 %v2027
    %2413 = vmatpush.msra.mxu0 %v2089
    %2414 = vmatpush.msra.mxu0 %v2057
    %2415 = vmatpush.msra.mxu0 %v2025
    %2416 = vmatmul.f32.gmra.mxu0 %v2114
    %v2417 = vpop.f32.mrf.mxu0
    %v2418 = vadd.f32 0.0, %v2417
    %2419 = vdwg.mxu0
    %2420 = vmatpush.msra.mxu0 0.0
    %2421 = vmatpush.msra.mxu0 0.0
    %2422 = vmatpush.msra.mxu0 0.0
    %2423 = vmatpush.msra.mxu0 0.0
    %2424 = vmatpush.msra.mxu0 0.0
    %2425 = vmatpush.msra.mxu0 0.0
    %2426 = vmatpush.msra.mxu0 0.0
    %2427 = vmatpush.msra.mxu0 0.0
    %2428 = vmatpush.msra.mxu0 0.0
    %2429 = vmatpush.msra.mxu0 0.0
    %2430 = vmatpush.msra.mxu0 0.0
    %2431 = vmatpush.msra.mxu0 %v2140
    %2432 = vmatpush.msra.mxu0 %v2028
    %2433 = vmatpush.msra.mxu0 %v2090
    %2434 = vmatpush.msra.mxu0 %v2058
    %2435 = vmatpush.msra.mxu0 %v2026
    %2436 = vmatmul.f32.gmra.mxu0 %v2114
    %v2437 = vpop.f32.mrf.mxu0
    %v2438 = vadd.f32 0.0, %v2437
    %2439 = vdwg.mxu0
    %2440 = vmatpush.msra.mxu0 0.0
    %2441 = vmatpush.msra.mxu0 0.0
    %2442 = vmatpush.msra.mxu0 0.0
    %2443 = vmatpush.msra.mxu0 0.0
    %2444 = vmatpush.msra.mxu0 0.0
    %2445 = vmatpush.msra.mxu0 0.0
    %2446 = vmatpush.msra.mxu0 0.0
    %2447 = vmatpush.msra.mxu0 0.0
    %2448 = vmatpush.msra.mxu0 0.0
    %2449 = vmatpush.msra.mxu0 0.0
    %2450 = vmatpush.msra.mxu0 0.0
    %2451 = vmatpush.msra.mxu0 %v2142
    %2452 = vmatpush.msra.mxu0 %v2029
    %2453 = vmatpush.msra.mxu0 %v2091
    %2454 = vmatpush.msra.mxu0 %v2059
    %2455 = vmatpush.msra.mxu0 %v2027
    %2456 = vmatmul.f32.gmra.mxu0 %v2114
    %v2457 = vpop.f32.mrf.mxu0
    %v2458 = vadd.f32 0.0, %v2457
    %2459 = vdwg.mxu0
    %2460 = vmatpush.msra.mxu0 0.0
    %2461 = vmatpush.msra.mxu0 0.0
    %2462 = vmatpush.msra.mxu0 0.0
    %2463 = vmatpush.msra.mxu0 0.0
    %2464 = vmatpush.msra.mxu0 0.0
    %2465 = vmatpush.msra.mxu0 0.0
    %2466 = vmatpush.msra.mxu0 0.0
    %2467 = vmatpush.msra.mxu0 0.0
    %2468 = vmatpush.msra.mxu0 0.0
    %2469 = vmatpush.msra.mxu0 0.0
    %2470 = vmatpush.msra.mxu0 0.0
    %2471 = vmatpush.msra.mxu0 %v2144
    %2472 = vmatpush.msra.mxu0 %v2030
    %2473 = vmatpush.msra.mxu0 %v2092
    %2474 = vmatpush.msra.mxu0 %v2060
    %2475 = vmatpush.msra.mxu0 %v2028
    %2476 = vmatmul.f32.gmra.mxu0 %v2114
    %v2477 = vpop.f32.mrf.mxu0
    %v2478 = vadd.f32 0.0, %v2477
    %2479 = vdwg.mxu0
    %2480 = vmatpush.msra.mxu0 0.0
    %2481 = vmatpush.msra.mxu0 0.0
    %2482 = vmatpush.msra.mxu0 0.0
    %2483 = vmatpush.msra.mxu0 0.0
    %2484 = vmatpush.msra.mxu0 0.0
    %2485 = vmatpush.msra.mxu0 0.0
    %2486 = vmatpush.msra.mxu0 0.0
    %2487 = vmatpush.msra.mxu0 0.0
    %2488 = vmatpush.msra.mxu0 0.0
    %2489 = vmatpush.msra.mxu0 0.0
    %2490 = vmatpush.msra.mxu0 0.0
    %2491 = vmatpush.msra.mxu0 %v2146
    %2492 = vmatpush.msra.mxu0 %v2031
    %2493 = vmatpush.msra.mxu0 %v2093
    %2494 = vmatpush.msra.mxu0 %v2061
    %2495 = vmatpush.msra.mxu0 %v2029
    %2496 = vmatmul.f32.gmra.mxu0 %v2114
    %v2497 = vpop.f32.mrf.mxu0
    %v2498 = vadd.f32 0.0, %v2497
    %2499 = vdwg.mxu0
    %2500 = vmatpush.msra.mxu0 0.0
    %2501 = vmatpush.msra.mxu0 0.0
    %2502 = vmatpush.msra.mxu0 0.0
    %2503 = vmatpush.msra.mxu0 0.0
    %2504 = vmatpush.msra.mxu0 0.0
    %2505 = vmatpush.msra.mxu0 0.0
    %2506 = vmatpush.msra.mxu0 0.0
    %2507 = vmatpush.msra.mxu0 0.0
    %2508 = vmatpush.msra.mxu0 0.0
    %2509 = vmatpush.msra.mxu0 0.0
    %2510 = vmatpush.msra.mxu0 0.0
    %2511 = vmatpush.msra.mxu0 %v2148
    %2512 = vmatpush.msra.mxu0 %v2032
    %2513 = vmatpush.msra.mxu0 %v2094
    %2514 = vmatpush.msra.mxu0 %v2062
    %2515 = vmatpush.msra.mxu0 %v2030
    %2516 = vmatmul.f32.gmra.mxu0 %v2114
    %v2517 = vpop.f32.mrf.mxu0
    %v2518 = vadd.f32 0.0, %v2517
    %2519 = vdwg.mxu0
    %2520 = vmatpush.msra.mxu0 0.0
    %2521 = vmatpush.msra.mxu0 0.0
    %2522 = vmatpush.msra.mxu0 0.0
    %2523 = vmatpush.msra.mxu0 0.0
    %2524 = vmatpush.msra.mxu0 0.0
    %2525 = vmatpush.msra.mxu0 0.0
    %2526 = vmatpush.msra.mxu0 0.0
    %2527 = vmatpush.msra.mxu0 0.0
    %2528 = vmatpush.msra.mxu0 0.0
    %2529 = vmatpush.msra.mxu0 0.0
    %2530 = vmatpush.msra.mxu0 0.0
    %2531 = vmatpush.msra.mxu0 %v2150
    %2532 = vmatpush.msra.mxu0 %v2033
    %2533 = vmatpush.msra.mxu0 %v2095
    %2534 = vmatpush.msra.mxu0 %v2063
    %2535 = vmatpush.msra.mxu0 %v2031
    %2536 = vmatmul.f32.gmra.mxu0 %v2114
    %v2537 = vpop.f32.mrf.mxu0
    %v2538 = vadd.f32 0.0, %v2537
    %2539 = vdwg.mxu0
    %2540 = vmatpush.msra.mxu0 0.0
    %2541 = vmatpush.msra.mxu0 0.0
    %2542 = vmatpush.msra.mxu0 0.0
    %2543 = vmatpush.msra.mxu0 0.0
    %2544 = vmatpush.msra.mxu0 0.0
    %2545 = vmatpush.msra.mxu0 0.0
    %2546 = vmatpush.msra.mxu0 0.0
    %2547 = vmatpush.msra.mxu0 0.0
    %2548 = vmatpush.msra.mxu0 0.0
    %2549 = vmatpush.msra.mxu0 0.0
    %2550 = vmatpush.msra.mxu0 0.0
    %2551 = vmatpush.msra.mxu0 %v2152
    %2552 = vmatpush.msra.mxu0 %v2034
    %2553 = vmatpush.msra.mxu0 %v2096
    %2554 = vmatpush.msra.mxu0 %v2064
    %2555 = vmatpush.msra.mxu0 %v2032
    %2556 = vmatmul.f32.gmra.mxu0 %v2114
    %v2557 = vpop.f32.mrf.mxu0
    %v2558 = vadd.f32 0.0, %v2557
    %2559 = vdwg.mxu0
    %2560 = vmatpush.msra.mxu0 0.0
    %2561 = vmatpush.msra.mxu0 0.0
    %2562 = vmatpush.msra.mxu0 0.0
    %2563 = vmatpush.msra.mxu0 0.0
    %2564 = vmatpush.msra.mxu0 0.0
    %2565 = vmatpush.msra.mxu0 0.0
    %2566 = vmatpush.msra.mxu0 0.0
    %2567 = vmatpush.msra.mxu0 0.0
    %2568 = vmatpush.msra.mxu0 0.0
    %2569 = vmatpush.msra.mxu0 0.0
    %2570 = vmatpush.msra.mxu0 0.0
    %2571 = vmatpush.msra.mxu0 %v2154
    %2572 = vmatpush.msra.mxu0 %v2035
    %2573 = vmatpush.msra.mxu0 %v2097
    %2574 = vmatpush.msra.mxu0 %v2065
    %2575 = vmatpush.msra.mxu0 %v2033
    %2576 = vmatmul.f32.gmra.mxu0 %v2114
    %v2577 = vpop.f32.mrf.mxu0
    %v2578 = vadd.f32 0.0, %v2577
    %2579 = vdwg.mxu0
    %2580 = vmatpush.msra.mxu0 0.0
    %2581 = vmatpush.msra.mxu0 0.0
    %2582 = vmatpush.msra.mxu0 0.0
    %2583 = vmatpush.msra.mxu0 0.0
    %2584 = vmatpush.msra.mxu0 0.0
    %2585 = vmatpush.msra.mxu0 0.0
    %2586 = vmatpush.msra.mxu0 0.0
    %2587 = vmatpush.msra.mxu0 0.0
    %2588 = vmatpush.msra.mxu0 0.0
    %2589 = vmatpush.msra.mxu0 0.0
    %2590 = vmatpush.msra.mxu0 0.0
    %2591 = vmatpush.msra.mxu0 %v2156
    %2592 = vmatpush.msra.mxu0 %v2036
    %2593 = vmatpush.msra.mxu0 %v2098
    %2594 = vmatpush.msra.mxu0 %v2066
    %2595 = vmatpush.msra.mxu0 %v2034
    %2596 = vmatmul.f32.gmra.mxu0 %v2114
    %v2597 = vpop.f32.mrf.mxu0
    %v2598 = vadd.f32 0.0, %v2597
    %2599 = vdwg.mxu0
    %2600 = vmatpush.msra.mxu0 0.0
    %2601 = vmatpush.msra.mxu0 0.0
    %2602 = vmatpush.msra.mxu0 0.0
    %2603 = vmatpush.msra.mxu0 0.0
    %2604 = vmatpush.msra.mxu0 0.0
    %2605 = vmatpush.msra.mxu0 0.0
    %2606 = vmatpush.msra.mxu0 0.0
    %2607 = vmatpush.msra.mxu0 0.0
    %2608 = vmatpush.msra.mxu0 0.0
    %2609 = vmatpush.msra.mxu0 0.0
    %2610 = vmatpush.msra.mxu0 0.0
    %2611 = vmatpush.msra.mxu0 %v2158
    %2612 = vmatpush.msra.mxu0 %v2037
    %2613 = vmatpush.msra.mxu0 %v2099
    %2614 = vmatpush.msra.mxu0 %v2067
    %2615 = vmatpush.msra.mxu0 %v2035
    %2616 = vmatmul.f32.gmra.mxu0 %v2114
    %v2617 = vpop.f32.mrf.mxu0
    %v2618 = vadd.f32 0.0, %v2617
    %2619 = vdwg.mxu0
    %2620 = vmatpush.msra.mxu0 0.0
    %2621 = vmatpush.msra.mxu0 0.0
    %2622 = vmatpush.msra.mxu0 0.0
    %2623 = vmatpush.msra.mxu0 0.0
    %2624 = vmatpush.msra.mxu0 0.0
    %2625 = vmatpush.msra.mxu0 0.0
    %2626 = vmatpush.msra.mxu0 0.0
    %2627 = vmatpush.msra.mxu0 0.0
    %2628 = vmatpush.msra.mxu0 0.0
    %2629 = vmatpush.msra.mxu0 0.0
    %2630 = vmatpush.msra.mxu0 0.0
    %2631 = vmatpush.msra.mxu0 %v2160
    %2632 = vmatpush.msra.mxu0 %v2038
    %2633 = vmatpush.msra.mxu0 %v2100
    %2634 = vmatpush.msra.mxu0 %v2068
    %2635 = vmatpush.msra.mxu0 %v2036
    %2636 = vmatmul.f32.gmra.mxu0 %v2114
    %v2637 = vpop.f32.mrf.mxu0
    %v2638 = vadd.f32 0.0, %v2637
    %2639 = vdwg.mxu0
    %2640 = vmatpush.msra.mxu0 0.0
    %2641 = vmatpush.msra.mxu0 0.0
    %2642 = vmatpush.msra.mxu0 0.0
    %2643 = vmatpush.msra.mxu0 0.0
    %2644 = vmatpush.msra.mxu0 0.0
    %2645 = vmatpush.msra.mxu0 0.0
    %2646 = vmatpush.msra.mxu0 0.0
    %2647 = vmatpush.msra.mxu0 0.0
    %2648 = vmatpush.msra.mxu0 0.0
    %2649 = vmatpush.msra.mxu0 0.0
    %2650 = vmatpush.msra.mxu0 0.0
    %2651 = vmatpush.msra.mxu0 %v2162
    %2652 = vmatpush.msra.mxu0 %v2039
    %2653 = vmatpush.msra.mxu0 %v2101
    %2654 = vmatpush.msra.mxu0 %v2069
    %2655 = vmatpush.msra.mxu0 %v2037
    %2656 = vmatmul.f32.gmra.mxu0 %v2114
    %v2657 = vpop.f32.mrf.mxu0
    %v2658 = vadd.f32 0.0, %v2657
    %2659 = vdwg.mxu0
    %2660 = vmatpush.msra.mxu0 0.0
    %2661 = vmatpush.msra.mxu0 0.0
    %2662 = vmatpush.msra.mxu0 0.0
    %2663 = vmatpush.msra.mxu0 0.0
    %2664 = vmatpush.msra.mxu0 0.0
    %2665 = vmatpush.msra.mxu0 0.0
    %2666 = vmatpush.msra.mxu0 0.0
    %2667 = vmatpush.msra.mxu0 0.0
    %2668 = vmatpush.msra.mxu0 0.0
    %2669 = vmatpush.msra.mxu0 0.0
    %2670 = vmatpush.msra.mxu0 0.0
    %2671 = vmatpush.msra.mxu0 %v2164
    %2672 = vmatpush.msra.mxu0 %v2040
    %2673 = vmatpush.msra.mxu0 %v2102
    %2674 = vmatpush.msra.mxu0 %v2070
    %2675 = vmatpush.msra.mxu0 %v2038
    %2676 = vmatmul.f32.gmra.mxu0 %v2114
    %v2677 = vpop.f32.mrf.mxu0
    %v2678 = vadd.f32 0.0, %v2677
    %2679 = vdwg.mxu0
    %2680 = vmatpush.msra.mxu0 0.0
    %2681 = vmatpush.msra.mxu0 0.0
    %2682 = vmatpush.msra.mxu0 0.0
    %2683 = vmatpush.msra.mxu0 0.0
    %2684 = vmatpush.msra.mxu0 0.0
    %2685 = vmatpush.msra.mxu0 0.0
    %2686 = vmatpush.msra.mxu0 0.0
    %2687 = vmatpush.msra.mxu0 0.0
    %2688 = vmatpush.msra.mxu0 0.0
    %2689 = vmatpush.msra.mxu0 0.0
    %2690 = vmatpush.msra.mxu0 0.0
    %2691 = vmatpush.msra.mxu0 %v2166
    %2692 = vmatpush.msra.mxu0 %v2041
    %2693 = vmatpush.msra.mxu0 %v2103
    %2694 = vmatpush.msra.mxu0 %v2071
    %2695 = vmatpush.msra.mxu0 %v2039
    %2696 = vmatmul.f32.gmra.mxu0 %v2114
    %v2697 = vpop.f32.mrf.mxu0
    %v2698 = vadd.f32 0.0, %v2697
    %2699 = vdwg.mxu0
    %2700 = vmatpush.msra.mxu0 0.0
    %2701 = vmatpush.msra.mxu0 0.0
    %2702 = vmatpush.msra.mxu0 0.0
    %2703 = vmatpush.msra.mxu0 0.0
    %2704 = vmatpush.msra.mxu0 0.0
    %2705 = vmatpush.msra.mxu0 0.0
    %2706 = vmatpush.msra.mxu0 0.0
    %2707 = vmatpush.msra.mxu0 0.0
    %2708 = vmatpush.msra.mxu0 0.0
    %2709 = vmatpush.msra.mxu0 0.0
    %2710 = vmatpush.msra.mxu0 0.0
    %2711 = vmatpush.msra.mxu0 %v2168
    %2712 = vmatpush.msra.mxu0 %v2042
    %2713 = vmatpush.msra.mxu0 %v2104
    %2714 = vmatpush.msra.mxu0 %v2072
    %2715 = vmatpush.msra.mxu0 %v2040
    %2716 = vmatmul.f32.gmra.mxu0 %v2114
    %v2717 = vpop.f32.mrf.mxu0
    %v2718 = vadd.f32 0.0, %v2717
    %2719 = vdwg.mxu0
    %2720 = vmatpush.msra.mxu0 0.0
    %2721 = vmatpush.msra.mxu0 0.0
    %2722 = vmatpush.msra.mxu0 0.0
    %2723 = vmatpush.msra.mxu0 0.0
    %2724 = vmatpush.msra.mxu0 0.0
    %2725 = vmatpush.msra.mxu0 0.0
    %2726 = vmatpush.msra.mxu0 0.0
    %2727 = vmatpush.msra.mxu0 0.0
    %2728 = vmatpush.msra.mxu0 0.0
    %2729 = vmatpush.msra.mxu0 0.0
    %2730 = vmatpush.msra.mxu0 0.0
    %2731 = vmatpush.msra.mxu0 %v2170
    %2732 = vmatpush.msra.mxu0 %v2043
    %2733 = vmatpush.msra.mxu0 %v2105
    %2734 = vmatpush.msra.mxu0 %v2073
    %2735 = vmatpush.msra.mxu0 %v2041
    %2736 = vmatmul.f32.gmra.mxu0 %v2114
    %v2737 = vpop.f32.mrf.mxu0
    %v2738 = vadd.f32 0.0, %v2737
    %2739 = vdwg.mxu0
    %2740 = vmatpush.msra.mxu0 0.0
    %2741 = vmatpush.msra.mxu0 0.0
    %2742 = vmatpush.msra.mxu0 0.0
    %2743 = vmatpush.msra.mxu0 0.0
    %2744 = vmatpush.msra.mxu0 0.0
    %2745 = vmatpush.msra.mxu0 0.0
    %2746 = vmatpush.msra.mxu0 0.0
    %2747 = vmatpush.msra.mxu0 0.0
    %2748 = vmatpush.msra.mxu0 0.0
    %2749 = vmatpush.msra.mxu0 0.0
    %2750 = vmatpush.msra.mxu0 0.0
    %2751 = vmatpush.msra.mxu0 %v2172
    %2752 = vmatpush.msra.mxu0 %v2044
    %2753 = vmatpush.msra.mxu0 %v2106
    %2754 = vmatpush.msra.mxu0 %v2074
    %2755 = vmatpush.msra.mxu0 %v2042
    %2756 = vmatmul.f32.gmra.mxu0 %v2114
    %v2757 = vpop.f32.mrf.mxu0
    %v2758 = vadd.f32 0.0, %v2757
    %2759 = vdwg.mxu0
    %2760 = vmatpush.msra.mxu0 0.0
    %2761 = vmatpush.msra.mxu0 0.0
    %2762 = vmatpush.msra.mxu0 0.0
    %2763 = vmatpush.msra.mxu0 0.0
    %2764 = vmatpush.msra.mxu0 0.0
    %2765 = vmatpush.msra.mxu0 0.0
    %2766 = vmatpush.msra.mxu0 0.0
    %2767 = vmatpush.msra.mxu0 0.0
    %2768 = vmatpush.msra.mxu0 0.0
    %2769 = vmatpush.msra.mxu0 0.0
    %2770 = vmatpush.msra.mxu0 0.0
    %2771 = vmatpush.msra.mxu0 %v2174
    %2772 = vmatpush.msra.mxu0 %v2045
    %2773 = vmatpush.msra.mxu0 %v2107
    %2774 = vmatpush.msra.mxu0 %v2075
    %2775 = vmatpush.msra.mxu0 %v2043
    %2776 = vmatmul.f32.gmra.mxu0 %v2114
    %v2777 = vpop.f32.mrf.mxu0
    %v2778 = vadd.f32 0.0, %v2777
    %2779 = vdwg.mxu0
    %2780 = vmatpush.msra.mxu0 0.0
    %2781 = vmatpush.msra.mxu0 0.0
    %2782 = vmatpush.msra.mxu0 0.0
    %2783 = vmatpush.msra.mxu0 0.0
    %2784 = vmatpush.msra.mxu0 0.0
    %2785 = vmatpush.msra.mxu0 0.0
    %2786 = vmatpush.msra.mxu0 0.0
    %2787 = vmatpush.msra.mxu0 0.0
    %2788 = vmatpush.msra.mxu0 0.0
    %2789 = vmatpush.msra.mxu0 0.0
    %2790 = vmatpush.msra.mxu0 0.0
    %2791 = vmatpush.msra.mxu0 %v2176
    %2792 = vmatpush.msra.mxu0 %v2110
    %2793 = vmatpush.msra.mxu0 %v2108
    %2794 = vmatpush.msra.mxu0 %v2076
    %2795 = vmatpush.msra.mxu0 %v2044
    %2796 = vmatmul.f32.gmra.mxu0 %v2114
    %v2797 = vpop.f32.mrf.mxu0
    %v2798 = vadd.f32 0.0, %v2797
    %2799 = vdwg.mxu0
    %2800 = vmatpush.msra.mxu0 0.0
    %2801 = vmatpush.msra.mxu0 0.0
    %2802 = vmatpush.msra.mxu0 0.0
    %2803 = vmatpush.msra.mxu0 0.0
    %2804 = vmatpush.msra.mxu0 0.0
    %2805 = vmatpush.msra.mxu0 0.0
    %2806 = vmatpush.msra.mxu0 0.0
    %2807 = vmatpush.msra.mxu0 0.0
    %2808 = vmatpush.msra.mxu0 0.0
    %2809 = vmatpush.msra.mxu0 0.0
    %2810 = vmatpush.msra.mxu0 0.0
    %2811 = vmatpush.msra.mxu0 %v2178
    %2812 = vmatpush.msra.mxu0 %v2111
    %2813 = vmatpush.msra.mxu0 %v2109
    %2814 = vmatpush.msra.mxu0 %v2077
    %2815 = vmatpush.msra.mxu0 %v2045
    %2816 = vmatmul.f32.gmra.mxu0 %v2114
    %v2817 = vpop.f32.mrf.mxu0
    %v2818 = vadd.f32 0.0, %v2817
    %2819 = vdwg.mxu0
    %v2820 = vsel %vm1343, 1, 0
    %v2821 = vsel %vm1344, 1, 0
    %v2822 = vsel %vm1345, 1, 0
    %v2823 = vsel %vm1346, 1, 0
    %v2824 = vsel %vm1347, 1, 0
    %v2825 = vsel %vm1348, 1, 0
    %v2826 = vsel %vm1349, 1, 0
    %v2827 = vsel %vm1350, 1, 0
    %v2828 = vsel %vm1351, 1, 0
    %v2829 = vsel %vm1352, 1, 0
    %v2830 = vsel %vm1353, 1, 0
    %v2831 = vsel %vm1354, 1, 0
    %v2832 = vsel %vm1355, 1, 0
    %v2833 = vsel %vm1356, 1, 0
    %v2834 = vsel %vm1357, 1, 0
    %v2835 = vsel %vm1358, 1, 0
    %v2836 = vsel %vm1359, 1, 0
    %v2837 = vsel %vm1360, 1, 0
    %v2838 = vsel %vm1361, 1, 0
    %v2839 = vsel %vm1362, 1, 0
    %v2840 = vsel %vm1363, 1, 0
    %v2841 = vsel %vm1364, 1, 0
    %v2842 = vsel %vm1365, 1, 0
    %v2843 = vsel %vm1366, 1, 0
    %v2844 = vsel %vm1367, 1, 0
    %v2845 = vsel %vm1368, 1, 0
    %v2846 = vsel %vm1369, 1, 0
    %v2847 = vsel %vm1370, 1, 0
    %v2848 = vsel %vm1371, 1, 0
    %v2849 = vsel %vm1372, 1, 0
    %v2850 = vsel %vm1373, 1, 0
    %v2851 = vsel %vm1374, 1, 0
    %vm2852 = vcmp.eq.s32.totalorder %v2820, 1
    %vm2853 = vcmp.eq.s32.totalorder %v2821, 1
    %vm2854 = vcmp.eq.s32.totalorder %v2822, 1
    %vm2855 = vcmp.eq.s32.totalorder %v2823, 1
    %vm2856 = vcmp.eq.s32.totalorder %v2824, 1
    %vm2857 = vcmp.eq.s32.totalorder %v2825, 1
    %vm2858 = vcmp.eq.s32.totalorder %v2826, 1
    %vm2859 = vcmp.eq.s32.totalorder %v2827, 1
    %vm2860 = vcmp.eq.s32.totalorder %v2828, 1
    %vm2861 = vcmp.eq.s32.totalorder %v2829, 1
    %vm2862 = vcmp.eq.s32.totalorder %v2830, 1
    %vm2863 = vcmp.eq.s32.totalorder %v2831, 1
    %vm2864 = vcmp.eq.s32.totalorder %v2832, 1
    %vm2865 = vcmp.eq.s32.totalorder %v2833, 1
    %vm2866 = vcmp.eq.s32.totalorder %v2834, 1
    %vm2867 = vcmp.eq.s32.totalorder %v2835, 1
    %vm2868 = vcmp.eq.s32.totalorder %v2836, 1
    %vm2869 = vcmp.eq.s32.totalorder %v2837, 1
    %vm2870 = vcmp.eq.s32.totalorder %v2838, 1
    %vm2871 = vcmp.eq.s32.totalorder %v2839, 1
    %vm2872 = vcmp.eq.s32.totalorder %v2840, 1
    %vm2873 = vcmp.eq.s32.totalorder %v2841, 1
    %vm2874 = vcmp.eq.s32.totalorder %v2842, 1
    %vm2875 = vcmp.eq.s32.totalorder %v2843, 1
    %vm2876 = vcmp.eq.s32.totalorder %v2844, 1
    %vm2877 = vcmp.eq.s32.totalorder %v2845, 1
    %vm2878 = vcmp.eq.s32.totalorder %v2846, 1
    %vm2879 = vcmp.eq.s32.totalorder %v2847, 1
    %vm2880 = vcmp.eq.s32.totalorder %v2848, 1
    %vm2881 = vcmp.eq.s32.totalorder %v2849, 1
    %vm2882 = vcmp.eq.s32.totalorder %v2850, 1
    %vm2883 = vcmp.eq.s32.totalorder %v2851, 1
    %v2884 = vsel %vm2852, %v2198, 0.0
    %v2885 = vsel %vm2853, %v2218, 0.0
    %v2886 = vsel %vm2854, %v2238, 0.0
    %v2887 = vsel %vm2855, %v2258, 0.0
    %v2888 = vsel %vm2856, %v2278, 0.0
    %v2889 = vsel %vm2857, %v2298, 0.0
    %v2890 = vsel %vm2858, %v2318, 0.0
    %v2891 = vsel %vm2859, %v2338, 0.0
    %v2892 = vsel %vm2860, %v2358, 0.0
    %v2893 = vsel %vm2861, %v2378, 0.0
    %v2894 = vsel %vm2862, %v2398, 0.0
    %v2895 = vsel %vm2863, %v2418, 0.0
    %v2896 = vsel %vm2864, %v2438, 0.0
    %v2897 = vsel %vm2865, %v2458, 0.0
    %v2898 = vsel %vm2866, %v2478, 0.0
    %v2899 = vsel %vm2867, %v2498, 0.0
    %v2900 = vsel %vm2868, %v2518, 0.0
    %v2901 = vsel %vm2869, %v2538, 0.0
    %v2902 = vsel %vm2870, %v2558, 0.0
    %v2903 = vsel %vm2871, %v2578, 0.0
    %v2904 = vsel %vm2872, %v2598, 0.0
    %v2905 = vsel %vm2873, %v2618, 0.0
    %v2906 = vsel %vm2874, %v2638, 0.0
    %v2907 = vsel %vm2875, %v2658, 0.0
    %v2908 = vsel %vm2876, %v2678, 0.0
    %v2909 = vsel %vm2877, %v2698, 0.0
    %v2910 = vsel %vm2878, %v2718, 0.0
    %v2911 = vsel %vm2879, %v2738, 0.0
    %v2912 = vsel %vm2880, %v2758, 0.0
    %v2913 = vsel %vm2881, %v2778, 0.0
    %v2914 = vsel %vm2882, %v2798, 0.0
    %v2915 = vsel %vm2883, %v2818, 0.0
    %v2916 = vsel %vm1134, %v2884, 0.0
    %v2917 = vsel %vm1134, %v2885, 0.0
    %v2918 = vadd.f32 %v2916, %v2917
    %v2919 = vsel %vm1134, %v2886, 0.0
    %v2920 = vadd.f32 %v2918, %v2919
    %v2921 = vsel %vm1134, %v2887, 0.0
    %v2922 = vadd.f32 %v2920, %v2921
    %v2923 = vsel %vm1134, %v2888, 0.0
    %v2924 = vadd.f32 %v2922, %v2923
    %v2925 = vsel %vm1134, %v2889, 0.0
    %v2926 = vadd.f32 %v2924, %v2925
    %v2927 = vsel %vm1134, %v2890, 0.0
    %v2928 = vadd.f32 %v2926, %v2927
    %v2929 = vsel %vm1134, %v2891, 0.0
    %v2930 = vadd.f32 %v2928, %v2929
    %v2931 = vsel %vm1134, %v2892, 0.0
    %v2932 = vadd.f32 %v2930, %v2931
    %v2933 = vsel %vm1134, %v2893, 0.0
    %v2934 = vadd.f32 %v2932, %v2933
    %v2935 = vsel %vm1134, %v2894, 0.0
    %v2936 = vadd.f32 %v2934, %v2935
    %v2937 = vsel %vm1134, %v2895, 0.0
    %v2938 = vadd.f32 %v2936, %v2937
    %v2939 = vsel %vm1134, %v2896, 0.0
    %v2940 = vadd.f32 %v2938, %v2939
    %v2941 = vsel %vm1134, %v2897, 0.0
    %v2942 = vadd.f32 %v2940, %v2941
    %v2943 = vsel %vm1134, %v2898, 0.0
    %v2944 = vadd.f32 %v2942, %v2943
    %v2945 = vsel %vm1134, %v2899, 0.0
    %v2946 = vadd.f32 %v2944, %v2945
    %v2947 = vsel %vm1134, %v2900, 0.0
    %v2948 = vadd.f32 %v2946, %v2947
    %v2949 = vsel %vm1134, %v2901, 0.0
    %v2950 = vadd.f32 %v2948, %v2949
    %v2951 = vsel %vm1134, %v2902, 0.0
    %v2952 = vadd.f32 %v2950, %v2951
    %v2953 = vsel %vm1134, %v2903, 0.0
    %v2954 = vadd.f32 %v2952, %v2953
    %v2955 = vsel %vm1134, %v2904, 0.0
    %v2956 = vadd.f32 %v2954, %v2955
    %v2957 = vsel %vm1134, %v2905, 0.0
    %v2958 = vadd.f32 %v2956, %v2957
    %v2959 = vsel %vm1134, %v2906, 0.0
    %v2960 = vadd.f32 %v2958, %v2959
    %v2961 = vsel %vm1134, %v2907, 0.0
    %v2962 = vadd.f32 %v2960, %v2961
    %v2963 = vsel %vm1134, %v2908, 0.0
    %v2964 = vadd.f32 %v2962, %v2963
    %v2965 = vsel %vm1134, %v2909, 0.0
    %v2966 = vadd.f32 %v2964, %v2965
    %v2967 = vsel %vm1134, %v2910, 0.0
    %v2968 = vadd.f32 %v2966, %v2967
    %v2969 = vsel %vm1134, %v2911, 0.0
    %v2970 = vadd.f32 %v2968, %v2969
    %v2971 = vsel %vm1134, %v2912, 0.0
    %v2972 = vadd.f32 %v2970, %v2971
    %v2973 = vsel %vm1134, %v2913, 0.0
    %v2974 = vadd.f32 %v2972, %v2973
    %v2975 = vsel %vm1134, %v2914, 0.0
    %v2976 = vadd.f32 %v2974, %v2975
    %v2977 = vsel %vm1134, %v2915, 0.0
    %v2978 = vadd.f32 %v2976, %v2977
    %2979 = vadd.xlane.f32.xlu0 %v2978
    %v2980 = vpop.xlane.xlu0 %2979
    %v2981 = vmul.f32 %v2980, 0.0009765625
    %v2982 = vsub.f32 %v2198, %v2981
    %v2983 = vsub.f32 %v2218, %v2981
    %v2984 = vsub.f32 %v2238, %v2981
    %v2985 = vsub.f32 %v2258, %v2981
    %v2986 = vsub.f32 %v2278, %v2981
    %v2987 = vsub.f32 %v2298, %v2981
    %v2988 = vsub.f32 %v2318, %v2981
    %v2989 = vsub.f32 %v2338, %v2981
    %v2990 = vsub.f32 %v2358, %v2981
    %v2991 = vsub.f32 %v2378, %v2981
    %v2992 = vsub.f32 %v2398, %v2981
    %v2993 = vsub.f32 %v2418, %v2981
    %v2994 = vsub.f32 %v2438, %v2981
    %v2995 = vsub.f32 %v2458, %v2981
    %v2996 = vsub.f32 %v2478, %v2981
    %v2997 = vsub.f32 %v2498, %v2981
    %v2998 = vsub.f32 %v2518, %v2981
    %v2999 = vsub.f32 %v2538, %v2981
    %v3000 = vsub.f32 %v2558, %v2981
    %v3001 = vsub.f32 %v2578, %v2981
    %v3002 = vsub.f32 %v2598, %v2981
    %v3003 = vsub.f32 %v2618, %v2981
    %v3004 = vsub.f32 %v2638, %v2981
    %v3005 = vsub.f32 %v2658, %v2981
    %v3006 = vsub.f32 %v2678, %v2981
    %v3007 = vsub.f32 %v2698, %v2981
    %v3008 = vsub.f32 %v2718, %v2981
    %v3009 = vsub.f32 %v2738, %v2981
    %v3010 = vsub.f32 %v2758, %v2981
    %v3011 = vsub.f32 %v2778, %v2981
    %v3012 = vsub.f32 %v2798, %v2981
    %v3013 = vsub.f32 %v2818, %v2981
    %v3014 = vsel %vm2852, %v2982, 0.0
    %v3015 = vsel %vm2853, %v2983, 0.0
    %v3016 = vsel %vm2854, %v2984, 0.0
    %v3017 = vsel %vm2855, %v2985, 0.0
    %v3018 = vsel %vm2856, %v2986, 0.0
    %v3019 = vsel %vm2857, %v2987, 0.0
    %v3020 = vsel %vm2858, %v2988, 0.0
    %v3021 = vsel %vm2859, %v2989, 0.0
    %v3022 = vsel %vm2860, %v2990, 0.0
    %v3023 = vsel %vm2861, %v2991, 0.0
    %v3024 = vsel %vm2862, %v2992, 0.0
    %v3025 = vsel %vm2863, %v2993, 0.0
    %v3026 = vsel %vm2864, %v2994, 0.0
    %v3027 = vsel %vm2865, %v2995, 0.0
    %v3028 = vsel %vm2866, %v2996, 0.0
    %v3029 = vsel %vm2867, %v2997, 0.0
    %v3030 = vsel %vm2868, %v2998, 0.0
    %v3031 = vsel %vm2869, %v2999, 0.0
    %v3032 = vsel %vm2870, %v3000, 0.0
    %v3033 = vsel %vm2871, %v3001, 0.0
    %v3034 = vsel %vm2872, %v3002, 0.0
    %v3035 = vsel %vm2873, %v3003, 0.0
    %v3036 = vsel %vm2874, %v3004, 0.0
    %v3037 = vsel %vm2875, %v3005, 0.0
    %v3038 = vsel %vm2876, %v3006, 0.0
    %v3039 = vsel %vm2877, %v3007, 0.0
    %v3040 = vsel %vm2878, %v3008, 0.0
    %v3041 = vsel %vm2879, %v3009, 0.0
    %v3042 = vsel %vm2880, %v3010, 0.0
    %v3043 = vsel %vm2881, %v3011, 0.0
    %v3044 = vsel %vm2882, %v3012, 0.0
    %v3045 = vsel %vm2883, %v3013, 0.0
    %v3046 = vmul.f32 %v3014, %v3014
    %v3047 = vmul.f32 %v3015, %v3015
    %v3048 = vmul.f32 %v3016, %v3016
    %v3049 = vmul.f32 %v3017, %v3017
    %v3050 = vmul.f32 %v3018, %v3018
    %v3051 = vmul.f32 %v3019, %v3019
    %v3052 = vmul.f32 %v3020, %v3020
    %v3053 = vmul.f32 %v3021, %v3021
    %v3054 = vmul.f32 %v3022, %v3022
    %v3055 = vmul.f32 %v3023, %v3023
    %v3056 = vmul.f32 %v3024, %v3024
    %v3057 = vmul.f32 %v3025, %v3025
    %v3058 = vmul.f32 %v3026, %v3026
    %v3059 = vmul.f32 %v3027, %v3027
    %v3060 = vmul.f32 %v3028, %v3028
    %v3061 = vmul.f32 %v3029, %v3029
    %v3062 = vmul.f32 %v3030, %v3030
    %v3063 = vmul.f32 %v3031, %v3031
    %v3064 = vmul.f32 %v3032, %v3032
    %v3065 = vmul.f32 %v3033, %v3033
    %v3066 = vmul.f32 %v3034, %v3034
    %v3067 = vmul.f32 %v3035, %v3035
    %v3068 = vmul.f32 %v3036, %v3036
    %v3069 = vmul.f32 %v3037, %v3037
    %v3070 = vmul.f32 %v3038, %v3038
    %v3071 = vmul.f32 %v3039, %v3039
    %v3072 = vmul.f32 %v3040, %v3040
    %v3073 = vmul.f32 %v3041, %v3041
    %v3074 = vmul.f32 %v3042, %v3042
    %v3075 = vmul.f32 %v3043, %v3043
    %v3076 = vmul.f32 %v3044, %v3044
    %v3077 = vmul.f32 %v3045, %v3045
    %v3078 = vsel %vm1134, %v3046, 0.0
    %v3079 = vsel %vm1134, %v3047, 0.0
    %v3080 = vadd.f32 %v3078, %v3079
    %v3081 = vsel %vm1134, %v3048, 0.0
    %v3082 = vadd.f32 %v3080, %v3081
    %v3083 = vsel %vm1134, %v3049, 0.0
    %v3084 = vadd.f32 %v3082, %v3083
    %v3085 = vsel %vm1134, %v3050, 0.0
    %v3086 = vadd.f32 %v3084, %v3085
    %v3087 = vsel %vm1134, %v3051, 0.0
    %v3088 = vadd.f32 %v3086, %v3087
    %v3089 = vsel %vm1134, %v3052, 0.0
    %v3090 = vadd.f32 %v3088, %v3089
    %v3091 = vsel %vm1134, %v3053, 0.0
    %v3092 = vadd.f32 %v3090, %v3091
    %v3093 = vsel %vm1134, %v3054, 0.0
    %v3094 = vadd.f32 %v3092, %v3093
    %v3095 = vsel %vm1134, %v3055, 0.0
    %v3096 = vadd.f32 %v3094, %v3095
    %v3097 = vsel %vm1134, %v3056, 0.0
    %v3098 = vadd.f32 %v3096, %v3097
    %v3099 = vsel %vm1134, %v3057, 0.0
    %v3100 = vadd.f32 %v3098, %v3099
    %v3101 = vsel %vm1134, %v3058, 0.0
    %v3102 = vadd.f32 %v3100, %v3101
    %v3103 = vsel %vm1134, %v3059, 0.0
    %v3104 = vadd.f32 %v3102, %v3103
    %v3105 = vsel %vm1134, %v3060, 0.0
    %v3106 = vadd.f32 %v3104, %v3105
    %v3107 = vsel %vm1134, %v3061, 0.0
    %v3108 = vadd.f32 %v3106, %v3107
    %v3109 = vsel %vm1134, %v3062, 0.0
    %v3110 = vadd.f32 %v3108, %v3109
    %v3111 = vsel %vm1134, %v3063, 0.0
    %v3112 = vadd.f32 %v3110, %v3111
    %v3113 = vsel %vm1134, %v3064, 0.0
    %v3114 = vadd.f32 %v3112, %v3113
    %v3115 = vsel %vm1134, %v3065, 0.0
    %v3116 = vadd.f32 %v3114, %v3115
    %v3117 = vsel %vm1134, %v3066, 0.0
    %v3118 = vadd.f32 %v3116, %v3117
    %v3119 = vsel %vm1134, %v3067, 0.0
    %v3120 = vadd.f32 %v3118, %v3119
    %v3121 = vsel %vm1134, %v3068, 0.0
    %v3122 = vadd.f32 %v3120, %v3121
    %v3123 = vsel %vm1134, %v3069, 0.0
    %v3124 = vadd.f32 %v3122, %v3123
    %v3125 = vsel %vm1134, %v3070, 0.0
    %v3126 = vadd.f32 %v3124, %v3125
    %v3127 = vsel %vm1134, %v3071, 0.0
    %v3128 = vadd.f32 %v3126, %v3127
    %v3129 = vsel %vm1134, %v3072, 0.0
    %v3130 = vadd.f32 %v3128, %v3129
    %v3131 = vsel %vm1134, %v3073, 0.0
    %v3132 = vadd.f32 %v3130, %v3131
    %v3133 = vsel %vm1134, %v3074, 0.0
    %v3134 = vadd.f32 %v3132, %v3133
    %v3135 = vsel %vm1134, %v3075, 0.0
    %v3136 = vadd.f32 %v3134, %v3135
    %v3137 = vsel %vm1134, %v3076, 0.0
    %v3138 = vadd.f32 %v3136, %v3137
    %v3139 = vsel %vm1134, %v3077, 0.0
    %v3140 = vadd.f32 %v3138, %v3139
    %3141 = vadd.xlane.f32.xlu0 %v3140
    %v3142 = vpop.xlane.xlu0 %3141
    %v3143 = vmul.f32 %v3142, 0.0009765625
    %v3144 = vadd.f32 %v3143, 1e-05
    %v3145 = vrsqrt.pop %v3144
    %v3146 = vmul.f32 %v3145, %v3144
    %v3147 = vmul.f32 %v3146, %v3145
    %v3148 = vmul.f32 0.5, %v3147
    %v3149 = vsub.f32 1.5, %v3148
    %v3150 = vmul.f32 %v3145, %v3149
    %vm3151 = vweird.f32 %v3144
    %vm3152 = vweird.f32 %v3145
    %vm3153 = vmor %vm3151, %vm3152
    %v3154 = vsel %vm3153, %v3145, %v3150
    %v3155 = vmul.f32 %v2982, %v3154
    %v3156 = vmul.f32 %v2983, %v3154
    %v3157 = vmul.f32 %v2984, %v3154
    %v3158 = vmul.f32 %v2985, %v3154
    %v3159 = vmul.f32 %v2986, %v3154
    %v3160 = vmul.f32 %v2987, %v3154
    %v3161 = vmul.f32 %v2988, %v3154
    %v3162 = vmul.f32 %v2989, %v3154
    %v3163 = vmul.f32 %v2990, %v3154
    %v3164 = vmul.f32 %v2991, %v3154
    %v3165 = vmul.f32 %v2992, %v3154
    %v3166 = vmul.f32 %v2993, %v3154
    %v3167 = vmul.f32 %v2994, %v3154
    %v3168 = vmul.f32 %v2995, %v3154
    %v3169 = vmul.f32 %v2996, %v3154
    %v3170 = vmul.f32 %v2997, %v3154
    %v3171 = vmul.f32 %v2998, %v3154
    %v3172 = vmul.f32 %v2999, %v3154
    %v3173 = vmul.f32 %v3000, %v3154
    %v3174 = vmul.f32 %v3001, %v3154
    %v3175 = vmul.f32 %v3002, %v3154
    %v3176 = vmul.f32 %v3003, %v3154
    %v3177 = vmul.f32 %v3004, %v3154
    %v3178 = vmul.f32 %v3005, %v3154
    %v3179 = vmul.f32 %v3006, %v3154
    %v3180 = vmul.f32 %v3007, %v3154
    %v3181 = vmul.f32 %v3008, %v3154
    %v3182 = vmul.f32 %v3009, %v3154
    %v3183 = vmul.f32 %v3010, %v3154
    %v3184 = vmul.f32 %v3011, %v3154
    %v3185 = vmul.f32 %v3012, %v3154
    %v3186 = vmul.f32 %v3013, %v3154
    %v3187 = vmax.f32 %v3155, 0.0
    %v3188 = vmax.f32 %v3156, 0.0
    %v3189 = vmax.f32 %v3157, 0.0
    %v3190 = vmax.f32 %v3158, 0.0
    %v3191 = vmax.f32 %v3159, 0.0
    %v3192 = vmax.f32 %v3160, 0.0
    %v3193 = vmax.f32 %v3161, 0.0
    %v3194 = vmax.f32 %v3162, 0.0
    %v3195 = vmax.f32 %v3163, 0.0
    %v3196 = vmax.f32 %v3164, 0.0
    %v3197 = vmax.f32 %v3165, 0.0
    %v3198 = vmax.f32 %v3166, 0.0
    %v3199 = vmax.f32 %v3167, 0.0
    %v3200 = vmax.f32 %v3168, 0.0
    %v3201 = vmax.f32 %v3169, 0.0
    %v3202 = vmax.f32 %v3170, 0.0
    %v3203 = vmax.f32 %v3171, 0.0
    %v3204 = vmax.f32 %v3172, 0.0
    %v3205 = vmax.f32 %v3173, 0.0
    %v3206 = vmax.f32 %v3174, 0.0
    %v3207 = vmax.f32 %v3175, 0.0
    %v3208 = vmax.f32 %v3176, 0.0
    %v3209 = vmax.f32 %v3177, 0.0
    %v3210 = vmax.f32 %v3178, 0.0
    %v3211 = vmax.f32 %v3179, 0.0
    %v3212 = vmax.f32 %v3180, 0.0
    %v3213 = vmax.f32 %v3181, 0.0
    %v3214 = vmax.f32 %v3182, 0.0
    %v3215 = vmax.f32 %v3183, 0.0
    %v3216 = vmax.f32 %v3184, 0.0
    %v3217 = vmax.f32 %v3185, 0.0
    %v3218 = vmax.f32 %v3186, 0.0
    %v3251 = vrot.slane %v3188, 4
    %v3252 = vrot.slane %v3190, 4
    %v3253 = vrot.slane %v3192, 4
    %v3254 = vrot.slane %v3194, 4
    %v3255 = vrot.slane %v3196, 4
    %v3256 = vrot.slane %v3198, 4
    %v3257 = vrot.slane %v3200, 4
    %v3258 = vrot.slane %v3202, 4
    %v3259 = vrot.slane %v3204, 4
    %v3260 = vrot.slane %v3206, 4
    %v3261 = vrot.slane %v3208, 4
    %v3262 = vrot.slane %v3210, 4
    %v3263 = vrot.slane %v3212, 4
    %v3264 = vrot.slane %v3214, 4
    %v3265 = vrot.slane %v3216, 4
    %v3266 = vrot.slane %v3218, 4
    %v3267 = vsel %vm1134, %v3187, %v3251
    %v3268 = vsel %vm1134, %v3189, %v3252
    %v3269 = vsel %vm1134, %v3191, %v3253
    %v3270 = vsel %vm1134, %v3193, %v3254
    %v3271 = vsel %vm1134, %v3195, %v3255
    %v3272 = vsel %vm1134, %v3197, %v3256
    %v3273 = vsel %vm1134, %v3199, %v3257
    %v3274 = vsel %vm1134, %v3201, %v3258
    %v3275 = vsel %vm1134, %v3203, %v3259
    %v3276 = vsel %vm1134, %v3205, %v3260
    %v3277 = vsel %vm1134, %v3207, %v3261
    %v3278 = vsel %vm1134, %v3209, %v3262
    %v3279 = vsel %vm1134, %v3211, %v3263
    %v3280 = vsel %vm1134, %v3213, %v3264
    %v3281 = vsel %vm1134, %v3215, %v3265
    %v3282 = vsel %vm1134, %v3217, %v3266
    %3299 = vst [vmem:[#allocation2] sm:$0xff] %v3267
    %3300 = vst [vmem:[#allocation2 + $0x8] sm:$0xff] %v3268
    %3301 = vst [vmem:[#allocation2 + $0x10] sm:$0xff] %v3269
    %3302 = vst [vmem:[#allocation2 + $0x18] sm:$0xff] %v3270
    %3303 = vst [vmem:[#allocation2 + $0x20] sm:$0xff] %v3271
    %3304 = vst [vmem:[#allocation2 + $0x28] sm:$0xff] %v3272
    %3305 = vst [vmem:[#allocation2 + $0x30] sm:$0xff] %v3273
    %3306 = vst [vmem:[#allocation2 + $0x38] sm:$0xff] %v3274
    %3307 = vst [vmem:[#allocation2 + $0x40] sm:$0xff] %v3275
    %3308 = vst [vmem:[#allocation2 + $0x48] sm:$0xff] %v3276
    %3309 = vst [vmem:[#allocation2 + $0x50] sm:$0xff] %v3277
    %3310 = vst [vmem:[#allocation2 + $0x58] sm:$0xff] %v3278
    %3311 = vst [vmem:[#allocation2 + $0x60] sm:$0xff] %v3279
    %3312 = vst [vmem:[#allocation2 + $0x68] sm:$0xff] %v3280
    %3313 = vst [vmem:[#allocation2 + $0x70] sm:$0xff] %v3281
    %3314 = vst [vmem:[#allocation2 + $0x78] sm:$0xff] %v3282
    %3316 = vrot.lane.b32.xlu0 %v1243, 127
    %v3317 = vpop.permute.xlu0 %3316
    %v3318 = vsel %vm1508, %v3317, %v1738
    %3320 = vrot.lane.b32.xlu0 %v1409, 126
    %v3321 = vpop.permute.xlu0 %3320
    %v3322 = vsel %vm1639, %v3321, %v1869
    %3326 = vrot.lane.b32.xlu0 %v1277, 127
    %v3327 = vpop.permute.xlu0 %3326
    %v3328 = vsel %vm1508, %v1802, %v3327
    %3330 = vrot.lane.b32.xlu0 %v1999, 126
    %v3331 = vpop.permute.xlu0 %3330
    %v3332 = vsel %vm1639, %v1933, %v3331
    %v3333 = vsel %vm1134, %v1409, %v3318
    %v3334 = vsel %vm1134, %v1410, %v1803
    %v3335 = vsel %vm1134, %v1411, %v1804
    %v3336 = vsel %vm1134, %v1412, %v1805
    %v3337 = vsel %vm1134, %v1413, %v1806
    %v3338 = vsel %vm1134, %v1414, %v1807
    %v3339 = vsel %vm1134, %v1415, %v1808
    %v3340 = vsel %vm1134, %v1416, %v1809
    %v3341 = vsel %vm1134, %v1417, %v1810
    %v3342 = vsel %vm1134, %v1418, %v1811
    %v3343 = vsel %vm1134, %v1419, %v1812
    %v3344 = vsel %vm1134, %v1420, %v1813
    %v3345 = vsel %vm1134, %v1421, %v1814
    %v3346 = vsel %vm1134, %v1422, %v1815
    %v3347 = vsel %vm1134, %v1423, %v1816
    %v3348 = vsel %vm1134, %v1424, %v1817
    %v3349 = vsel %vm1134, %v1425, %v1818
    %v3350 = vsel %vm1134, %v1426, %v1819
    %v3351 = vsel %vm1134, %v1427, %v1820
    %v3352 = vsel %vm1134, %v1428, %v1821
    %v3353 = vsel %vm1134, %v1429, %v1822
    %v3354 = vsel %vm1134, %v1430, %v1823
    %v3355 = vsel %vm1134, %v1431, %v1824
    %v3356 = vsel %vm1134, %v1432, %v1825
    %v3357 = vsel %vm1134, %v1433, %v1826
    %v3358 = vsel %vm1134, %v1434, %v1827
    %v3359 = vsel %vm1134, %v1435, %v1828
    %v3360 = vsel %vm1134, %v1436, %v1829
    %v3361 = vsel %vm1134, %v1437, %v1830
    %v3362 = vsel %vm1134, %v1438, %v1831
    %v3363 = vsel %vm1134, %v1439, %v1832
    %v3364 = vsel %vm1134, %v1440, %v1833
    %v3365 = vsel %vm1134, %v3322, %v1244
    %v3366 = vsel %vm1134, %v1934, %v1245
    %v3367 = vsel %vm1134, %v1935, %v1246
    %v3368 = vsel %vm1134, %v1936, %v1247
    %v3369 = vsel %vm1134, %v1937, %v1248
    %v3370 = vsel %vm1134, %v1938, %v1249
    %v3371 = vsel %vm1134, %v1939, %v1250
    %v3372 = vsel %vm1134, %v1940, %v1251
    %v3373 = vsel %vm1134, %v1941, %v1252
    %v3374 = vsel %vm1134, %v1942, %v1253
    %v3375 = vsel %vm1134, %v1943, %v1254
    %v3376 = vsel %vm1134, %v1944, %v1255
    %v3377 = vsel %vm1134, %v1945, %v1256
    %v3378 = vsel %vm1134, %v1946, %v1257
    %v3379 = vsel %vm1134, %v1947, %v1258
    %v3380 = vsel %vm1134, %v1948, %v1259
    %v3381 = vsel %vm1134, %v1949, %v1260
    %v3382 = vsel %vm1134, %v1950, %v1261
    %v3383 = vsel %vm1134, %v1951, %v1262
    %v3384 = vsel %vm1134, %v1952, %v1263
    %v3385 = vsel %vm1134, %v1953, %v1264
    %v3386 = vsel %vm1134, %v1954, %v1265
    %v3387 = vsel %vm1134, %v1955, %v1266
    %v3388 = vsel %vm1134, %v1956, %v1267
    %v3389 = vsel %vm1134, %v1957, %v1268
    %v3390 = vsel %vm1134, %v1958, %v1269
    %v3391 = vsel %vm1134, %v1959, %v1270
    %v3392 = vsel %vm1134, %v1960, %v1271
    %v3393 = vsel %vm1134, %v1961, %v1272
    %v3394 = vsel %vm1134, %v1962, %v1273
    %v3395 = vsel %vm1134, %v1963, %v1274
    %v3396 = vsel %vm1134, %v1964, %v1275
    %v3397 = vsel %vm1134, %v1510, %v1641
    %v3398 = vsel %vm1134, %v1511, %v1642
    %v3399 = vsel %vm1134, %v1512, %v1643
    %v3400 = vsel %vm1134, %v1513, %v1644
    %v3401 = vsel %vm1134, %v1514, %v1645
    %v3402 = vsel %vm1134, %v1515, %v1646
    %v3403 = vsel %vm1134, %v1516, %v1647
    %v3404 = vsel %vm1134, %v1517, %v1648
    %v3405 = vsel %vm1134, %v1518, %v1649
    %v3406 = vsel %vm1134, %v1519, %v1650
    %v3407 = vsel %vm1134, %v1520, %v1651
    %v3408 = vsel %vm1134, %v1521, %v1652
    %v3409 = vsel %vm1134, %v1522, %v1653
    %v3410 = vsel %vm1134, %v1523, %v1654
    %v3411 = vsel %vm1134, %v1524, %v1655
    %v3412 = vsel %vm1134, %v1525, %v1656
    %v3413 = vsel %vm1134, %v1526, %v1657
    %v3414 = vsel %vm1134, %v1527, %v1658
    %v3415 = vsel %vm1134, %v1528, %v1659
    %v3416 = vsel %vm1134, %v1529, %v1660
    %v3417 = vsel %vm1134, %v1530, %v1661
    %v3418 = vsel %vm1134, %v1531, %v1662
    %v3419 = vsel %vm1134, %v1532, %v1663
    %v3420 = vsel %vm1134, %v1533, %v1664
    %v3421 = vsel %vm1134, %v1534, %v1665
    %v3422 = vsel %vm1134, %v1535, %v1666
    %v3423 = vsel %vm1134, %v1536, %v1667
    %v3424 = vsel %vm1134, %v1537, %v1668
    %v3425 = vsel %vm1134, %v1538, %v1669
    %v3426 = vsel %vm1134, %v1539, %v1670
    %v3427 = vsel %vm1134, %v1540, %v1671
    %v3428 = vsel %vm1134, %v2004, %v2012
    %v3429 = vsel %vm1134, %v1441, %v1834
    %v3430 = vsel %vm1134, %v1867, %v3328
    %v3431 = vsel %vm1134, %v1935, 0
    %v3433 = vsel %vm1134, %v1936, 0
    %v3435 = vsel %vm1134, %v1937, 0
    %v3437 = vsel %vm1134, %v1938, 0
    %v3439 = vsel %vm1134, %v1939, 0
    %v3441 = vsel %vm1134, %v1940, 0
    %v3443 = vsel %vm1134, %v1941, 0
    %v3445 = vsel %vm1134, %v1942, 0
    %v3447 = vsel %vm1134, %v1943, 0
    %v3449 = vsel %vm1134, %v1944, 0
    %v3451 = vsel %vm1134, %v1945, 0
    %v3453 = vsel %vm1134, %v1946, 0
    %v3455 = vsel %vm1134, %v1947, 0
    %v3457 = vsel %vm1134, %v1948, 0
    %v3459 = vsel %vm1134, %v1949, 0
    %v3461 = vsel %vm1134, %v1950, 0
    %v3463 = vsel %vm1134, %v1951, 0
    %v3465 = vsel %vm1134, %v1952, 0
    %v3467 = vsel %vm1134, %v1953, 0
    %v3469 = vsel %vm1134, %v1954, 0
    %v3471 = vsel %vm1134, %v1955, 0
    %v3473 = vsel %vm1134, %v1956, 0
    %v3475 = vsel %vm1134, %v1957, 0
    %v3477 = vsel %vm1134, %v1958, 0
    %v3479 = vsel %vm1134, %v1959, 0
    %v3481 = vsel %vm1134, %v1960, 0
    %v3483 = vsel %vm1134, %v1961, 0
    %v3485 = vsel %vm1134, %v1962, 0
    %v3487 = vsel %vm1134, %v1963, 0
    %v3489 = vsel %vm1134, %v1964, 0
    %v3491 = vsel %vm1134, %v1965, 0
    %v3493 = vsel %vm1134, %v3332, 0
    %3495 = vmatpush.msra.mxu0 0.0
    %3496 = vmatpush.msra.mxu0 0.0
    %3497 = vmatpush.msra.mxu0 0.0
    %3498 = vmatpush.msra.mxu0 0.0
    %3499 = vmatpush.msra.mxu0 0.0
    %3500 = vmatpush.msra.mxu0 0.0
    %3501 = vmatpush.msra.mxu0 0.0
    %3502 = vmatpush.msra.mxu0 0.0
    %3503 = vmatpush.msra.mxu0 0.0
    %3504 = vmatpush.msra.mxu0 0.0
    %3505 = vmatpush.msra.mxu0 0.0
    %3506 = vmatpush.msra.mxu0 %v3431
    %3507 = vmatpush.msra.mxu0 %v3335
    %3508 = vmatpush.msra.mxu0 %v3397
    %3509 = vmatpush.msra.mxu0 %v3365
    %3510 = vmatpush.msra.mxu0 %v3333
    %3511 = vmatmul.f32.gmra.mxu0 %v2114
    %v3512 = vpop.f32.mrf.mxu0
    %v3513 = vadd.f32 0.0, %v3512
    %3514 = vdwg.mxu0
    %3515 = vmatpush.msra.mxu0 0.0
    %3516 = vmatpush.msra.mxu0 0.0
    %3517 = vmatpush.msra.mxu0 0.0
    %3518 = vmatpush.msra.mxu0 0.0
    %3519 = vmatpush.msra.mxu0 0.0
    %3520 = vmatpush.msra.mxu0 0.0
    %3521 = vmatpush.msra.mxu0 0.0
    %3522 = vmatpush.msra.mxu0 0.0
    %3523 = vmatpush.msra.mxu0 0.0
    %3524 = vmatpush.msra.mxu0 0.0
    %3525 = vmatpush.msra.mxu0 0.0
    %3526 = vmatpush.msra.mxu0 %v3433
    %3527 = vmatpush.msra.mxu0 %v3336
    %3528 = vmatpush.msra.mxu0 %v3398
    %3529 = vmatpush.msra.mxu0 %v3366
    %3530 = vmatpush.msra.mxu0 %v3334
    %3531 = vmatmul.f32.gmra.mxu0 %v2114
    %v3532 = vpop.f32.mrf.mxu0
    %v3533 = vadd.f32 0.0, %v3532
    %3534 = vdwg.mxu0
    %3535 = vmatpush.msra.mxu0 0.0
    %3536 = vmatpush.msra.mxu0 0.0
    %3537 = vmatpush.msra.mxu0 0.0
    %3538 = vmatpush.msra.mxu0 0.0
    %3539 = vmatpush.msra.mxu0 0.0
    %3540 = vmatpush.msra.mxu0 0.0
    %3541 = vmatpush.msra.mxu0 0.0
    %3542 = vmatpush.msra.mxu0 0.0
    %3543 = vmatpush.msra.mxu0 0.0
    %3544 = vmatpush.msra.mxu0 0.0
    %3545 = vmatpush.msra.mxu0 0.0
    %3546 = vmatpush.msra.mxu0 %v3435
    %3547 = vmatpush.msra.mxu0 %v3337
    %3548 = vmatpush.msra.mxu0 %v3399
    %3549 = vmatpush.msra.mxu0 %v3367
    %3550 = vmatpush.msra.mxu0 %v3335
    %3551 = vmatmul.f32.gmra.mxu0 %v2114
    %v3552 = vpop.f32.mrf.mxu0
    %v3553 = vadd.f32 0.0, %v3552
    %3554 = vdwg.mxu0
    %3555 = vmatpush.msra.mxu0 0.0
    %3556 = vmatpush.msra.mxu0 0.0
    %3557 = vmatpush.msra.mxu0 0.0
    %3558 = vmatpush.msra.mxu0 0.0
    %3559 = vmatpush.msra.mxu0 0.0
    %3560 = vmatpush.msra.mxu0 0.0
    %3561 = vmatpush.msra.mxu0 0.0
    %3562 = vmatpush.msra.mxu0 0.0
    %3563 = vmatpush.msra.mxu0 0.0
    %3564 = vmatpush.msra.mxu0 0.0
    %3565 = vmatpush.msra.mxu0 0.0
    %3566 = vmatpush.msra.mxu0 %v3437
    %3567 = vmatpush.msra.mxu0 %v3338
    %3568 = vmatpush.msra.mxu0 %v3400
    %3569 = vmatpush.msra.mxu0 %v3368
    %3570 = vmatpush.msra.mxu0 %v3336
    %3571 = vmatmul.f32.gmra.mxu0 %v2114
    %v3572 = vpop.f32.mrf.mxu0
    %v3573 = vadd.f32 0.0, %v3572
    %3574 = vdwg.mxu0
    %3575 = vmatpush.msra.mxu0 0.0
    %3576 = vmatpush.msra.mxu0 0.0
    %3577 = vmatpush.msra.mxu0 0.0
    %3578 = vmatpush.msra.mxu0 0.0
    %3579 = vmatpush.msra.mxu0 0.0
    %3580 = vmatpush.msra.mxu0 0.0
    %3581 = vmatpush.msra.mxu0 0.0
    %3582 = vmatpush.msra.mxu0 0.0
    %3583 = vmatpush.msra.mxu0 0.0
    %3584 = vmatpush.msra.mxu0 0.0
    %3585 = vmatpush.msra.mxu0 0.0
    %3586 = vmatpush.msra.mxu0 %v3439
    %3587 = vmatpush.msra.mxu0 %v3339
    %3588 = vmatpush.msra.mxu0 %v3401
    %3589 = vmatpush.msra.mxu0 %v3369
    %3590 = vmatpush.msra.mxu0 %v3337
    %3591 = vmatmul.f32.gmra.mxu0 %v2114
    %v3592 = vpop.f32.mrf.mxu0
    %v3593 = vadd.f32 0.0, %v3592
    %3594 = vdwg.mxu0
    %3595 = vmatpush.msra.mxu0 0.0
    %3596 = vmatpush.msra.mxu0 0.0
    %3597 = vmatpush.msra.mxu0 0.0
    %3598 = vmatpush.msra.mxu0 0.0
    %3599 = vmatpush.msra.mxu0 0.0
    %3600 = vmatpush.msra.mxu0 0.0
    %3601 = vmatpush.msra.mxu0 0.0
    %3602 = vmatpush.msra.mxu0 0.0
    %3603 = vmatpush.msra.mxu0 0.0
    %3604 = vmatpush.msra.mxu0 0.0
    %3605 = vmatpush.msra.mxu0 0.0
    %3606 = vmatpush.msra.mxu0 %v3441
    %3607 = vmatpush.msra.mxu0 %v3340
    %3608 = vmatpush.msra.mxu0 %v3402
    %3609 = vmatpush.msra.mxu0 %v3370
    %3610 = vmatpush.msra.mxu0 %v3338
    %3611 = vmatmul.f32.gmra.mxu0 %v2114
    %v3612 = vpop.f32.mrf.mxu0
    %v3613 = vadd.f32 0.0, %v3612
    %3614 = vdwg.mxu0
    %3615 = vmatpush.msra.mxu0 0.0
    %3616 = vmatpush.msra.mxu0 0.0
    %3617 = vmatpush.msra.mxu0 0.0
    %3618 = vmatpush.msra.mxu0 0.0
    %3619 = vmatpush.msra.mxu0 0.0
    %3620 = vmatpush.msra.mxu0 0.0
    %3621 = vmatpush.msra.mxu0 0.0
    %3622 = vmatpush.msra.mxu0 0.0
    %3623 = vmatpush.msra.mxu0 0.0
    %3624 = vmatpush.msra.mxu0 0.0
    %3625 = vmatpush.msra.mxu0 0.0
    %3626 = vmatpush.msra.mxu0 %v3443
    %3627 = vmatpush.msra.mxu0 %v3341
    %3628 = vmatpush.msra.mxu0 %v3403
    %3629 = vmatpush.msra.mxu0 %v3371
    %3630 = vmatpush.msra.mxu0 %v3339
    %3631 = vmatmul.f32.gmra.mxu0 %v2114
    %v3632 = vpop.f32.mrf.mxu0
    %v3633 = vadd.f32 0.0, %v3632
    %3634 = vdwg.mxu0
    %3635 = vmatpush.msra.mxu0 0.0
    %3636 = vmatpush.msra.mxu0 0.0
    %3637 = vmatpush.msra.mxu0 0.0
    %3638 = vmatpush.msra.mxu0 0.0
    %3639 = vmatpush.msra.mxu0 0.0
    %3640 = vmatpush.msra.mxu0 0.0
    %3641 = vmatpush.msra.mxu0 0.0
    %3642 = vmatpush.msra.mxu0 0.0
    %3643 = vmatpush.msra.mxu0 0.0
    %3644 = vmatpush.msra.mxu0 0.0
    %3645 = vmatpush.msra.mxu0 0.0
    %3646 = vmatpush.msra.mxu0 %v3445
    %3647 = vmatpush.msra.mxu0 %v3342
    %3648 = vmatpush.msra.mxu0 %v3404
    %3649 = vmatpush.msra.mxu0 %v3372
    %3650 = vmatpush.msra.mxu0 %v3340
    %3651 = vmatmul.f32.gmra.mxu0 %v2114
    %v3652 = vpop.f32.mrf.mxu0
    %v3653 = vadd.f32 0.0, %v3652
    %3654 = vdwg.mxu0
    %3655 = vmatpush.msra.mxu0 0.0
    %3656 = vmatpush.msra.mxu0 0.0
    %3657 = vmatpush.msra.mxu0 0.0
    %3658 = vmatpush.msra.mxu0 0.0
    %3659 = vmatpush.msra.mxu0 0.0
    %3660 = vmatpush.msra.mxu0 0.0
    %3661 = vmatpush.msra.mxu0 0.0
    %3662 = vmatpush.msra.mxu0 0.0
    %3663 = vmatpush.msra.mxu0 0.0
    %3664 = vmatpush.msra.mxu0 0.0
    %3665 = vmatpush.msra.mxu0 0.0
    %3666 = vmatpush.msra.mxu0 %v3447
    %3667 = vmatpush.msra.mxu0 %v3343
    %3668 = vmatpush.msra.mxu0 %v3405
    %3669 = vmatpush.msra.mxu0 %v3373
    %3670 = vmatpush.msra.mxu0 %v3341
    %3671 = vmatmul.f32.gmra.mxu0 %v2114
    %v3672 = vpop.f32.mrf.mxu0
    %v3673 = vadd.f32 0.0, %v3672
    %3674 = vdwg.mxu0
    %3675 = vmatpush.msra.mxu0 0.0
    %3676 = vmatpush.msra.mxu0 0.0
    %3677 = vmatpush.msra.mxu0 0.0
    %3678 = vmatpush.msra.mxu0 0.0
    %3679 = vmatpush.msra.mxu0 0.0
    %3680 = vmatpush.msra.mxu0 0.0
    %3681 = vmatpush.msra.mxu0 0.0
    %3682 = vmatpush.msra.mxu0 0.0
    %3683 = vmatpush.msra.mxu0 0.0
    %3684 = vmatpush.msra.mxu0 0.0
    %3685 = vmatpush.msra.mxu0 0.0
    %3686 = vmatpush.msra.mxu0 %v3449
    %3687 = vmatpush.msra.mxu0 %v3344
    %3688 = vmatpush.msra.mxu0 %v3406
    %3689 = vmatpush.msra.mxu0 %v3374
    %3690 = vmatpush.msra.mxu0 %v3342
    %3691 = vmatmul.f32.gmra.mxu0 %v2114
    %v3692 = vpop.f32.mrf.mxu0
    %v3693 = vadd.f32 0.0, %v3692
    %3694 = vdwg.mxu0
    %3695 = vmatpush.msra.mxu0 0.0
    %3696 = vmatpush.msra.mxu0 0.0
    %3697 = vmatpush.msra.mxu0 0.0
    %3698 = vmatpush.msra.mxu0 0.0
    %3699 = vmatpush.msra.mxu0 0.0
    %3700 = vmatpush.msra.mxu0 0.0
    %3701 = vmatpush.msra.mxu0 0.0
    %3702 = vmatpush.msra.mxu0 0.0
    %3703 = vmatpush.msra.mxu0 0.0
    %3704 = vmatpush.msra.mxu0 0.0
    %3705 = vmatpush.msra.mxu0 0.0
    %3706 = vmatpush.msra.mxu0 %v3451
    %3707 = vmatpush.msra.mxu0 %v3345
    %3708 = vmatpush.msra.mxu0 %v3407
    %3709 = vmatpush.msra.mxu0 %v3375
    %3710 = vmatpush.msra.mxu0 %v3343
    %3711 = vmatmul.f32.gmra.mxu0 %v2114
    %v3712 = vpop.f32.mrf.mxu0
    %v3713 = vadd.f32 0.0, %v3712
    %3714 = vdwg.mxu0
    %3715 = vmatpush.msra.mxu0 0.0
    %3716 = vmatpush.msra.mxu0 0.0
    %3717 = vmatpush.msra.mxu0 0.0
    %3718 = vmatpush.msra.mxu0 0.0
    %3719 = vmatpush.msra.mxu0 0.0
    %3720 = vmatpush.msra.mxu0 0.0
    %3721 = vmatpush.msra.mxu0 0.0
    %3722 = vmatpush.msra.mxu0 0.0
    %3723 = vmatpush.msra.mxu0 0.0
    %3724 = vmatpush.msra.mxu0 0.0
    %3725 = vmatpush.msra.mxu0 0.0
    %3726 = vmatpush.msra.mxu0 %v3453
    %3727 = vmatpush.msra.mxu0 %v3346
    %3728 = vmatpush.msra.mxu0 %v3408
    %3729 = vmatpush.msra.mxu0 %v3376
    %3730 = vmatpush.msra.mxu0 %v3344
    %3731 = vmatmul.f32.gmra.mxu0 %v2114
    %v3732 = vpop.f32.mrf.mxu0
    %v3733 = vadd.f32 0.0, %v3732
    %3734 = vdwg.mxu0
    %3735 = vmatpush.msra.mxu0 0.0
    %3736 = vmatpush.msra.mxu0 0.0
    %3737 = vmatpush.msra.mxu0 0.0
    %3738 = vmatpush.msra.mxu0 0.0
    %3739 = vmatpush.msra.mxu0 0.0
    %3740 = vmatpush.msra.mxu0 0.0
    %3741 = vmatpush.msra.mxu0 0.0
    %3742 = vmatpush.msra.mxu0 0.0
    %3743 = vmatpush.msra.mxu0 0.0
    %3744 = vmatpush.msra.mxu0 0.0
    %3745 = vmatpush.msra.mxu0 0.0
    %3746 = vmatpush.msra.mxu0 %v3455
    %3747 = vmatpush.msra.mxu0 %v3347
    %3748 = vmatpush.msra.mxu0 %v3409
    %3749 = vmatpush.msra.mxu0 %v3377
    %3750 = vmatpush.msra.mxu0 %v3345
    %3751 = vmatmul.f32.gmra.mxu0 %v2114
    %v3752 = vpop.f32.mrf.mxu0
    %v3753 = vadd.f32 0.0, %v3752
    %3754 = vdwg.mxu0
    %3755 = vmatpush.msra.mxu0 0.0
    %3756 = vmatpush.msra.mxu0 0.0
    %3757 = vmatpush.msra.mxu0 0.0
    %3758 = vmatpush.msra.mxu0 0.0
    %3759 = vmatpush.msra.mxu0 0.0
    %3760 = vmatpush.msra.mxu0 0.0
    %3761 = vmatpush.msra.mxu0 0.0
    %3762 = vmatpush.msra.mxu0 0.0
    %3763 = vmatpush.msra.mxu0 0.0
    %3764 = vmatpush.msra.mxu0 0.0
    %3765 = vmatpush.msra.mxu0 0.0
    %3766 = vmatpush.msra.mxu0 %v3457
    %3767 = vmatpush.msra.mxu0 %v3348
    %3768 = vmatpush.msra.mxu0 %v3410
    %3769 = vmatpush.msra.mxu0 %v3378
    %3770 = vmatpush.msra.mxu0 %v3346
    %3771 = vmatmul.f32.gmra.mxu0 %v2114
    %v3772 = vpop.f32.mrf.mxu0
    %v3773 = vadd.f32 0.0, %v3772
    %3774 = vdwg.mxu0
    %3775 = vmatpush.msra.mxu0 0.0
    %3776 = vmatpush.msra.mxu0 0.0
    %3777 = vmatpush.msra.mxu0 0.0
    %3778 = vmatpush.msra.mxu0 0.0
    %3779 = vmatpush.msra.mxu0 0.0
    %3780 = vmatpush.msra.mxu0 0.0
    %3781 = vmatpush.msra.mxu0 0.0
    %3782 = vmatpush.msra.mxu0 0.0
    %3783 = vmatpush.msra.mxu0 0.0
    %3784 = vmatpush.msra.mxu0 0.0
    %3785 = vmatpush.msra.mxu0 0.0
    %3786 = vmatpush.msra.mxu0 %v3459
    %3787 = vmatpush.msra.mxu0 %v3349
    %3788 = vmatpush.msra.mxu0 %v3411
    %3789 = vmatpush.msra.mxu0 %v3379
    %3790 = vmatpush.msra.mxu0 %v3347
    %3791 = vmatmul.f32.gmra.mxu0 %v2114
    %v3792 = vpop.f32.mrf.mxu0
    %v3793 = vadd.f32 0.0, %v3792
    %3794 = vdwg.mxu0
    %3795 = vmatpush.msra.mxu0 0.0
    %3796 = vmatpush.msra.mxu0 0.0
    %3797 = vmatpush.msra.mxu0 0.0
    %3798 = vmatpush.msra.mxu0 0.0
    %3799 = vmatpush.msra.mxu0 0.0
    %3800 = vmatpush.msra.mxu0 0.0
    %3801 = vmatpush.msra.mxu0 0.0
    %3802 = vmatpush.msra.mxu0 0.0
    %3803 = vmatpush.msra.mxu0 0.0
    %3804 = vmatpush.msra.mxu0 0.0
    %3805 = vmatpush.msra.mxu0 0.0
    %3806 = vmatpush.msra.mxu0 %v3461
    %3807 = vmatpush.msra.mxu0 %v3350
    %3808 = vmatpush.msra.mxu0 %v3412
    %3809 = vmatpush.msra.mxu0 %v3380
    %3810 = vmatpush.msra.mxu0 %v3348
    %3811 = vmatmul.f32.gmra.mxu0 %v2114
    %v3812 = vpop.f32.mrf.mxu0
    %v3813 = vadd.f32 0.0, %v3812
    %3814 = vdwg.mxu0
    %3815 = vmatpush.msra.mxu0 0.0
    %3816 = vmatpush.msra.mxu0 0.0
    %3817 = vmatpush.msra.mxu0 0.0
    %3818 = vmatpush.msra.mxu0 0.0
    %3819 = vmatpush.msra.mxu0 0.0
    %3820 = vmatpush.msra.mxu0 0.0
    %3821 = vmatpush.msra.mxu0 0.0
    %3822 = vmatpush.msra.mxu0 0.0
    %3823 = vmatpush.msra.mxu0 0.0
    %3824 = vmatpush.msra.mxu0 0.0
    %3825 = vmatpush.msra.mxu0 0.0
    %3826 = vmatpush.msra.mxu0 %v3463
    %3827 = vmatpush.msra.mxu0 %v3351
    %3828 = vmatpush.msra.mxu0 %v3413
    %3829 = vmatpush.msra.mxu0 %v3381
    %3830 = vmatpush.msra.mxu0 %v3349
    %3831 = vmatmul.f32.gmra.mxu0 %v2114
    %v3832 = vpop.f32.mrf.mxu0
    %v3833 = vadd.f32 0.0, %v3832
    %3834 = vdwg.mxu0
    %3835 = vmatpush.msra.mxu0 0.0
    %3836 = vmatpush.msra.mxu0 0.0
    %3837 = vmatpush.msra.mxu0 0.0
    %3838 = vmatpush.msra.mxu0 0.0
    %3839 = vmatpush.msra.mxu0 0.0
    %3840 = vmatpush.msra.mxu0 0.0
    %3841 = vmatpush.msra.mxu0 0.0
    %3842 = vmatpush.msra.mxu0 0.0
    %3843 = vmatpush.msra.mxu0 0.0
    %3844 = vmatpush.msra.mxu0 0.0
    %3845 = vmatpush.msra.mxu0 0.0
    %3846 = vmatpush.msra.mxu0 %v3465
    %3847 = vmatpush.msra.mxu0 %v3352
    %3848 = vmatpush.msra.mxu0 %v3414
    %3849 = vmatpush.msra.mxu0 %v3382
    %3850 = vmatpush.msra.mxu0 %v3350
    %3851 = vmatmul.f32.gmra.mxu0 %v2114
    %v3852 = vpop.f32.mrf.mxu0
    %v3853 = vadd.f32 0.0, %v3852
    %3854 = vdwg.mxu0
    %3855 = vmatpush.msra.mxu0 0.0
    %3856 = vmatpush.msra.mxu0 0.0
    %3857 = vmatpush.msra.mxu0 0.0
    %3858 = vmatpush.msra.mxu0 0.0
    %3859 = vmatpush.msra.mxu0 0.0
    %3860 = vmatpush.msra.mxu0 0.0
    %3861 = vmatpush.msra.mxu0 0.0
    %3862 = vmatpush.msra.mxu0 0.0
    %3863 = vmatpush.msra.mxu0 0.0
    %3864 = vmatpush.msra.mxu0 0.0
    %3865 = vmatpush.msra.mxu0 0.0
    %3866 = vmatpush.msra.mxu0 %v3467
    %3867 = vmatpush.msra.mxu0 %v3353
    %3868 = vmatpush.msra.mxu0 %v3415
    %3869 = vmatpush.msra.mxu0 %v3383
    %3870 = vmatpush.msra.mxu0 %v3351
    %3871 = vmatmul.f32.gmra.mxu0 %v2114
    %v3872 = vpop.f32.mrf.mxu0
    %v3873 = vadd.f32 0.0, %v3872
    %3874 = vdwg.mxu0
    %3875 = vmatpush.msra.mxu0 0.0
    %3876 = vmatpush.msra.mxu0 0.0
    %3877 = vmatpush.msra.mxu0 0.0
    %3878 = vmatpush.msra.mxu0 0.0
    %3879 = vmatpush.msra.mxu0 0.0
    %3880 = vmatpush.msra.mxu0 0.0
    %3881 = vmatpush.msra.mxu0 0.0
    %3882 = vmatpush.msra.mxu0 0.0
    %3883 = vmatpush.msra.mxu0 0.0
    %3884 = vmatpush.msra.mxu0 0.0
    %3885 = vmatpush.msra.mxu0 0.0
    %3886 = vmatpush.msra.mxu0 %v3469
    %3887 = vmatpush.msra.mxu0 %v3354
    %3888 = vmatpush.msra.mxu0 %v3416
    %3889 = vmatpush.msra.mxu0 %v3384
    %3890 = vmatpush.msra.mxu0 %v3352
    %3891 = vmatmul.f32.gmra.mxu0 %v2114
    %v3892 = vpop.f32.mrf.mxu0
    %v3893 = vadd.f32 0.0, %v3892
    %3894 = vdwg.mxu0
    %3895 = vmatpush.msra.mxu0 0.0
    %3896 = vmatpush.msra.mxu0 0.0
    %3897 = vmatpush.msra.mxu0 0.0
    %3898 = vmatpush.msra.mxu0 0.0
    %3899 = vmatpush.msra.mxu0 0.0
    %3900 = vmatpush.msra.mxu0 0.0
    %3901 = vmatpush.msra.mxu0 0.0
    %3902 = vmatpush.msra.mxu0 0.0
    %3903 = vmatpush.msra.mxu0 0.0
    %3904 = vmatpush.msra.mxu0 0.0
    %3905 = vmatpush.msra.mxu0 0.0
    %3906 = vmatpush.msra.mxu0 %v3471
    %3907 = vmatpush.msra.mxu0 %v3355
    %3908 = vmatpush.msra.mxu0 %v3417
    %3909 = vmatpush.msra.mxu0 %v3385
    %3910 = vmatpush.msra.mxu0 %v3353
    %3911 = vmatmul.f32.gmra.mxu0 %v2114
    %v3912 = vpop.f32.mrf.mxu0
    %v3913 = vadd.f32 0.0, %v3912
    %3914 = vdwg.mxu0
    %3915 = vmatpush.msra.mxu0 0.0
    %3916 = vmatpush.msra.mxu0 0.0
    %3917 = vmatpush.msra.mxu0 0.0
    %3918 = vmatpush.msra.mxu0 0.0
    %3919 = vmatpush.msra.mxu0 0.0
    %3920 = vmatpush.msra.mxu0 0.0
    %3921 = vmatpush.msra.mxu0 0.0
    %3922 = vmatpush.msra.mxu0 0.0
    %3923 = vmatpush.msra.mxu0 0.0
    %3924 = vmatpush.msra.mxu0 0.0
    %3925 = vmatpush.msra.mxu0 0.0
    %3926 = vmatpush.msra.mxu0 %v3473
    %3927 = vmatpush.msra.mxu0 %v3356
    %3928 = vmatpush.msra.mxu0 %v3418
    %3929 = vmatpush.msra.mxu0 %v3386
    %3930 = vmatpush.msra.mxu0 %v3354
    %3931 = vmatmul.f32.gmra.mxu0 %v2114
    %v3932 = vpop.f32.mrf.mxu0
    %v3933 = vadd.f32 0.0, %v3932
    %3934 = vdwg.mxu0
    %3935 = vmatpush.msra.mxu0 0.0
    %3936 = vmatpush.msra.mxu0 0.0
    %3937 = vmatpush.msra.mxu0 0.0
    %3938 = vmatpush.msra.mxu0 0.0
    %3939 = vmatpush.msra.mxu0 0.0
    %3940 = vmatpush.msra.mxu0 0.0
    %3941 = vmatpush.msra.mxu0 0.0
    %3942 = vmatpush.msra.mxu0 0.0
    %3943 = vmatpush.msra.mxu0 0.0
    %3944 = vmatpush.msra.mxu0 0.0
    %3945 = vmatpush.msra.mxu0 0.0
    %3946 = vmatpush.msra.mxu0 %v3475
    %3947 = vmatpush.msra.mxu0 %v3357
    %3948 = vmatpush.msra.mxu0 %v3419
    %3949 = vmatpush.msra.mxu0 %v3387
    %3950 = vmatpush.msra.mxu0 %v3355
    %3951 = vmatmul.f32.gmra.mxu0 %v2114
    %v3952 = vpop.f32.mrf.mxu0
    %v3953 = vadd.f32 0.0, %v3952
    %3954 = vdwg.mxu0
    %3955 = vmatpush.msra.mxu0 0.0
    %3956 = vmatpush.msra.mxu0 0.0
    %3957 = vmatpush.msra.mxu0 0.0
    %3958 = vmatpush.msra.mxu0 0.0
    %3959 = vmatpush.msra.mxu0 0.0
    %3960 = vmatpush.msra.mxu0 0.0
    %3961 = vmatpush.msra.mxu0 0.0
    %3962 = vmatpush.msra.mxu0 0.0
    %3963 = vmatpush.msra.mxu0 0.0
    %3964 = vmatpush.msra.mxu0 0.0
    %3965 = vmatpush.msra.mxu0 0.0
    %3966 = vmatpush.msra.mxu0 %v3477
    %3967 = vmatpush.msra.mxu0 %v3358
    %3968 = vmatpush.msra.mxu0 %v3420
    %3969 = vmatpush.msra.mxu0 %v3388
    %3970 = vmatpush.msra.mxu0 %v3356
    %3971 = vmatmul.f32.gmra.mxu0 %v2114
    %v3972 = vpop.f32.mrf.mxu0
    %v3973 = vadd.f32 0.0, %v3972
    %3974 = vdwg.mxu0
    %3975 = vmatpush.msra.mxu0 0.0
    %3976 = vmatpush.msra.mxu0 0.0
    %3977 = vmatpush.msra.mxu0 0.0
    %3978 = vmatpush.msra.mxu0 0.0
    %3979 = vmatpush.msra.mxu0 0.0
    %3980 = vmatpush.msra.mxu0 0.0
    %3981 = vmatpush.msra.mxu0 0.0
    %3982 = vmatpush.msra.mxu0 0.0
    %3983 = vmatpush.msra.mxu0 0.0
    %3984 = vmatpush.msra.mxu0 0.0
    %3985 = vmatpush.msra.mxu0 0.0
    %3986 = vmatpush.msra.mxu0 %v3479
    %3987 = vmatpush.msra.mxu0 %v3359
    %3988 = vmatpush.msra.mxu0 %v3421
    %3989 = vmatpush.msra.mxu0 %v3389
    %3990 = vmatpush.msra.mxu0 %v3357
    %3991 = vmatmul.f32.gmra.mxu0 %v2114
    %v3992 = vpop.f32.mrf.mxu0
    %v3993 = vadd.f32 0.0, %v3992
    %3994 = vdwg.mxu0
    %3995 = vmatpush.msra.mxu0 0.0
    %3996 = vmatpush.msra.mxu0 0.0
    %3997 = vmatpush.msra.mxu0 0.0
    %3998 = vmatpush.msra.mxu0 0.0
    %3999 = vmatpush.msra.mxu0 0.0
    %4000 = vmatpush.msra.mxu0 0.0
    %4001 = vmatpush.msra.mxu0 0.0
    %4002 = vmatpush.msra.mxu0 0.0
    %4003 = vmatpush.msra.mxu0 0.0
    %4004 = vmatpush.msra.mxu0 0.0
    %4005 = vmatpush.msra.mxu0 0.0
    %4006 = vmatpush.msra.mxu0 %v3481
    %4007 = vmatpush.msra.mxu0 %v3360
    %4008 = vmatpush.msra.mxu0 %v3422
    %4009 = vmatpush.msra.mxu0 %v3390
    %4010 = vmatpush.msra.mxu0 %v3358
    %4011 = vmatmul.f32.gmra.mxu0 %v2114
    %v4012 = vpop.f32.mrf.mxu0
    %v4013 = vadd.f32 0.0, %v4012
    %4014 = vdwg.mxu0
    %4015 = vmatpush.msra.mxu0 0.0
    %4016 = vmatpush.msra.mxu0 0.0
    %4017 = vmatpush.msra.mxu0 0.0
    %4018 = vmatpush.msra.mxu0 0.0
    %4019 = vmatpush.msra.mxu0 0.0
    %4020 = vmatpush.msra.mxu0 0.0
    %4021 = vmatpush.msra.mxu0 0.0
    %4022 = vmatpush.msra.mxu0 0.0
    %4023 = vmatpush.msra.mxu0 0.0
    %4024 = vmatpush.msra.mxu0 0.0
    %4025 = vmatpush.msra.mxu0 0.0
    %4026 = vmatpush.msra.mxu0 %v3483
    %4027 = vmatpush.msra.mxu0 %v3361
    %4028 = vmatpush.msra.mxu0 %v3423
    %4029 = vmatpush.msra.mxu0 %v3391
    %4030 = vmatpush.msra.mxu0 %v3359
    %4031 = vmatmul.f32.gmra.mxu0 %v2114
    %v4032 = vpop.f32.mrf.mxu0
    %v4033 = vadd.f32 0.0, %v4032
    %4034 = vdwg.mxu0
    %4035 = vmatpush.msra.mxu0 0.0
    %4036 = vmatpush.msra.mxu0 0.0
    %4037 = vmatpush.msra.mxu0 0.0
    %4038 = vmatpush.msra.mxu0 0.0
    %4039 = vmatpush.msra.mxu0 0.0
    %4040 = vmatpush.msra.mxu0 0.0
    %4041 = vmatpush.msra.mxu0 0.0
    %4042 = vmatpush.msra.mxu0 0.0
    %4043 = vmatpush.msra.mxu0 0.0
    %4044 = vmatpush.msra.mxu0 0.0
    %4045 = vmatpush.msra.mxu0 0.0
    %4046 = vmatpush.msra.mxu0 %v3485
    %4047 = vmatpush.msra.mxu0 %v3362
    %4048 = vmatpush.msra.mxu0 %v3424
    %4049 = vmatpush.msra.mxu0 %v3392
    %4050 = vmatpush.msra.mxu0 %v3360
    %4051 = vmatmul.f32.gmra.mxu0 %v2114
    %v4052 = vpop.f32.mrf.mxu0
    %v4053 = vadd.f32 0.0, %v4052
    %4054 = vdwg.mxu0
    %4055 = vmatpush.msra.mxu0 0.0
    %4056 = vmatpush.msra.mxu0 0.0
    %4057 = vmatpush.msra.mxu0 0.0
    %4058 = vmatpush.msra.mxu0 0.0
    %4059 = vmatpush.msra.mxu0 0.0
    %4060 = vmatpush.msra.mxu0 0.0
    %4061 = vmatpush.msra.mxu0 0.0
    %4062 = vmatpush.msra.mxu0 0.0
    %4063 = vmatpush.msra.mxu0 0.0
    %4064 = vmatpush.msra.mxu0 0.0
    %4065 = vmatpush.msra.mxu0 0.0
    %4066 = vmatpush.msra.mxu0 %v3487
    %4067 = vmatpush.msra.mxu0 %v3363
    %4068 = vmatpush.msra.mxu0 %v3425
    %4069 = vmatpush.msra.mxu0 %v3393
    %4070 = vmatpush.msra.mxu0 %v3361
    %4071 = vmatmul.f32.gmra.mxu0 %v2114
    %v4072 = vpop.f32.mrf.mxu0
    %v4073 = vadd.f32 0.0, %v4072
    %4074 = vdwg.mxu0
    %4075 = vmatpush.msra.mxu0 0.0
    %4076 = vmatpush.msra.mxu0 0.0
    %4077 = vmatpush.msra.mxu0 0.0
    %4078 = vmatpush.msra.mxu0 0.0
    %4079 = vmatpush.msra.mxu0 0.0
    %4080 = vmatpush.msra.mxu0 0.0
    %4081 = vmatpush.msra.mxu0 0.0
    %4082 = vmatpush.msra.mxu0 0.0
    %4083 = vmatpush.msra.mxu0 0.0
    %4084 = vmatpush.msra.mxu0 0.0
    %4085 = vmatpush.msra.mxu0 0.0
    %4086 = vmatpush.msra.mxu0 %v3489
    %4087 = vmatpush.msra.mxu0 %v3364
    %4088 = vmatpush.msra.mxu0 %v3426
    %4089 = vmatpush.msra.mxu0 %v3394
    %4090 = vmatpush.msra.mxu0 %v3362
    %4091 = vmatmul.f32.gmra.mxu0 %v2114
    %v4092 = vpop.f32.mrf.mxu0
    %v4093 = vadd.f32 0.0, %v4092
    %4094 = vdwg.mxu0
    %4095 = vmatpush.msra.mxu0 0.0
    %4096 = vmatpush.msra.mxu0 0.0
    %4097 = vmatpush.msra.mxu0 0.0
    %4098 = vmatpush.msra.mxu0 0.0
    %4099 = vmatpush.msra.mxu0 0.0
    %4100 = vmatpush.msra.mxu0 0.0
    %4101 = vmatpush.msra.mxu0 0.0
    %4102 = vmatpush.msra.mxu0 0.0
    %4103 = vmatpush.msra.mxu0 0.0
    %4104 = vmatpush.msra.mxu0 0.0
    %4105 = vmatpush.msra.mxu0 0.0
    %4106 = vmatpush.msra.mxu0 %v3491
    %4107 = vmatpush.msra.mxu0 %v3429
    %4108 = vmatpush.msra.mxu0 %v3427
    %4109 = vmatpush.msra.mxu0 %v3395
    %4110 = vmatpush.msra.mxu0 %v3363
    %4111 = vmatmul.f32.gmra.mxu0 %v2114
    %v4112 = vpop.f32.mrf.mxu0
    %v4113 = vadd.f32 0.0, %v4112
    %4114 = vdwg.mxu0
    %4115 = vmatpush.msra.mxu0 0.0
    %4116 = vmatpush.msra.mxu0 0.0
    %4117 = vmatpush.msra.mxu0 0.0
    %4118 = vmatpush.msra.mxu0 0.0
    %4119 = vmatpush.msra.mxu0 0.0
    %4120 = vmatpush.msra.mxu0 0.0
    %4121 = vmatpush.msra.mxu0 0.0
    %4122 = vmatpush.msra.mxu0 0.0
    %4123 = vmatpush.msra.mxu0 0.0
    %4124 = vmatpush.msra.mxu0 0.0
    %4125 = vmatpush.msra.mxu0 0.0
    %4126 = vmatpush.msra.mxu0 %v3493
    %4127 = vmatpush.msra.mxu0 %v3430
    %4128 = vmatpush.msra.mxu0 %v3428
    %4129 = vmatpush.msra.mxu0 %v3396
    %4130 = vmatpush.msra.mxu0 %v3364
    %4131 = vmatmul.f32.gmra.mxu0 %v2114
    %v4132 = vpop.f32.mrf.mxu0
    %v4133 = vadd.f32 0.0, %v4132
    %4134 = vdwg.mxu0
    %v4135 = vsel %vm2852, %v3513, 0.0
    %v4136 = vsel %vm2853, %v3533, 0.0
    %v4137 = vsel %vm2854, %v3553, 0.0
    %v4138 = vsel %vm2855, %v3573, 0.0
    %v4139 = vsel %vm2856, %v3593, 0.0
    %v4140 = vsel %vm2857, %v3613, 0.0
    %v4141 = vsel %vm2858, %v3633, 0.0
    %v4142 = vsel %vm2859, %v3653, 0.0
    %v4143 = vsel %vm2860, %v3673, 0.0
    %v4144 = vsel %vm2861, %v3693, 0.0
    %v4145 = vsel %vm2862, %v3713, 0.0
    %v4146 = vsel %vm2863, %v3733, 0.0
    %v4147 = vsel %vm2864, %v3753, 0.0
    %v4148 = vsel %vm2865, %v3773, 0.0
    %v4149 = vsel %vm2866, %v3793, 0.0
    %v4150 = vsel %vm2867, %v3813, 0.0
    %v4151 = vsel %vm2868, %v3833, 0.0
    %v4152 = vsel %vm2869, %v3853, 0.0
    %v4153 = vsel %vm2870, %v3873, 0.0
    %v4154 = vsel %vm2871, %v3893, 0.0
    %v4155 = vsel %vm2872, %v3913, 0.0
    %v4156 = vsel %vm2873, %v3933, 0.0
    %v4157 = vsel %vm2874, %v3953, 0.0
    %v4158 = vsel %vm2875, %v3973, 0.0
    %v4159 = vsel %vm2876, %v3993, 0.0
    %v4160 = vsel %vm2877, %v4013, 0.0
    %v4161 = vsel %vm2878, %v4033, 0.0
    %v4162 = vsel %vm2879, %v4053, 0.0
    %v4163 = vsel %vm2880, %v4073, 0.0
    %v4164 = vsel %vm2881, %v4093, 0.0
    %v4165 = vsel %vm2882, %v4113, 0.0
    %v4166 = vsel %vm2883, %v4133, 0.0
    %v4167 = vsel %vm1134, %v4135, 0.0
    %v4168 = vsel %vm1134, %v4136, 0.0
    %v4169 = vadd.f32 %v4167, %v4168
    %v4170 = vsel %vm1134, %v4137, 0.0
    %v4171 = vadd.f32 %v4169, %v4170
    %v4172 = vsel %vm1134, %v4138, 0.0
    %v4173 = vadd.f32 %v4171, %v4172
    %v4174 = vsel %vm1134, %v4139, 0.0
    %v4175 = vadd.f32 %v4173, %v4174
    %v4176 = vsel %vm1134, %v4140, 0.0
    %v4177 = vadd.f32 %v4175, %v4176
    %v4178 = vsel %vm1134, %v4141, 0.0
    %v4179 = vadd.f32 %v4177, %v4178
    %v4180 = vsel %vm1134, %v4142, 0.0
    %v4181 = vadd.f32 %v4179, %v4180
    %v4182 = vsel %vm1134, %v4143, 0.0
    %v4183 = vadd.f32 %v4181, %v4182
    %v4184 = vsel %vm1134, %v4144, 0.0
    %v4185 = vadd.f32 %v4183, %v4184
    %v4186 = vsel %vm1134, %v4145, 0.0
    %v4187 = vadd.f32 %v4185, %v4186
    %v4188 = vsel %vm1134, %v4146, 0.0
    %v4189 = vadd.f32 %v4187, %v4188
    %v4190 = vsel %vm1134, %v4147, 0.0
    %v4191 = vadd.f32 %v4189, %v4190
    %v4192 = vsel %vm1134, %v4148, 0.0
    %v4193 = vadd.f32 %v4191, %v4192
    %v4194 = vsel %vm1134, %v4149, 0.0
    %v4195 = vadd.f32 %v4193, %v4194
    %v4196 = vsel %vm1134, %v4150, 0.0
    %v4197 = vadd.f32 %v4195, %v4196
    %v4198 = vsel %vm1134, %v4151, 0.0
    %v4199 = vadd.f32 %v4197, %v4198
    %v4200 = vsel %vm1134, %v4152, 0.0
    %v4201 = vadd.f32 %v4199, %v4200
    %v4202 = vsel %vm1134, %v4153, 0.0
    %v4203 = vadd.f32 %v4201, %v4202
    %v4204 = vsel %vm1134, %v4154, 0.0
    %v4205 = vadd.f32 %v4203, %v4204
    %v4206 = vsel %vm1134, %v4155, 0.0
    %v4207 = vadd.f32 %v4205, %v4206
    %v4208 = vsel %vm1134, %v4156, 0.0
    %v4209 = vadd.f32 %v4207, %v4208
    %v4210 = vsel %vm1134, %v4157, 0.0
    %v4211 = vadd.f32 %v4209, %v4210
    %v4212 = vsel %vm1134, %v4158, 0.0
    %v4213 = vadd.f32 %v4211, %v4212
    %v4214 = vsel %vm1134, %v4159, 0.0
    %v4215 = vadd.f32 %v4213, %v4214
    %v4216 = vsel %vm1134, %v4160, 0.0
    %v4217 = vadd.f32 %v4215, %v4216
    %v4218 = vsel %vm1134, %v4161, 0.0
    %v4219 = vadd.f32 %v4217, %v4218
    %v4220 = vsel %vm1134, %v4162, 0.0
    %v4221 = vadd.f32 %v4219, %v4220
    %v4222 = vsel %vm1134, %v4163, 0.0
    %v4223 = vadd.f32 %v4221, %v4222
    %v4224 = vsel %vm1134, %v4164, 0.0
    %v4225 = vadd.f32 %v4223, %v4224
    %v4226 = vsel %vm1134, %v4165, 0.0
    %v4227 = vadd.f32 %v4225, %v4226
    %v4228 = vsel %vm1134, %v4166, 0.0
    %v4229 = vadd.f32 %v4227, %v4228
    %4230 = vadd.xlane.f32.xlu0 %v4229
    %v4231 = vpop.xlane.xlu0 %4230
    %v4232 = vmul.f32 %v4231, 0.0009765625
    %v4233 = vsub.f32 %v3513, %v4232
    %v4234 = vsub.f32 %v3533, %v4232
    %v4235 = vsub.f32 %v3553, %v4232
    %v4236 = vsub.f32 %v3573, %v4232
    %v4237 = vsub.f32 %v3593, %v4232
    %v4238 = vsub.f32 %v3613, %v4232
    %v4239 = vsub.f32 %v3633, %v4232
    %v4240 = vsub.f32 %v3653, %v4232
    %v4241 = vsub.f32 %v3673, %v4232
    %v4242 = vsub.f32 %v3693, %v4232
    %v4243 = vsub.f32 %v3713, %v4232
    %v4244 = vsub.f32 %v3733, %v4232
    %v4245 = vsub.f32 %v3753, %v4232
    %v4246 = vsub.f32 %v3773, %v4232
    %v4247 = vsub.f32 %v3793, %v4232
    %v4248 = vsub.f32 %v3813, %v4232
    %v4249 = vsub.f32 %v3833, %v4232
    %v4250 = vsub.f32 %v3853, %v4232
    %v4251 = vsub.f32 %v3873, %v4232
    %v4252 = vsub.f32 %v3893, %v4232
    %v4253 = vsub.f32 %v3913, %v4232
    %v4254 = vsub.f32 %v3933, %v4232
    %v4255 = vsub.f32 %v3953, %v4232
    %v4256 = vsub.f32 %v3973, %v4232
    %v4257 = vsub.f32 %v3993, %v4232
    %v4258 = vsub.f32 %v4013, %v4232
    %v4259 = vsub.f32 %v4033, %v4232
    %v4260 = vsub.f32 %v4053, %v4232
    %v4261 = vsub.f32 %v4073, %v4232
    %v4262 = vsub.f32 %v4093, %v4232
    %v4263 = vsub.f32 %v4113, %v4232
    %v4264 = vsub.f32 %v4133, %v4232
    %v4265 = vsel %vm2852, %v4233, 0.0
    %v4266 = vsel %vm2853, %v4234, 0.0
    %v4267 = vsel %vm2854, %v4235, 0.0
    %v4268 = vsel %vm2855, %v4236, 0.0
    %v4269 = vsel %vm2856, %v4237, 0.0
    %v4270 = vsel %vm2857, %v4238, 0.0
    %v4271 = vsel %vm2858, %v4239, 0.0
    %v4272 = vsel %vm2859, %v4240, 0.0
    %v4273 = vsel %vm2860, %v4241, 0.0
    %v4274 = vsel %vm2861, %v4242, 0.0
    %v4275 = vsel %vm2862, %v4243, 0.0
    %v4276 = vsel %vm2863, %v4244, 0.0
    %v4277 = vsel %vm2864, %v4245, 0.0
    %v4278 = vsel %vm2865, %v4246, 0.0
    %v4279 = vsel %vm2866, %v4247, 0.0
    %v4280 = vsel %vm2867, %v4248, 0.0
    %v4281 = vsel %vm2868, %v4249, 0.0
    %v4282 = vsel %vm2869, %v4250, 0.0
    %v4283 = vsel %vm2870, %v4251, 0.0
    %v4284 = vsel %vm2871, %v4252, 0.0
    %v4285 = vsel %vm2872, %v4253, 0.0
    %v4286 = vsel %vm2873, %v4254, 0.0
    %v4287 = vsel %vm2874, %v4255, 0.0
    %v4288 = vsel %vm2875, %v4256, 0.0
    %v4289 = vsel %vm2876, %v4257, 0.0
    %v4290 = vsel %vm2877, %v4258, 0.0
    %v4291 = vsel %vm2878, %v4259, 0.0
    %v4292 = vsel %vm2879, %v4260, 0.0
    %v4293 = vsel %vm2880, %v4261, 0.0
    %v4294 = vsel %vm2881, %v4262, 0.0
    %v4295 = vsel %vm2882, %v4263, 0.0
    %v4296 = vsel %vm2883, %v4264, 0.0
    %v4297 = vmul.f32 %v4265, %v4265
    %v4298 = vmul.f32 %v4266, %v4266
    %v4299 = vmul.f32 %v4267, %v4267
    %v4300 = vmul.f32 %v4268, %v4268
    %v4301 = vmul.f32 %v4269, %v4269
    %v4302 = vmul.f32 %v4270, %v4270
    %v4303 = vmul.f32 %v4271, %v4271
    %v4304 = vmul.f32 %v4272, %v4272
    %v4305 = vmul.f32 %v4273, %v4273
    %v4306 = vmul.f32 %v4274, %v4274
    %v4307 = vmul.f32 %v4275, %v4275
    %v4308 = vmul.f32 %v4276, %v4276
    %v4309 = vmul.f32 %v4277, %v4277
    %v4310 = vmul.f32 %v4278, %v4278
    %v4311 = vmul.f32 %v4279, %v4279
    %v4312 = vmul.f32 %v4280, %v4280
    %v4313 = vmul.f32 %v4281, %v4281
    %v4314 = vmul.f32 %v4282, %v4282
    %v4315 = vmul.f32 %v4283, %v4283
    %v4316 = vmul.f32 %v4284, %v4284
    %v4317 = vmul.f32 %v4285, %v4285
    %v4318 = vmul.f32 %v4286, %v4286
    %v4319 = vmul.f32 %v4287, %v4287
    %v4320 = vmul.f32 %v4288, %v4288
    %v4321 = vmul.f32 %v4289, %v4289
    %v4322 = vmul.f32 %v4290, %v4290
    %v4323 = vmul.f32 %v4291, %v4291
    %v4324 = vmul.f32 %v4292, %v4292
    %v4325 = vmul.f32 %v4293, %v4293
    %v4326 = vmul.f32 %v4294, %v4294
    %v4327 = vmul.f32 %v4295, %v4295
    %v4328 = vmul.f32 %v4296, %v4296
    %v4329 = vsel %vm1134, %v4297, 0.0
    %v4330 = vsel %vm1134, %v4298, 0.0
    %v4331 = vadd.f32 %v4329, %v4330
    %v4332 = vsel %vm1134, %v4299, 0.0
    %v4333 = vadd.f32 %v4331, %v4332
    %v4334 = vsel %vm1134, %v4300, 0.0
    %v4335 = vadd.f32 %v4333, %v4334
    %v4336 = vsel %vm1134, %v4301, 0.0
    %v4337 = vadd.f32 %v4335, %v4336
    %v4338 = vsel %vm1134, %v4302, 0.0
    %v4339 = vadd.f32 %v4337, %v4338
    %v4340 = vsel %vm1134, %v4303, 0.0
    %v4341 = vadd.f32 %v4339, %v4340
    %v4342 = vsel %vm1134, %v4304, 0.0
    %v4343 = vadd.f32 %v4341, %v4342
    %v4344 = vsel %vm1134, %v4305, 0.0
    %v4345 = vadd.f32 %v4343, %v4344
    %v4346 = vsel %vm1134, %v4306, 0.0
    %v4347 = vadd.f32 %v4345, %v4346
    %v4348 = vsel %vm1134, %v4307, 0.0
    %v4349 = vadd.f32 %v4347, %v4348
    %v4350 = vsel %vm1134, %v4308, 0.0
    %v4351 = vadd.f32 %v4349, %v4350
    %v4352 = vsel %vm1134, %v4309, 0.0
    %v4353 = vadd.f32 %v4351, %v4352
    %v4354 = vsel %vm1134, %v4310, 0.0
    %v4355 = vadd.f32 %v4353, %v4354
    %v4356 = vsel %vm1134, %v4311, 0.0
    %v4357 = vadd.f32 %v4355, %v4356
    %v4358 = vsel %vm1134, %v4312, 0.0
    %v4359 = vadd.f32 %v4357, %v4358
    %v4360 = vsel %vm1134, %v4313, 0.0
    %v4361 = vadd.f32 %v4359, %v4360
    %v4362 = vsel %vm1134, %v4314, 0.0
    %v4363 = vadd.f32 %v4361, %v4362
    %v4364 = vsel %vm1134, %v4315, 0.0
    %v4365 = vadd.f32 %v4363, %v4364
    %v4366 = vsel %vm1134, %v4316, 0.0
    %v4367 = vadd.f32 %v4365, %v4366
    %v4368 = vsel %vm1134, %v4317, 0.0
    %v4369 = vadd.f32 %v4367, %v4368
    %v4370 = vsel %vm1134, %v4318, 0.0
    %v4371 = vadd.f32 %v4369, %v4370
    %v4372 = vsel %vm1134, %v4319, 0.0
    %v4373 = vadd.f32 %v4371, %v4372
    %v4374 = vsel %vm1134, %v4320, 0.0
    %v4375 = vadd.f32 %v4373, %v4374
    %v4376 = vsel %vm1134, %v4321, 0.0
    %v4377 = vadd.f32 %v4375, %v4376
    %v4378 = vsel %vm1134, %v4322, 0.0
    %v4379 = vadd.f32 %v4377, %v4378
    %v4380 = vsel %vm1134, %v4323, 0.0
    %v4381 = vadd.f32 %v4379, %v4380
    %v4382 = vsel %vm1134, %v4324, 0.0
    %v4383 = vadd.f32 %v4381, %v4382
    %v4384 = vsel %vm1134, %v4325, 0.0
    %v4385 = vadd.f32 %v4383, %v4384
    %v4386 = vsel %vm1134, %v4326, 0.0
    %v4387 = vadd.f32 %v4385, %v4386
    %v4388 = vsel %vm1134, %v4327, 0.0
    %v4389 = vadd.f32 %v4387, %v4388
    %v4390 = vsel %vm1134, %v4328, 0.0
    %v4391 = vadd.f32 %v4389, %v4390
    %4392 = vadd.xlane.f32.xlu0 %v4391
    %v4393 = vpop.xlane.xlu0 %4392
    %v4394 = vmul.f32 %v4393, 0.0009765625
    %v4395 = vadd.f32 %v4394, 1e-05
    %v4396 = vrsqrt.pop %v4395
    %v4397 = vmul.f32 %v4396, %v4395
    %v4398 = vmul.f32 %v4397, %v4396
    %v4399 = vmul.f32 0.5, %v4398
    %v4400 = vsub.f32 1.5, %v4399
    %v4401 = vmul.f32 %v4396, %v4400
    %vm4402 = vweird.f32 %v4395
    %vm4403 = vweird.f32 %v4396
    %vm4404 = vmor %vm4402, %vm4403
    %v4405 = vsel %vm4404, %v4396, %v4401
    %v4406 = vmul.f32 %v4233, %v4405
    %v4407 = vmul.f32 %v4234, %v4405
    %v4408 = vmul.f32 %v4235, %v4405
    %v4409 = vmul.f32 %v4236, %v4405
    %v4410 = vmul.f32 %v4237, %v4405
    %v4411 = vmul.f32 %v4238, %v4405
    %v4412 = vmul.f32 %v4239, %v4405
    %v4413 = vmul.f32 %v4240, %v4405
    %v4414 = vmul.f32 %v4241, %v4405
    %v4415 = vmul.f32 %v4242, %v4405
    %v4416 = vmul.f32 %v4243, %v4405
    %v4417 = vmul.f32 %v4244, %v4405
    %v4418 = vmul.f32 %v4245, %v4405
    %v4419 = vmul.f32 %v4246, %v4405
    %v4420 = vmul.f32 %v4247, %v4405
    %v4421 = vmul.f32 %v4248, %v4405
    %v4422 = vmul.f32 %v4249, %v4405
    %v4423 = vmul.f32 %v4250, %v4405
    %v4424 = vmul.f32 %v4251, %v4405
    %v4425 = vmul.f32 %v4252, %v4405
    %v4426 = vmul.f32 %v4253, %v4405
    %v4427 = vmul.f32 %v4254, %v4405
    %v4428 = vmul.f32 %v4255, %v4405
    %v4429 = vmul.f32 %v4256, %v4405
    %v4430 = vmul.f32 %v4257, %v4405
    %v4431 = vmul.f32 %v4258, %v4405
    %v4432 = vmul.f32 %v4259, %v4405
    %v4433 = vmul.f32 %v4260, %v4405
    %v4434 = vmul.f32 %v4261, %v4405
    %v4435 = vmul.f32 %v4262, %v4405
    %v4436 = vmul.f32 %v4263, %v4405
    %v4437 = vmul.f32 %v4264, %v4405
    %v4438 = vmax.f32 %v4406, 0.0
    %v4439 = vmax.f32 %v4407, 0.0
    %v4440 = vmax.f32 %v4408, 0.0
    %v4441 = vmax.f32 %v4409, 0.0
    %v4442 = vmax.f32 %v4410, 0.0
    %v4443 = vmax.f32 %v4411, 0.0
    %v4444 = vmax.f32 %v4412, 0.0
    %v4445 = vmax.f32 %v4413, 0.0
    %v4446 = vmax.f32 %v4414, 0.0
    %v4447 = vmax.f32 %v4415, 0.0
    %v4448 = vmax.f32 %v4416, 0.0
    %v4449 = vmax.f32 %v4417, 0.0
    %v4450 = vmax.f32 %v4418, 0.0
    %v4451 = vmax.f32 %v4419, 0.0
    %v4452 = vmax.f32 %v4420, 0.0
    %v4453 = vmax.f32 %v4421, 0.0
    %v4454 = vmax.f32 %v4422, 0.0
    %v4455 = vmax.f32 %v4423, 0.0
    %v4456 = vmax.f32 %v4424, 0.0
    %v4457 = vmax.f32 %v4425, 0.0
    %v4458 = vmax.f32 %v4426, 0.0
    %v4459 = vmax.f32 %v4427, 0.0
    %v4460 = vmax.f32 %v4428, 0.0
    %v4461 = vmax.f32 %v4429, 0.0
    %v4462 = vmax.f32 %v4430, 0.0
    %v4463 = vmax.f32 %v4431, 0.0
    %v4464 = vmax.f32 %v4432, 0.0
    %v4465 = vmax.f32 %v4433, 0.0
    %v4466 = vmax.f32 %v4434, 0.0
    %v4467 = vmax.f32 %v4435, 0.0
    %v4468 = vmax.f32 %v4436, 0.0
    %v4469 = vmax.f32 %v4437, 0.0
    %v4502 = vrot.slane %v4439, 4
    %v4503 = vrot.slane %v4441, 4
    %v4504 = vrot.slane %v4443, 4
    %v4505 = vrot.slane %v4445, 4
    %v4506 = vrot.slane %v4447, 4
    %v4507 = vrot.slane %v4449, 4
    %v4508 = vrot.slane %v4451, 4
    %v4509 = vrot.slane %v4453, 4
    %v4510 = vrot.slane %v4455, 4
    %v4511 = vrot.slane %v4457, 4
    %v4512 = vrot.slane %v4459, 4
    %v4513 = vrot.slane %v4461, 4
    %v4514 = vrot.slane %v4463, 4
    %v4515 = vrot.slane %v4465, 4
    %v4516 = vrot.slane %v4467, 4
    %v4517 = vrot.slane %v4469, 4
    %v4518 = vsel %vm1134, %v4438, %v4502
    %v4519 = vsel %vm1134, %v4440, %v4503
    %v4520 = vsel %vm1134, %v4442, %v4504
    %v4521 = vsel %vm1134, %v4444, %v4505
    %v4522 = vsel %vm1134, %v4446, %v4506
    %v4523 = vsel %vm1134, %v4448, %v4507
    %v4524 = vsel %vm1134, %v4450, %v4508
    %v4525 = vsel %vm1134, %v4452, %v4509
    %v4526 = vsel %vm1134, %v4454, %v4510
    %v4527 = vsel %vm1134, %v4456, %v4511
    %v4528 = vsel %vm1134, %v4458, %v4512
    %v4529 = vsel %vm1134, %v4460, %v4513
    %v4530 = vsel %vm1134, %v4462, %v4514
    %v4531 = vsel %vm1134, %v4464, %v4515
    %v4532 = vsel %vm1134, %v4466, %v4516
    %v4533 = vsel %vm1134, %v4468, %v4517
    %s4550 = scalar_lea.vmem [#allocation2], 128
    %4551 = vst [vmem:[%s4550] sm:$0xff] %v4518
    %4552 = vst [vmem:[%s4550 + $0x8] sm:$0xff] %v4519
    %4553 = vst [vmem:[%s4550 + $0x10] sm:$0xff] %v4520
    %4554 = vst [vmem:[%s4550 + $0x18] sm:$0xff] %v4521
    %4555 = vst [vmem:[%s4550 + $0x20] sm:$0xff] %v4522
    %4556 = vst [vmem:[%s4550 + $0x28] sm:$0xff] %v4523
    %4557 = vst [vmem:[%s4550 + $0x30] sm:$0xff] %v4524
    %4558 = vst [vmem:[%s4550 + $0x38] sm:$0xff] %v4525
    %4559 = vst [vmem:[%s4550 + $0x40] sm:$0xff] %v4526
    %4560 = vst [vmem:[%s4550 + $0x48] sm:$0xff] %v4527
    %4561 = vst [vmem:[%s4550 + $0x50] sm:$0xff] %v4528
    %4562 = vst [vmem:[%s4550 + $0x58] sm:$0xff] %v4529
    %4563 = vst [vmem:[%s4550 + $0x60] sm:$0xff] %v4530
    %4564 = vst [vmem:[%s4550 + $0x68] sm:$0xff] %v4531
    %4565 = vst [vmem:[%s4550 + $0x70] sm:$0xff] %v4532
    %4566 = vst [vmem:[%s4550 + $0x78] sm:$0xff] %v4533
    // Predicated region
    $region18: #{tpu_custom_call.1} parent=1 // pred_check
      _
    $region19: #{tpu_custom_call.1} parent=1 // pred_check_branch
      %4568 = sbr.rel (0) target = $region21
    $region20: #{tpu_custom_call.1} parent=1 // pred_region
      %4570 = vsyncadd [#allocation3], 0
      %s4571 = sshll.u32 [#allocation2], 4
      %s4572 = int_to_ptr.vmem [resolvable:$true] %s4571
      %s4573 = sshll.u32 %s4, 4
      %s4574 = int_to_ptr.hbm [resolvable:$true] %s4573
      %4579 = dma.vmem_to_hbm [thread:$0]  %s4572, 4096, %s4574, [#allocation3], 2048, 2048, 128
    $region21: #{tpu_custom_call.1} parent=1 // pred_fallthru
      _
    // Predicated region
    $region22: #{tpu_custom_call.1} parent=1 // pred_check
      _
    $region23: #{tpu_custom_call.1} parent=1 // pred_check_branch
      %4581 = sbr.rel (0) target = $region25
    $region24: #{tpu_custom_call.1} parent=1 // pred_region
      %4583 = dma.done [#allocation3], 4096
    $region25: #{tpu_custom_call.1} parent=1 // pred_fallthru
      _
    %4584 = vsyncpa [#allocation3], 1

</llo_original>
